<compile_context>
chip_gen: v7x
topology: tpu7x:2x2x1
jax: 0.10.0
libtpu: 0.0.40
codegen_flags: <defaults>
</compile_context>

<pallas_src>
import functools

import jax
import jax.numpy as jnp
from jax.experimental import pallas as pl
from jax.experimental.pallas import tpu as pltpu

LRELU_SLOPE = 0.1


def _resblock1_kernel(x_hbm, w1_ref, b1_ref, w2_ref, b2_ref, o_ref, xbuf, sem,
                      *, K, dilations, TT, H, R, T, C, slope):
    b = pl.program_id(0)
    j = pl.program_id(1)
    nT = pl.num_programs(1)
    slot = j & 1

    # ---- manual 2-slot double-buffered halo DMA ---------------------------
    def start_fetch(jj, sl):
        # Padded-time rows [jj*TT, jj*TT + H) of batch row b.
        st = pl.multiple_of(jj * TT, TT)
        pltpu.make_async_copy(x_hbm.at[b, pl.ds(st, H), :],
                              xbuf.at[sl], sem.at[sl]).start()

    @pl.when(j == 0)
    def _():                           # prime the pipeline (once per batch row)
        start_fetch(j, slot)

    @pl.when(j + 1 < nT)
    def _():                           # prefetch next tile into the other slot
        start_fetch(j + 1, 1 - slot)

    # Wait for this tile's slab (same (H, C) shape => same semaphore count).
    pltpu.make_async_copy(x_hbm.at[b, pl.ds(0, H), :], xbuf.at[slot],
                          sem.at[slot]).wait()

    # ---- fused ResBlock compute on the (H, C) fp32 slab --------------------
    cur = xbuf[slot]                                     # residual stream (fp32)

    # Global time position of every slab row; rows outside [0, T) must act as
    # zeros for every conv (Conv1d 'same' zero padding of each conv's input).
    pos = j * TT - R + jax.lax.broadcasted_iota(jnp.int32, (H, 1), 0)
    valid = jnp.logical_and(pos >= 0, pos < T)

    half = (K - 1) // 2

    def conv_unit(src, w_ref, b_ref, li, d):
        # leaky_relu -> 'same' conv (kernel K, dilation d); bf16 MXU, fp32 acc.
        xin = jnp.where(src >= 0, src, slope * src)      # LeakyReLU (fp32)
        xin = jnp.where(valid, xin, 0.0)                 # exact boundary zero-pad
        taps = []
        for kh in range(K):                              # static unroll over taps
            off = (kh - half) * d
            taps.append(xin if off == 0
                        else pltpu.roll(xin, shift=(-off) % H, axis=0))
        # One lane-dense (H, K*C) operand, single bf16 cast, single MXU matmul.
        x3 = jnp.concatenate(taps, axis=1).astype(jnp.bfloat16)
        y = jnp.dot(x3, w_ref[li], preferred_element_type=jnp.float32)
        return y + b_ref[li]                             # bias (1, C) broadcasts

    for li, d in enumerate(dilations):                   # 3 residual units, unrolled
        xt = conv_unit(cur, w1_ref, b1_ref, li, d)       # lrelu -> conv (dilation d)
        xt = conv_unit(xt, w2_ref, b2_ref, li, 1)        # lrelu -> conv (dilation 1)
        cur = xt + cur                                   # residual add (fp32)

    # Only the central TT rows are exact (halo R == total receptive half-width,
    # so roll wraparound never reaches them).
    o_ref[0] = cur[R:R + TT, :].astype(o_ref.dtype)


def resblock1_forward(params, x, *, kernel_size=3, dilations=(1, 3, 5),
                      time_tile=512):
    """x: (B, C, T) float32 (PyTorch NCT layout). Returns (B, C, T) float32."""
    w1, b1, w2, b2 = params
    B, C, T = x.shape
    K = kernel_size
    nd = len(dilations)
    assert K % 2 == 1, "kernel_size must be odd ('same' convs)"
    half = (K - 1) // 2
    # Total receptive-field half-width of the 6 convs: per unit pad(d) + pad(1),
    # with pad(d) = d*(K-1)//2.  This MUST be the halo, or tile-boundary
    # outputs silently corrupt.
    R = sum(half * (d + 1) for d in dilations)
    TT = int(time_tile)
    assert TT % 8 == 0 and TT > 0
    nT = pl.cdiv(T, TT)
    Tp = nT * TT
    H = TT + 2 * R

    # Channels-last (C on lanes) + ONE global zero pad (halo R/side + tile tail).
    # TODO(synk): in a fully channels-last model this transpose pair and the
    # halo pad can be dropped (clamped in-kernel DMA window) — the remaining
    # wrapper-side HBM traffic, which matters most on v6e.
    xl = jnp.transpose(x, (0, 2, 1)).astype(jnp.float32)       # (B, T, C)
    xp = jnp.pad(xl, ((0, 0), (R, R + (Tp - T)), (0, 0)))      # (B, Tp + 2R, C)

    # Fused-tap weights: (nd, K, Cin, Cout) -> (nd, K*Cin, Cout), bf16 MXU feeds.
    w1r = jnp.reshape(w1, (nd, K * C, C)).astype(jnp.bfloat16)
    w2r = jnp.reshape(w2, (nd, K * C, C)).astype(jnp.bfloat16)
    b1f = b1.astype(jnp.float32)                               # bias stays fp32
    b2f = b2.astype(jnp.float32)

    kernel = functools.partial(
        _resblock1_kernel, K=K, dilations=tuple(dilations),
        TT=TT, H=H, R=R, T=T, C=C, slope=LRELU_SLOPE)

    out = pl.pallas_call(
        kernel,
        out_shape=jax.ShapeDtypeStruct((B, Tp, C), jnp.float32),
        grid=(B, nT),
        in_specs=[
            pl.BlockSpec(memory_space=pl.ANY),                     # x: raw HBM, manual halo DMA
            pl.BlockSpec((nd, K * C, C), lambda b, j: (0, 0, 0)),  # convs1 weights (VMEM-resident)
            pl.BlockSpec((nd, 1, C), lambda b, j: (0, 0, 0)),      # convs1 bias
            pl.BlockSpec((nd, K * C, C), lambda b, j: (0, 0, 0)),  # convs2 weights (VMEM-resident)
            pl.BlockSpec((nd, 1, C), lambda b, j: (0, 0, 0)),      # convs2 bias
        ],
        out_specs=pl.BlockSpec((1, TT, C), lambda b, j: (b, j, 0)),
        scratch_shapes=[
            pltpu.VMEM((2, H, C), jnp.float32),        # 2-slot halo slab (double buffer)
            pltpu.SemaphoreType.DMA((2,)),
        ],
        compiler_params=pltpu.CompilerParams(
            # Time axis carries the manual double-buffer/semaphore state across
            # iterations -> "arbitrary"; batch axis is independent -> "parallel"
            # (v7x megacore shards batch rows across its two TensorCores).
            dimension_semantics=("parallel", "arbitrary")),
    )(xp, w1r, b1f, w2r, b2f)

    return jnp.transpose(out[:, :T, :], (0, 2, 1))


def resblock1_reference(params, x, *, kernel_size=3, dilations=(1, 3, 5)):
    """Pure-JAX fp32 reference matching the PyTorch ResBlock1 forward."""
    w1, b1, w2, b2 = params
    half = (kernel_size - 1) // 2

    def conv(h, w_kio, b, d):
        rhs = jnp.transpose(w_kio, (2, 1, 0))     # (K, Cin, Cout) -> (Cout, Cin, K)
        pad = d * half
        y = jax.lax.conv_general_dilated(
            h, rhs, window_strides=(1,), padding=[(pad, pad)],
            rhs_dilation=(d,), dimension_numbers=("NCH", "OIH", "NCH"))
        return y + b[0][None, :, None]

    cur = x
    for i, d in enumerate(dilations):
        xt = jax.nn.leaky_relu(cur, LRELU_SLOPE)
        xt = conv(xt, w1[i], b1[i], d)
        xt = jax.nn.leaky_relu(xt, LRELU_SLOPE)
        xt = conv(xt, w2[i], b2[i], 1)
        cur = xt + cur
    return cur


def init_params(key, channels, kernel_size=3, dilations=(1, 3, 5)):
    """Deterministic synthetic params (HiFi-GAN init_weights: normal(0, 0.01)).
    weight_norm at init reduces to the plain dense weight."""
    nd = len(dilations)
    kw1, kb1, kw2, kb2 = jax.random.split(key, 4)
    w1 = jax.random.normal(kw1, (nd, kernel_size, channels, channels), jnp.float32) * 0.01
    w2 = jax.random.normal(kw2, (nd, kernel_size, channels, channels), jnp.float32) * 0.01
    b1 = jax.random.normal(kb1, (nd, 1, channels), jnp.float32) * 0.01
    b2 = jax.random.normal(kb2, (nd, 1, channels), jnp.float32) * 0.01
    return w1, b1, w2, b2


if __name__ == "__main__":
    key = jax.random.PRNGKey(0)
    kp, kx = jax.random.split(key)

    C = 128
    params = init_params(kp, C)

    # Test 1: tile-aligned T, 2 time tiles per batch row (exercises the
    # double-buffered prefetch and tile-boundary halo correctness).
    B, T = 2, 256
    x = jax.random.normal(kx, (B, C, T), jnp.float32)
    fwd = jax.jit(functools.partial(resblock1_forward, time_tile=128))
    y = fwd(params, x)
    jax.block_until_ready(y)
    assert y.shape == (B, C, T)
    y_ref = resblock1_reference(params, x)
    err = float(jnp.max(jnp.abs(y - y_ref)))
    # bf16 MXU feeds with fp32 accumulation / fp32 residual stream.
    assert err < 5e-2, f"test1 max abs error vs reference: {err}"

    # Test 2: non-tile-aligned T with several tiles (exercises tail masking and
    # boundary-sensitive halo logic at every interior tile boundary).
    B2, T2 = 1, 200
    x2 = jax.random.normal(jax.random.fold_in(kx, 1), (B2, C, T2), jnp.float32)
    fwd2 = jax.jit(functools.partial(resblock1_forward, time_tile=64))
    y2 = fwd2(params, x2)
    jax.block_until_ready(y2)
    assert y2.shape == (B2, C, T2)
    y2_ref = resblock1_reference(params, x2)
    err2 = float(jnp.max(jnp.abs(y2 - y2_ref)))
    assert err2 < 5e-2, f"test2 max abs error vs reference: {err2}"

    print("KERNEL_OK")
</pallas_src>

<mosaic_0001>
module attributes {stable_mosaic.version = 11 : i64} {
  func.func @_resblock1_kernel(%arg0: i32, %arg1: i32, %arg2: memref<2x280x128xf32, #tpu.memory_space<any>>, %arg3: memref<3x384x128xbf16, #tpu.memory_space<vmem>>, %arg4: memref<3x1x128xf32, #tpu.memory_space<vmem>>, %arg5: memref<3x384x128xbf16, #tpu.memory_space<vmem>>, %arg6: memref<3x1x128xf32, #tpu.memory_space<vmem>>, %arg7: memref<1x128x128xf32, #tpu.memory_space<vmem>>, %arg8: memref<2x152x128xf32, #tpu.memory_space<vmem>>, %arg9: memref<2x!tpu.dma_semaphore, #tpu.memory_space<semaphore_mem>>) attributes {dimension_semantics = [#tpu.dimension_semantics<parallel>, #tpu.dimension_semantics<arbitrary>], iteration_bounds = array<i64: 2, 2>, scalar_prefetch = 0 : i64, scratch_operands = 2 : i64, tpu.core_type = #tpu.core_type<tc>, window_params = [{}, {pipeline_mode = #tpu.pipeline_mode<synchronous>, transform_indices = @transform_1, window_bounds = array<i64: 3, 384, 128>}, {pipeline_mode = #tpu.pipeline_mode<synchronous>, transform_indices = @transform_2, window_bounds = array<i64: 3, 1, 128>}, {pipeline_mode = #tpu.pipeline_mode<synchronous>, transform_indices = @transform_3, window_bounds = array<i64: 3, 384, 128>}, {pipeline_mode = #tpu.pipeline_mode<synchronous>, transform_indices = @transform_4, window_bounds = array<i64: 3, 1, 128>}, {transform_indices = @transform_5, window_bounds = array<i64: 1, 128, 128>}]} {
    %c1_i32 = arith.constant 1 : i32
    %0 = arith.andi %arg1, %c1_i32 : i32
    %c0_i32 = arith.constant 0 : i32
    %1 = arith.cmpi eq, %arg1, %c0_i32 : i32
    %2 = arith.extui %1 : i1 to i32
    %c0_i32_0 = arith.constant 0 : i32
    %3 = arith.cmpi ne, %2, %c0_i32_0 : i32
    scf.if %3 {
      %c128_i32_76 = arith.constant 128 : i32
      %154 = arith.muli %arg1, %c128_i32_76 : i32
      %155 = tpu.assume_multiple %154, 128 : i32
      %c0_i32_77 = arith.constant 0 : i32
      %156 = tpu.memref_slice %arg2[%arg0, %155, %c0_i32_77] : memref<2x280x128xf32, #tpu.memory_space<any>> -> memref<1x152x128xf32, #tpu.memory_space<any>>
      %157 = tpu.memref_squeeze %156 : memref<1x152x128xf32, #tpu.memory_space<any>> -> memref<152x128xf32, #tpu.memory_space<any>>
      %c0_i32_78 = arith.constant 0 : i32
      %c0_i32_79 = arith.constant 0 : i32
      %158 = tpu.memref_slice %arg8[%0, %c0_i32_78, %c0_i32_79] : memref<2x152x128xf32, #tpu.memory_space<vmem>> -> memref<1x152x128xf32, #tpu.memory_space<vmem>>
      %159 = tpu.memref_squeeze %158 : memref<1x152x128xf32, #tpu.memory_space<vmem>> -> memref<152x128xf32, #tpu.memory_space<vmem>>
      %160 = tpu.memref_slice %arg9[%0] : memref<2x!tpu.dma_semaphore, #tpu.memory_space<semaphore_mem>> -> memref<1x!tpu.dma_semaphore, #tpu.memory_space<semaphore_mem>>
      %161 = tpu.memref_squeeze %160 : memref<1x!tpu.dma_semaphore, #tpu.memory_space<semaphore_mem>> -> memref<!tpu.dma_semaphore, #tpu.memory_space<semaphore_mem>>
      tpu.enqueue_dma source(%157 : memref<152x128xf32, #tpu.memory_space<any>>) target(%159 : memref<152x128xf32, #tpu.memory_space<vmem>>) target_semaphore(%161 : memref<!tpu.dma_semaphore, #tpu.memory_space<semaphore_mem>>)
    } else {
    }
    %c1_i32_1 = arith.constant 1 : i32
    %4 = arith.addi %arg1, %c1_i32_1 : i32
    %c2_i32 = arith.constant 2 : i32
    %5 = arith.cmpi slt, %4, %c2_i32 : i32
    %6 = arith.extui %5 : i1 to i32
    %c0_i32_2 = arith.constant 0 : i32
    %7 = arith.cmpi ne, %6, %c0_i32_2 : i32
    scf.if %7 {
      %c1_i32_76 = arith.constant 1 : i32
      %154 = arith.addi %arg1, %c1_i32_76 : i32
      %c1_i32_77 = arith.constant 1 : i32
      %155 = arith.subi %c1_i32_77, %0 : i32
      %c128_i32_78 = arith.constant 128 : i32
      %156 = arith.muli %154, %c128_i32_78 : i32
      %157 = tpu.assume_multiple %156, 128 : i32
      %c0_i32_79 = arith.constant 0 : i32
      %158 = tpu.memref_slice %arg2[%arg0, %157, %c0_i32_79] : memref<2x280x128xf32, #tpu.memory_space<any>> -> memref<1x152x128xf32, #tpu.memory_space<any>>
      %159 = tpu.memref_squeeze %158 : memref<1x152x128xf32, #tpu.memory_space<any>> -> memref<152x128xf32, #tpu.memory_space<any>>
      %c0_i32_80 = arith.constant 0 : i32
      %c0_i32_81 = arith.constant 0 : i32
      %160 = tpu.memref_slice %arg8[%155, %c0_i32_80, %c0_i32_81] : memref<2x152x128xf32, #tpu.memory_space<vmem>> -> memref<1x152x128xf32, #tpu.memory_space<vmem>>
      %161 = tpu.memref_squeeze %160 : memref<1x152x128xf32, #tpu.memory_space<vmem>> -> memref<152x128xf32, #tpu.memory_space<vmem>>
      %162 = tpu.memref_slice %arg9[%155] : memref<2x!tpu.dma_semaphore, #tpu.memory_space<semaphore_mem>> -> memref<1x!tpu.dma_semaphore, #tpu.memory_space<semaphore_mem>>
      %163 = tpu.memref_squeeze %162 : memref<1x!tpu.dma_semaphore, #tpu.memory_space<semaphore_mem>> -> memref<!tpu.dma_semaphore, #tpu.memory_space<semaphore_mem>>
      tpu.enqueue_dma source(%159 : memref<152x128xf32, #tpu.memory_space<any>>) target(%161 : memref<152x128xf32, #tpu.memory_space<vmem>>) target_semaphore(%163 : memref<!tpu.dma_semaphore, #tpu.memory_space<semaphore_mem>>)
    } else {
    }
    %c0_i32_3 = arith.constant 0 : i32
    %c0_i32_4 = arith.constant 0 : i32
    %8 = tpu.memref_slice %arg2[%arg0, %c0_i32_3, %c0_i32_4] : memref<2x280x128xf32, #tpu.memory_space<any>> -> memref<1x152x128xf32, #tpu.memory_space<any>>
    %9 = tpu.memref_squeeze %8 : memref<1x152x128xf32, #tpu.memory_space<any>> -> memref<152x128xf32, #tpu.memory_space<any>>
    %c0_i32_5 = arith.constant 0 : i32
    %c0_i32_6 = arith.constant 0 : i32
    %10 = tpu.memref_slice %arg8[%0, %c0_i32_5, %c0_i32_6] : memref<2x152x128xf32, #tpu.memory_space<vmem>> -> memref<1x152x128xf32, #tpu.memory_space<vmem>>
    %11 = tpu.memref_squeeze %10 : memref<1x152x128xf32, #tpu.memory_space<vmem>> -> memref<152x128xf32, #tpu.memory_space<vmem>>
    %12 = tpu.memref_slice %arg9[%0] : memref<2x!tpu.dma_semaphore, #tpu.memory_space<semaphore_mem>> -> memref<1x!tpu.dma_semaphore, #tpu.memory_space<semaphore_mem>>
    %13 = tpu.memref_squeeze %12 : memref<1x!tpu.dma_semaphore, #tpu.memory_space<semaphore_mem>> -> memref<!tpu.dma_semaphore, #tpu.memory_space<semaphore_mem>>
    tpu.wait_dma2 semaphore(%13 : memref<!tpu.dma_semaphore, #tpu.memory_space<semaphore_mem>>) src(%9 : memref<152x128xf32, #tpu.memory_space<any>>) dst(%11 : memref<152x128xf32, #tpu.memory_space<vmem>>)
    %14 = arith.index_cast %0 : i32 to index
    %c0 = arith.constant 0 : index
    %c0_7 = arith.constant 0 : index
    %15 = vector.load %arg8[%14, %c0, %c0_7] : memref<2x152x128xf32, #tpu.memory_space<vmem>>, vector<1x152x128xf32>
    %16 = vector.shape_cast %15 : vector<1x152x128xf32> to vector<152x128xf32>
    %c128_i32 = arith.constant 128 : i32
    %17 = arith.muli %arg1, %c128_i32 : i32
    %c12_i32 = arith.constant 12 : i32
    %18 = arith.subi %17, %c12_i32 : i32
    %19 = tpu.iota {dimensions = array<i32: 0>} : vector<152x1xi32>
    %20 = vector.broadcast %18 : i32 to vector<152x1xi32>
    %21 = arith.addi %20, %19 : vector<152x1xi32>
    %c0_i32_8 = arith.constant 0 : i32
    %22 = vector.broadcast %c0_i32_8 : i32 to vector<152x1xi32>
    %23 = arith.cmpi sge, %21, %22 : vector<152x1xi32>
    %c256_i32 = arith.constant 256 : i32
    %24 = vector.broadcast %c256_i32 : i32 to vector<152x1xi32>
    %25 = arith.cmpi slt, %21, %24 : vector<152x1xi32>
    %26 = arith.andi %23, %25 : vector<152x1xi1>
    %cst = arith.constant 0.000000e+00 : f32
    %27 = vector.broadcast %cst : f32 to vector<152x128xf32>
    %28 = arith.cmpf oge, %16, %27 : vector<152x128xf32>
    %cst_9 = arith.constant 1.000000e-01 : f32
    %29 = vector.broadcast %cst_9 : f32 to vector<152x128xf32>
    %30 = arith.mulf %29, %16 : vector<152x128xf32>
    %31 = arith.select %28, %16, %30 : vector<152x128xi1>, vector<152x128xf32>
    %cst_10 = arith.constant 0.000000e+00 : f32
    %32 = vector.shape_cast %26 : vector<152x1xi1> to vector<152x1xi1>
    %33 = vector.broadcast %32 : vector<152x1xi1> to vector<152x128xi1>
    %34 = vector.broadcast %cst_10 : f32 to vector<152x128xf32>
    %35 = arith.select %33, %31, %34 : vector<152x128xi1>, vector<152x128xf32>
    %c1_i32_11 = arith.constant 1 : i32
    %36 = tpu.dynamic_rotate %35 by %c1_i32_11 dim 0 : vector<152x128xf32>, i32 -> vector<152x128xf32>
    %c151_i32 = arith.constant 151 : i32
    %37 = tpu.dynamic_rotate %35 by %c151_i32 dim 0 : vector<152x128xf32>, i32 -> vector<152x128xf32>
    %38 = tpu.concatenate %36, %35, %37 in 1 : vector<152x128xf32>, vector<152x128xf32>, vector<152x128xf32> -> vector<152x384xf32>
    %39 = arith.truncf %38 : vector<152x384xf32> to vector<152x384xbf16>
    %c0_12 = arith.constant 0 : index
    %c0_13 = arith.constant 0 : index
    %c0_14 = arith.constant 0 : index
    %40 = vector.load %arg3[%c0_12, %c0_13, %c0_14] : memref<3x384x128xbf16, #tpu.memory_space<vmem>>, vector<1x384x128xbf16>
    %41 = vector.shape_cast %40 : vector<1x384x128xbf16> to vector<384x128xbf16>
    %cst_15 = arith.constant dense<0.000000e+00> : vector<152x128xf32>
    %42 = tpu.matmul %39, %41, %cst_15 {dimension_numbers = #tpu.dot_dimension_numbers<[1], [0], [0], [1], [0, 0, 1, 1], [], []>} : vector<152x384xbf16>, vector<384x128xbf16>, vector<152x128xf32> -> vector<152x128xf32>
    %c0_16 = arith.constant 0 : index
    %c0_17 = arith.constant 0 : index
    %c0_18 = arith.constant 0 : index
    %43 = vector.load %arg4[%c0_16, %c0_17, %c0_18] : memref<3x1x128xf32, #tpu.memory_space<vmem>>, vector<1x1x128xf32>
    %44 = vector.shape_cast %43 : vector<1x1x128xf32> to vector<1x128xf32>
    %45 = vector.broadcast %44 : vector<1x128xf32> to vector<152x128xf32>
    %46 = arith.addf %42, %45 : vector<152x128xf32>
    %cst_19 = arith.constant 0.000000e+00 : f32
    %47 = vector.broadcast %cst_19 : f32 to vector<152x128xf32>
    %48 = arith.cmpf oge, %46, %47 : vector<152x128xf32>
    %cst_20 = arith.constant 1.000000e-01 : f32
    %49 = vector.broadcast %cst_20 : f32 to vector<152x128xf32>
    %50 = arith.mulf %49, %46 : vector<152x128xf32>
    %51 = arith.select %48, %46, %50 : vector<152x128xi1>, vector<152x128xf32>
    %cst_21 = arith.constant 0.000000e+00 : f32
    %52 = vector.shape_cast %26 : vector<152x1xi1> to vector<152x1xi1>
    %53 = vector.broadcast %52 : vector<152x1xi1> to vector<152x128xi1>
    %54 = vector.broadcast %cst_21 : f32 to vector<152x128xf32>
    %55 = arith.select %53, %51, %54 : vector<152x128xi1>, vector<152x128xf32>
    %c1_i32_22 = arith.constant 1 : i32
    %56 = tpu.dynamic_rotate %55 by %c1_i32_22 dim 0 : vector<152x128xf32>, i32 -> vector<152x128xf32>
    %c151_i32_23 = arith.constant 151 : i32
    %57 = tpu.dynamic_rotate %55 by %c151_i32_23 dim 0 : vector<152x128xf32>, i32 -> vector<152x128xf32>
    %58 = tpu.concatenate %56, %55, %57 in 1 : vector<152x128xf32>, vector<152x128xf32>, vector<152x128xf32> -> vector<152x384xf32>
    %59 = arith.truncf %58 : vector<152x384xf32> to vector<152x384xbf16>
    %c0_24 = arith.constant 0 : index
    %c0_25 = arith.constant 0 : index
    %c0_26 = arith.constant 0 : index
    %60 = vector.load %arg5[%c0_24, %c0_25, %c0_26] : memref<3x384x128xbf16, #tpu.memory_space<vmem>>, vector<1x384x128xbf16>
    %61 = vector.shape_cast %60 : vector<1x384x128xbf16> to vector<384x128xbf16>
    %cst_27 = arith.constant dense<0.000000e+00> : vector<152x128xf32>
    %62 = tpu.matmul %59, %61, %cst_27 {dimension_numbers = #tpu.dot_dimension_numbers<[1], [0], [0], [1], [0, 0, 1, 1], [], []>} : vector<152x384xbf16>, vector<384x128xbf16>, vector<152x128xf32> -> vector<152x128xf32>
    %c0_28 = arith.constant 0 : index
    %c0_29 = arith.constant 0 : index
    %c0_30 = arith.constant 0 : index
    %63 = vector.load %arg6[%c0_28, %c0_29, %c0_30] : memref<3x1x128xf32, #tpu.memory_space<vmem>>, vector<1x1x128xf32>
    %64 = vector.shape_cast %63 : vector<1x1x128xf32> to vector<1x128xf32>
    %65 = vector.broadcast %64 : vector<1x128xf32> to vector<152x128xf32>
    %66 = arith.addf %62, %65 : vector<152x128xf32>
    %67 = arith.addf %66, %16 : vector<152x128xf32>
    %cst_31 = arith.constant 0.000000e+00 : f32
    %68 = vector.broadcast %cst_31 : f32 to vector<152x128xf32>
    %69 = arith.cmpf oge, %67, %68 : vector<152x128xf32>
    %cst_32 = arith.constant 1.000000e-01 : f32
    %70 = vector.broadcast %cst_32 : f32 to vector<152x128xf32>
    %71 = arith.mulf %70, %67 : vector<152x128xf32>
    %72 = arith.select %69, %67, %71 : vector<152x128xi1>, vector<152x128xf32>
    %cst_33 = arith.constant 0.000000e+00 : f32
    %73 = vector.shape_cast %26 : vector<152x1xi1> to vector<152x1xi1>
    %74 = vector.broadcast %73 : vector<152x1xi1> to vector<152x128xi1>
    %75 = vector.broadcast %cst_33 : f32 to vector<152x128xf32>
    %76 = arith.select %74, %72, %75 : vector<152x128xi1>, vector<152x128xf32>
    %c3_i32 = arith.constant 3 : i32
    %77 = tpu.dynamic_rotate %76 by %c3_i32 dim 0 : vector<152x128xf32>, i32 -> vector<152x128xf32>
    %c149_i32 = arith.constant 149 : i32
    %78 = tpu.dynamic_rotate %76 by %c149_i32 dim 0 : vector<152x128xf32>, i32 -> vector<152x128xf32>
    %79 = tpu.concatenate %77, %76, %78 in 1 : vector<152x128xf32>, vector<152x128xf32>, vector<152x128xf32> -> vector<152x384xf32>
    %80 = arith.truncf %79 : vector<152x384xf32> to vector<152x384xbf16>
    %c1 = arith.constant 1 : index
    %c0_34 = arith.constant 0 : index
    %c0_35 = arith.constant 0 : index
    %81 = vector.load %arg3[%c1, %c0_34, %c0_35] : memref<3x384x128xbf16, #tpu.memory_space<vmem>>, vector<1x384x128xbf16>
    %82 = vector.shape_cast %81 : vector<1x384x128xbf16> to vector<384x128xbf16>
    %cst_36 = arith.constant dense<0.000000e+00> : vector<152x128xf32>
    %83 = tpu.matmul %80, %82, %cst_36 {dimension_numbers = #tpu.dot_dimension_numbers<[1], [0], [0], [1], [0, 0, 1, 1], [], []>} : vector<152x384xbf16>, vector<384x128xbf16>, vector<152x128xf32> -> vector<152x128xf32>
    %c1_37 = arith.constant 1 : index
    %c0_38 = arith.constant 0 : index
    %c0_39 = arith.constant 0 : index
    %84 = vector.load %arg4[%c1_37, %c0_38, %c0_39] : memref<3x1x128xf32, #tpu.memory_space<vmem>>, vector<1x1x128xf32>
    %85 = vector.shape_cast %84 : vector<1x1x128xf32> to vector<1x128xf32>
    %86 = vector.broadcast %85 : vector<1x128xf32> to vector<152x128xf32>
    %87 = arith.addf %83, %86 : vector<152x128xf32>
    %cst_40 = arith.constant 0.000000e+00 : f32
    %88 = vector.broadcast %cst_40 : f32 to vector<152x128xf32>
    %89 = arith.cmpf oge, %87, %88 : vector<152x128xf32>
    %cst_41 = arith.constant 1.000000e-01 : f32
    %90 = vector.broadcast %cst_41 : f32 to vector<152x128xf32>
    %91 = arith.mulf %90, %87 : vector<152x128xf32>
    %92 = arith.select %89, %87, %91 : vector<152x128xi1>, vector<152x128xf32>
    %cst_42 = arith.constant 0.000000e+00 : f32
    %93 = vector.shape_cast %26 : vector<152x1xi1> to vector<152x1xi1>
    %94 = vector.broadcast %93 : vector<152x1xi1> to vector<152x128xi1>
    %95 = vector.broadcast %cst_42 : f32 to vector<152x128xf32>
    %96 = arith.select %94, %92, %95 : vector<152x128xi1>, vector<152x128xf32>
    %c1_i32_43 = arith.constant 1 : i32
    %97 = tpu.dynamic_rotate %96 by %c1_i32_43 dim 0 : vector<152x128xf32>, i32 -> vector<152x128xf32>
    %c151_i32_44 = arith.constant 151 : i32
    %98 = tpu.dynamic_rotate %96 by %c151_i32_44 dim 0 : vector<152x128xf32>, i32 -> vector<152x128xf32>
    %99 = tpu.concatenate %97, %96, %98 in 1 : vector<152x128xf32>, vector<152x128xf32>, vector<152x128xf32> -> vector<152x384xf32>
    %100 = arith.truncf %99 : vector<152x384xf32> to vector<152x384xbf16>
    %c1_45 = arith.constant 1 : index
    %c0_46 = arith.constant 0 : index
    %c0_47 = arith.constant 0 : index
    %101 = vector.load %arg5[%c1_45, %c0_46, %c0_47] : memref<3x384x128xbf16, #tpu.memory_space<vmem>>, vector<1x384x128xbf16>
    %102 = vector.shape_cast %101 : vector<1x384x128xbf16> to vector<384x128xbf16>
    %cst_48 = arith.constant dense<0.000000e+00> : vector<152x128xf32>
    %103 = tpu.matmul %100, %102, %cst_48 {dimension_numbers = #tpu.dot_dimension_numbers<[1], [0], [0], [1], [0, 0, 1, 1], [], []>} : vector<152x384xbf16>, vector<384x128xbf16>, vector<152x128xf32> -> vector<152x128xf32>
    %c1_49 = arith.constant 1 : index
    %c0_50 = arith.constant 0 : index
    %c0_51 = arith.constant 0 : index
    %104 = vector.load %arg6[%c1_49, %c0_50, %c0_51] : memref<3x1x128xf32, #tpu.memory_space<vmem>>, vector<1x1x128xf32>
    %105 = vector.shape_cast %104 : vector<1x1x128xf32> to vector<1x128xf32>
    %106 = vector.broadcast %105 : vector<1x128xf32> to vector<152x128xf32>
    %107 = arith.addf %103, %106 : vector<152x128xf32>
    %108 = arith.addf %107, %67 : vector<152x128xf32>
    %cst_52 = arith.constant 0.000000e+00 : f32
    %109 = vector.broadcast %cst_52 : f32 to vector<152x128xf32>
    %110 = arith.cmpf oge, %108, %109 : vector<152x128xf32>
    %cst_53 = arith.constant 1.000000e-01 : f32
    %111 = vector.broadcast %cst_53 : f32 to vector<152x128xf32>
    %112 = arith.mulf %111, %108 : vector<152x128xf32>
    %113 = arith.select %110, %108, %112 : vector<152x128xi1>, vector<152x128xf32>
    %cst_54 = arith.constant 0.000000e+00 : f32
    %114 = vector.shape_cast %26 : vector<152x1xi1> to vector<152x1xi1>
    %115 = vector.broadcast %114 : vector<152x1xi1> to vector<152x128xi1>
    %116 = vector.broadcast %cst_54 : f32 to vector<152x128xf32>
    %117 = arith.select %115, %113, %116 : vector<152x128xi1>, vector<152x128xf32>
    %c5_i32 = arith.constant 5 : i32
    %118 = tpu.dynamic_rotate %117 by %c5_i32 dim 0 : vector<152x128xf32>, i32 -> vector<152x128xf32>
    %c147_i32 = arith.constant 147 : i32
    %119 = tpu.dynamic_rotate %117 by %c147_i32 dim 0 : vector<152x128xf32>, i32 -> vector<152x128xf32>
    %120 = tpu.concatenate %118, %117, %119 in 1 : vector<152x128xf32>, vector<152x128xf32>, vector<152x128xf32> -> vector<152x384xf32>
    %121 = arith.truncf %120 : vector<152x384xf32> to vector<152x384xbf16>
    %c2 = arith.constant 2 : index
    %c0_55 = arith.constant 0 : index
    %c0_56 = arith.constant 0 : index
    %122 = vector.load %arg3[%c2, %c0_55, %c0_56] : memref<3x384x128xbf16, #tpu.memory_space<vmem>>, vector<1x384x128xbf16>
    %123 = vector.shape_cast %122 : vector<1x384x128xbf16> to vector<384x128xbf16>
    %cst_57 = arith.constant dense<0.000000e+00> : vector<152x128xf32>
    %124 = tpu.matmul %121, %123, %cst_57 {dimension_numbers = #tpu.dot_dimension_numbers<[1], [0], [0], [1], [0, 0, 1, 1], [], []>} : vector<152x384xbf16>, vector<384x128xbf16>, vector<152x128xf32> -> vector<152x128xf32>
    %c2_58 = arith.constant 2 : index
    %c0_59 = arith.constant 0 : index
    %c0_60 = arith.constant 0 : index
    %125 = vector.load %arg4[%c2_58, %c0_59, %c0_60] : memref<3x1x128xf32, #tpu.memory_space<vmem>>, vector<1x1x128xf32>
    %126 = vector.shape_cast %125 : vector<1x1x128xf32> to vector<1x128xf32>
    %127 = vector.broadcast %126 : vector<1x128xf32> to vector<152x128xf32>
    %128 = arith.addf %124, %127 : vector<152x128xf32>
    %cst_61 = arith.constant 0.000000e+00 : f32
    %129 = vector.broadcast %cst_61 : f32 to vector<152x128xf32>
    %130 = arith.cmpf oge, %128, %129 : vector<152x128xf32>
    %cst_62 = arith.constant 1.000000e-01 : f32
    %131 = vector.broadcast %cst_62 : f32 to vector<152x128xf32>
    %132 = arith.mulf %131, %128 : vector<152x128xf32>
    %133 = arith.select %130, %128, %132 : vector<152x128xi1>, vector<152x128xf32>
    %cst_63 = arith.constant 0.000000e+00 : f32
    %134 = vector.shape_cast %26 : vector<152x1xi1> to vector<152x1xi1>
    %135 = vector.broadcast %134 : vector<152x1xi1> to vector<152x128xi1>
    %136 = vector.broadcast %cst_63 : f32 to vector<152x128xf32>
    %137 = arith.select %135, %133, %136 : vector<152x128xi1>, vector<152x128xf32>
    %c1_i32_64 = arith.constant 1 : i32
    %138 = tpu.dynamic_rotate %137 by %c1_i32_64 dim 0 : vector<152x128xf32>, i32 -> vector<152x128xf32>
    %c151_i32_65 = arith.constant 151 : i32
    %139 = tpu.dynamic_rotate %137 by %c151_i32_65 dim 0 : vector<152x128xf32>, i32 -> vector<152x128xf32>
    %140 = tpu.concatenate %138, %137, %139 in 1 : vector<152x128xf32>, vector<152x128xf32>, vector<152x128xf32> -> vector<152x384xf32>
    %141 = arith.truncf %140 : vector<152x384xf32> to vector<152x384xbf16>
    %c2_66 = arith.constant 2 : index
    %c0_67 = arith.constant 0 : index
    %c0_68 = arith.constant 0 : index
    %142 = vector.load %arg5[%c2_66, %c0_67, %c0_68] : memref<3x384x128xbf16, #tpu.memory_space<vmem>>, vector<1x384x128xbf16>
    %143 = vector.shape_cast %142 : vector<1x384x128xbf16> to vector<384x128xbf16>
    %cst_69 = arith.constant dense<0.000000e+00> : vector<152x128xf32>
    %144 = tpu.matmul %141, %143, %cst_69 {dimension_numbers = #tpu.dot_dimension_numbers<[1], [0], [0], [1], [0, 0, 1, 1], [], []>} : vector<152x384xbf16>, vector<384x128xbf16>, vector<152x128xf32> -> vector<152x128xf32>
    %c2_70 = arith.constant 2 : index
    %c0_71 = arith.constant 0 : index
    %c0_72 = arith.constant 0 : index
    %145 = vector.load %arg6[%c2_70, %c0_71, %c0_72] : memref<3x1x128xf32, #tpu.memory_space<vmem>>, vector<1x1x128xf32>
    %146 = vector.shape_cast %145 : vector<1x1x128xf32> to vector<1x128xf32>
    %147 = vector.broadcast %146 : vector<1x128xf32> to vector<152x128xf32>
    %148 = arith.addf %144, %147 : vector<152x128xf32>
    %149 = arith.addf %148, %108 : vector<152x128xf32>
    %150 = vector.extract_strided_slice %149 {offsets = [12, 0], sizes = [128, 128], strides = [1, 1]} : vector<152x128xf32> to vector<128x128xf32>
    %c0_73 = arith.constant 0 : index
    %c0_74 = arith.constant 0 : index
    %c0_75 = arith.constant 0 : index
    %151 = vector.load %arg7[%c0_73, %c0_74, %c0_75] : memref<1x128x128xf32, #tpu.memory_space<vmem>>, vector<1x128x128xf32>
    %152 = vector.shape_cast %151 : vector<1x128x128xf32> to vector<128x128xf32>
    %153 = vector.shape_cast %150 : vector<128x128xf32> to vector<1x128x128xf32>
    tpu.vector_store %arg7[%c0_73, %c0_74, %c0_75], %153 {strides = array<i32>} : memref<1x128x128xf32, #tpu.memory_space<vmem>>, vector<1x128x128xf32>,
    return
  }
  func.func @transform_1(%arg0: i32, %arg1: i32) -> (i32, i32, i32) {
    %c0_i32 = arith.constant 0 : i32
    %c0_i32_0 = arith.constant 0 : i32
    %c0_i32_1 = arith.constant 0 : i32
    %c0_i32_2 = arith.constant 0 : i32
    return %c0_i32, %c0_i32_0, %c0_i32_1 : i32, i32, i32
  }
  func.func @transform_2(%arg0: i32, %arg1: i32) -> (i32, i32, i32) {
    %c0_i32 = arith.constant 0 : i32
    %c0_i32_0 = arith.constant 0 : i32
    %c0_i32_1 = arith.constant 0 : i32
    %c0_i32_2 = arith.constant 0 : i32
    return %c0_i32, %c0_i32_0, %c0_i32_1 : i32, i32, i32
  }
  func.func @transform_3(%arg0: i32, %arg1: i32) -> (i32, i32, i32) {
    %c0_i32 = arith.constant 0 : i32
    %c0_i32_0 = arith.constant 0 : i32
    %c0_i32_1 = arith.constant 0 : i32
    %c0_i32_2 = arith.constant 0 : i32
    return %c0_i32, %c0_i32_0, %c0_i32_1 : i32, i32, i32
  }
  func.func @transform_4(%arg0: i32, %arg1: i32) -> (i32, i32, i32) {
    %c0_i32 = arith.constant 0 : i32
    %c0_i32_0 = arith.constant 0 : i32
    %c0_i32_1 = arith.constant 0 : i32
    %c0_i32_2 = arith.constant 0 : i32
    return %c0_i32, %c0_i32_0, %c0_i32_1 : i32, i32, i32
  }
  func.func @transform_5(%arg0: i32, %arg1: i32) -> (i32, i32, i32) {
    %c0_i32 = arith.constant 0 : i32
    %c0_i32_0 = arith.constant 0 : i32
    return %arg0, %arg1, %c0_i32 : i32, i32, i32
  }
}

</mosaic_0001>

<llo_original>
// kernel: resblock1_forward.1
$region0: #{resblock1_forward.1}
  #allocation0 [shape = 'u32[]', space=smem, size = 0x4, offset = 0x4, fixed_abs, tag = 'smem constant byte address 0x4 - core index']
  #allocation1 [shape = 'u32[144,128]{1,0:T(1,128)}', space=vmem, size = 0x12000, scoped, tag = 'internal scratch']
  #allocation2 [shape = 'f32[2,152,128]{2,1,0:T(8,128)}', space=vmem, size = 0x26000, scoped, tag = 'scratch operand']
  #allocation3 [shape = 's32[2]{0}', space=sflag, size = 0x8, scoped, tag = 'scratch operand']
  #allocation4 [shape = 's32[]', space=sflag, size = 0x4, offset = 0, fixed_abs, tag = 'sflag constant byte address 0x0 - dummy sync flag']
  #allocation5 [shape = 's32[]', space=sflag, size = 0x4, offset = 0, fixed_abs, tag = 'sflag constant byte address 0x0 - dummy sync flag']
  %s0 = inlined_call_operand.vmem [shape: f32[2,280,128], index: 0, kind: input, shape index: {}]
  %s1 = inlined_call_operand.vmem [shape: bf16[3,384,128], index: 1, kind: input, shape index: {}]
  %s2 = inlined_call_operand.vmem [shape: f32[3,1,128], index: 2, kind: input, shape index: {}]
  %s3 = inlined_call_operand.vmem [shape: bf16[3,384,128], index: 3, kind: input, shape index: {}]
  %s4 = inlined_call_operand.vmem [shape: f32[3,1,128], index: 4, kind: input, shape index: {}]
  %s5 = inlined_call_operand.vmem [shape: f32[2,256,128], index: 5, kind: output, shape index: {}]
  %s6 = sld [smem:[#allocation0]]
  $region125: #{resblock1_forward.1} parent=0
    _
  %s8 = ssub.s32 1, %s6
  %s9 = scalar_select 0, %s8, %s6
  loop: start=0, step=1, limit=6
  $region2: #{resblock1_forward.1} parent=0 // loop_pre_header
    _
  $region3: #{resblock1_forward.1} parent=0 // loop_header
    %s11 = sphi 0, %s15
    %p12 = scmp.ge.s32.totalorder %s11, 6
    %s18 = sphi 0, %s30
    %s19 = sphi 0, %s26
    %s20 = sphi 0, %s18
    %s21 = sphi 0, %s19
    %s22 = sphi 0, %s20
    %s23 = sphi 0, %s21
    %s31 = sphi 0, %s31
    %s33 = sphi 0, %s31
    %s34 = sphi 0, %s33
    %s48 = sphi 0, %s34
    %s52 = sphi 0, %s52
    %s54 = sphi 0, %s52
    %s55 = sphi 0, %s54
    %s69 = sphi 0, %s55
    %s73 = sphi 0, %s73
    %s75 = sphi 0, %s73
    %s76 = sphi 0, %s75
    %s90 = sphi 0, %s76
    %s94 = sphi 0, %s94
    %s96 = sphi 0, %s94
    %s97 = sphi 0, %s96
    %s111 = sphi 0, %s97
    %s119 = sphi 0, %s121
    %s122 = sphi 0, %s119
    %s123 = sphi 0, %s122
    %s139 = sphi 0, %s123
  $region4: #{resblock1_forward.1} parent=0 // loop_header_branch
    %14 = sbr.rel (%p12) target = $region8
  $region5: #{resblock1_forward.1} parent=0 // loop_body
    %s16 = ssub.s32 %s11, 1
    %s17 = ssub.s32 %s11, 2
    %s24 = sadd.s32 1, %s19
    %p25 = scmp.ge.s32.totalorder %s24, 2
    %s26 = scalar_select %p25, 0, %s24
    %s27 = sadd.s32 1, %s18
    %s28 = scalar_select %p25, %s27, %s18
    %p29 = scmp.ge.s32.totalorder %s28, 2
    %s30 = scalar_select %p29, 0, %s28
    %s32 = sadd.s32 %s31, 1
    %p35 = scmp.eq.s32.totalorder %s11, 3
    %p36 = scmp.ne.s32.totalorder %s31, %s33
    %p37 = scmp.eq.s32.totalorder %s11, 0
    %p38 = por %p36, %p37
    %p39 = scmp.ne.s32.totalorder %s31, %s33
    %p40 = scmp.eq.s32.totalorder %s16, 3
    %p41 = por %p39, %p40
    %p42 = scmp.ne.s32.totalorder %s33, %s34
    %p43 = scmp.eq.s32.totalorder %s16, 0
    %p44 = por %p42, %p43
    %p45 = scmp.ne.s32.totalorder %s33, %s34
    %p46 = scmp.eq.s32.totalorder %s17, 3
    %p47 = por %p45, %p46
    %p49 = scmp.ne.s32.totalorder %s34, %s48
    %p50 = scmp.eq.s32.totalorder %s17, 0
    %p51 = por %p49, %p50
    %s53 = sadd.s32 %s52, 1
    %p56 = scmp.eq.s32.totalorder %s11, 3
    %p57 = scmp.ne.s32.totalorder %s52, %s54
    %p58 = scmp.eq.s32.totalorder %s11, 0
    %p59 = por %p57, %p58
    %p60 = scmp.ne.s32.totalorder %s52, %s54
    %p61 = scmp.eq.s32.totalorder %s16, 3
    %p62 = por %p60, %p61
    %p63 = scmp.ne.s32.totalorder %s54, %s55
    %p64 = scmp.eq.s32.totalorder %s16, 0
    %p65 = por %p63, %p64
    %p66 = scmp.ne.s32.totalorder %s54, %s55
    %p67 = scmp.eq.s32.totalorder %s17, 3
    %p68 = por %p66, %p67
    %p70 = scmp.ne.s32.totalorder %s55, %s69
    %p71 = scmp.eq.s32.totalorder %s17, 0
    %p72 = por %p70, %p71
    %s74 = sadd.s32 %s73, 1
    %p77 = scmp.eq.s32.totalorder %s11, 3
    %p78 = scmp.ne.s32.totalorder %s73, %s75
    %p79 = scmp.eq.s32.totalorder %s11, 0
    %p80 = por %p78, %p79
    %p81 = scmp.ne.s32.totalorder %s73, %s75
    %p82 = scmp.eq.s32.totalorder %s16, 3
    %p83 = por %p81, %p82
    %p84 = scmp.ne.s32.totalorder %s75, %s76
    %p85 = scmp.eq.s32.totalorder %s16, 0
    %p86 = por %p84, %p85
    %p87 = scmp.ne.s32.totalorder %s75, %s76
    %p88 = scmp.eq.s32.totalorder %s17, 3
    %p89 = por %p87, %p88
    %p91 = scmp.ne.s32.totalorder %s76, %s90
    %p92 = scmp.eq.s32.totalorder %s17, 0
    %p93 = por %p91, %p92
    %s95 = sadd.s32 %s94, 1
    %p98 = scmp.eq.s32.totalorder %s11, 3
    %p99 = scmp.ne.s32.totalorder %s94, %s96
    %p100 = scmp.eq.s32.totalorder %s11, 0
    %p101 = por %p99, %p100
    %p102 = scmp.ne.s32.totalorder %s94, %s96
    %p103 = scmp.eq.s32.totalorder %s16, 3
    %p104 = por %p102, %p103
    %p105 = scmp.ne.s32.totalorder %s96, %s97
    %p106 = scmp.eq.s32.totalorder %s16, 0
    %p107 = por %p105, %p106
    %p108 = scmp.ne.s32.totalorder %s96, %s97
    %p109 = scmp.eq.s32.totalorder %s17, 3
    %p110 = por %p108, %p109
    %p112 = scmp.ne.s32.totalorder %s97, %s111
    %p113 = scmp.eq.s32.totalorder %s17, 0
    %p114 = por %p112, %p113
    %s115 = ssub.s32 %s18, %s30
    %s116 = ssub.s32 %s19, %s26
    %s117 = sor.u32 %s115, %s116
    %p118 = scmp.eq.s32.totalorder %s117, 0
    %s120 = sadd.s32 %s119, 1
    %s121 = scalar_select %p118, %s119, %s120
    %p124 = pneg %p118
    %p125 = scmp.eq.s32.totalorder %s11, 3
    %p126 = por %p124, %p125
    %p127 = scmp.ne.s32.totalorder %s119, %s122
    %p128 = scmp.eq.s32.totalorder %s11, 0
    %p129 = por %p127, %p128
    %p130 = scmp.ne.s32.totalorder %s119, %s122
    %p131 = scmp.eq.s32.totalorder %s16, 3
    %p132 = por %p130, %p131
    %p133 = scmp.ne.s32.totalorder %s122, %s123
    %p134 = scmp.eq.s32.totalorder %s16, 0
    %p135 = por %p133, %p134
    %p136 = scmp.ne.s32.totalorder %s122, %s123
    %p137 = scmp.eq.s32.totalorder %s17, 3
    %p138 = por %p136, %p137
    %p140 = scmp.ne.s32.totalorder %s123, %s139
    %p141 = scmp.eq.s32.totalorder %s17, 0
    %p142 = por %p140, %p141
    %p143 = scmp.le.s32.totalorder 1, %s11
    %p144 = scmp.lt.s32.totalorder %s11, 5
    %p145 = pnand %p143, %p144
    %p146 = pneg %p145
    // Predicated region
    $region9: #{resblock1_forward.1} parent=5 // pred_check
      _
    $region10: #{resblock1_forward.1} parent=5 // pred_check_branch
      %148 = sbr.rel (%p145) target = $region12
    $region11: #{resblock1_forward.1} parent=5 // pred_region
      %s149 = ssub.s32 %s11, 1
      // Predicated region
      $region13: #{resblock1_forward.1} parent=11 // pred_check
        %p150 = pneg %p44
      $region14: #{resblock1_forward.1} parent=11 // pred_check_branch
        %152 = sbr.rel (%p150) target = $region16
      $region15: #{resblock1_forward.1} parent=11 // pred_region
        _
      $region16: #{resblock1_forward.1} parent=11 // pred_fallthru
        _
      // Predicated region
      $region17: #{resblock1_forward.1} parent=11 // pred_check
        %p153 = pneg %p65
      $region18: #{resblock1_forward.1} parent=11 // pred_check_branch
        %155 = sbr.rel (%p153) target = $region20
      $region19: #{resblock1_forward.1} parent=11 // pred_region
        _
      $region20: #{resblock1_forward.1} parent=11 // pred_fallthru
        _
      // Predicated region
      $region21: #{resblock1_forward.1} parent=11 // pred_check
        %p156 = pneg %p86
      $region22: #{resblock1_forward.1} parent=11 // pred_check_branch
        %158 = sbr.rel (%p156) target = $region24
      $region23: #{resblock1_forward.1} parent=11 // pred_region
        _
      $region24: #{resblock1_forward.1} parent=11 // pred_fallthru
        _
      // Predicated region
      $region25: #{resblock1_forward.1} parent=11 // pred_check
        %p159 = pneg %p107
      $region26: #{resblock1_forward.1} parent=11 // pred_check_branch
        %161 = sbr.rel (%p159) target = $region28
      $region27: #{resblock1_forward.1} parent=11 // pred_region
        _
      $region28: #{resblock1_forward.1} parent=11 // pred_fallthru
        _
    $region12: #{resblock1_forward.1} parent=5 // pred_fallthru
      _
    %p162 = scmp.lt.s32.totalorder %s11, 4
    // Predicated region
    $region29: #{resblock1_forward.1} parent=5 // pred_check
      %p163 = pneg %p162
    $region30: #{resblock1_forward.1} parent=5 // pred_check_branch
      %165 = sbr.rel (%p163) target = $region32
    $region31: #{resblock1_forward.1} parent=5 // pred_region
      _
    $region32: #{resblock1_forward.1} parent=5 // pred_fallthru
      _
    %p166 = scmp.le.s32.totalorder 1, %s11
    %p167 = scmp.lt.s32.totalorder %s11, 5
    %p168 = pnand %p166, %p167
    %p169 = pneg %p168
    // Predicated region
    $region33: #{resblock1_forward.1} parent=5 // pred_check
      _
    $region34: #{resblock1_forward.1} parent=5 // pred_check_branch
      %171 = sbr.rel (%p168) target = $region36
    $region35: #{resblock1_forward.1} parent=5 // pred_region
      %s172 = ssub.s32 %s11, 1
      %p173 = pneg %p44
      %p174 = pneg %p41
      %p175 = pneg %p65
      %p176 = pneg %p62
      %p177 = pneg %p86
      %p178 = pneg %p83
      %p179 = pneg %p107
      %p180 = pneg %p104
      %p181 = pneg %p135
      %p182 = pneg %p132
      %s183 = smul.u32 16, %s21
      %p184 = scmp.lt.s32.totalorder %s20, 1
      %s185 = scalar_select %p184, %s20, 1
      %p186 = scmp.lt.s32.totalorder %s183, 31
      %s187 = scalar_select %p186, %s183, 31
      %s188 = smul.addr %s185, 32
      %s189 = sadd.s32 %s187, %s188
      %s190 = smul.addr %s189, 8
      %s191 = scalar_lea.vmem %s5, %s190
      %s192 = smul.u32 16, %s21
      %p193 = scmp.lt.s32.totalorder %s20, 1
      %s194 = scalar_select %p193, %s20, 1
      %p195 = scmp.lt.s32.totalorder %s192, 31
      %s196 = scalar_select %p195, %s192, 31
      %s197 = smul.addr %s194, 32
      %s198 = sadd.s32 %s196, %s197
      %s199 = smul.addr %s198, 8
      %s200 = scalar_lea.vmem %s5, %s199
      %s201 = smul.u32 16, %s21
      %s203 = sand.u32 %s21, 1
      %p204 = scmp.eq.s32.totalorder %s21, 0
      // Predicated region
      $region37: #{resblock1_forward.1} parent=35 // pred_check
        %p205 = pneg %p204
      $region38: #{resblock1_forward.1} parent=35 // pred_check_branch
        %207 = sbr.rel (%p205) target = $region40
      $region39: #{resblock1_forward.1} parent=35 // pred_region
        %s208 = smul.u32 %s21, 128
        %s209 = smul.u32 %s20, 280
        %s210 = sadd.s32 %s208, %s209
        %s211 = scalar_lea.vmem %s0, %s210
        %s212 = smul.u32 %s203, 152
        %s213 = scalar_lea.vmem [#allocation2], %s212
        %s214 = scalar_lea.sflag [#allocation3], %s203
        %p216 = scmp.lt.u32.totalorder 152, 8
        %p217 = pneg %p216
        // Predicated region
        $region41: #{resblock1_forward.1} parent=39 // pred_check
          _
        $region42: #{resblock1_forward.1} parent=39 // pred_check_branch
          %219 = sbr.rel (%p216) target = $region44
        $region43: #{resblock1_forward.1} parent=39 // pred_region
          %s234 = sand.u32 152, 7
          %p235 = scmp.eq.s32.totalorder %s234, 0
          // Predicated region
          $region56: #{resblock1_forward.1} parent=43 // pred_check
            %p236 = pneg %p235
          $region57: #{resblock1_forward.1} parent=43 // pred_check_branch
            %238 = sbr.rel (%p236) target = $region59
          $region58: #{resblock1_forward.1} parent=43 // pred_region
            loop: start=0, step=1, limit=1
            $region60: #{resblock1_forward.1} parent=58 // loop_pre_header
              _
            $region61: #{resblock1_forward.1} parent=58 // loop_header
              %s240 = sphi 0, %s244
              %p241 = scmp.ge.s32.totalorder %s240, 1
              %s245 = sphi %s211, %s211
              %s246 = sphi %s213, %s213
            $region62: #{resblock1_forward.1} parent=58 // loop_header_branch
              %243 = sbr.rel (%p241) target = $region66
            $region63: #{resblock1_forward.1} parent=58 // loop_body
              %v247 = vld [vmem:[%s245] sm:$0xff]
              %248 = vst [vmem:[%s246] sm:$0xff] %v247
              %v249 = vld [vmem:[%s245 + $0x8] sm:$0xff]
              %250 = vst [vmem:[%s246 + $0x8] sm:$0xff] %v249
              %v251 = vld [vmem:[%s245 + $0x10] sm:$0xff]
              %252 = vst [vmem:[%s246 + $0x10] sm:$0xff] %v251
              %v253 = vld [vmem:[%s245 + $0x18] sm:$0xff]
              %254 = vst [vmem:[%s246 + $0x18] sm:$0xff] %v253
              %v255 = vld [vmem:[%s245 + $0x20] sm:$0xff]
              %256 = vst [vmem:[%s246 + $0x20] sm:$0xff] %v255
              %v257 = vld [vmem:[%s245 + $0x28] sm:$0xff]
              %258 = vst [vmem:[%s246 + $0x28] sm:$0xff] %v257
              %v259 = vld [vmem:[%s245 + $0x30] sm:$0xff]
              %260 = vst [vmem:[%s246 + $0x30] sm:$0xff] %v259
              %v261 = vld [vmem:[%s245 + $0x38] sm:$0xff]
              %262 = vst [vmem:[%s246 + $0x38] sm:$0xff] %v261
              %v263 = vld [vmem:[%s245 + $0x40] sm:$0xff]
              %264 = vst [vmem:[%s246 + $0x40] sm:$0xff] %v263
              %v265 = vld [vmem:[%s245 + $0x48] sm:$0xff]
              %266 = vst [vmem:[%s246 + $0x48] sm:$0xff] %v265
              %v267 = vld [vmem:[%s245 + $0x50] sm:$0xff]
              %268 = vst [vmem:[%s246 + $0x50] sm:$0xff] %v267
              %v269 = vld [vmem:[%s245 + $0x58] sm:$0xff]
              %270 = vst [vmem:[%s246 + $0x58] sm:$0xff] %v269
              %v271 = vld [vmem:[%s245 + $0x60] sm:$0xff]
              %272 = vst [vmem:[%s246 + $0x60] sm:$0xff] %v271
              %v273 = vld [vmem:[%s245 + $0x68] sm:$0xff]
              %274 = vst [vmem:[%s246 + $0x68] sm:$0xff] %v273
              %v275 = vld [vmem:[%s245 + $0x70] sm:$0xff]
              %276 = vst [vmem:[%s246 + $0x70] sm:$0xff] %v275
              %v277 = vld [vmem:[%s245 + $0x78] sm:$0xff]
              %278 = vst [vmem:[%s246 + $0x78] sm:$0xff] %v277
              %v279 = vld [vmem:[%s245 + $0x80] sm:$0xff]
              %280 = vst [vmem:[%s246 + $0x80] sm:$0xff] %v279
              %v281 = vld [vmem:[%s245 + $0x88] sm:$0xff]
              %282 = vst [vmem:[%s246 + $0x88] sm:$0xff] %v281
              %v283 = vld [vmem:[%s245 + $0x90] sm:$0xff]
              %284 = vst [vmem:[%s246 + $0x90] sm:$0xff] %v283
            $region64: #{resblock1_forward.1} parent=58 // loop_footer
              %s244 = sadd.s32 1, %s240
            $region65: #{resblock1_forward.1} parent=58 // loop_footer_branch
              %239 = sbr.rel target = $region61
            $region66: #{resblock1_forward.1} parent=58 // loop_exit
              _
          $region59: #{resblock1_forward.1} parent=43 // pred_fallthru
            _
          %p285 = pneg %p235
          // Predicated region
          $region67: #{resblock1_forward.1} parent=43 // pred_check
            _
          $region68: #{resblock1_forward.1} parent=43 // pred_check_branch
            %287 = sbr.rel (%p235) target = $region70
          $region69: #{resblock1_forward.1} parent=43 // pred_region
            %s288 = sand.u32 152, 7
          $region70: #{resblock1_forward.1} parent=43 // pred_fallthru
            _
        $region44: #{resblock1_forward.1} parent=39 // pred_fallthru
          _
        // Predicated region
        $region45: #{resblock1_forward.1} parent=39 // pred_check
          %p220 = pneg %p216
        $region46: #{resblock1_forward.1} parent=39 // pred_check_branch
          %222 = sbr.rel (%p220) target = $region48
        $region47: #{resblock1_forward.1} parent=39 // pred_region
          %s223 = sshllo.u32 0, 152
          loop: start=0, step=1, limit=1
          $region49: #{resblock1_forward.1} parent=47 // loop_pre_header
            _
          $region50: #{resblock1_forward.1} parent=47 // loop_header
            %s225 = sphi 0, %s229
            %p226 = scmp.ge.s32.totalorder %s225, 1
            %s230 = sphi %s211, %s211
            %s231 = sphi %s213, %s213
          $region51: #{resblock1_forward.1} parent=47 // loop_header_branch
            %228 = sbr.rel (%p226) target = $region55
          $region52: #{resblock1_forward.1} parent=47 // loop_body
            %v232 = vld [vmem:[%s230] sm:%s223]
            %233 = vst [vmem:[%s231] sm:%s223] %v232
          $region53: #{resblock1_forward.1} parent=47 // loop_footer
            %s229 = sadd.s32 1, %s225
          $region54: #{resblock1_forward.1} parent=47 // loop_footer_branch
            %224 = sbr.rel target = $region50
          $region55: #{resblock1_forward.1} parent=47 // loop_exit
            _
        $region48: #{resblock1_forward.1} parent=39 // pred_fallthru
          _
        // Predicated region
        $region71: #{resblock1_forward.1} parent=39 // pred_check
          _
        $region72: #{resblock1_forward.1} parent=39 // pred_check_branch
          %291 = sbr.rel (0) target = $region74
        $region73: #{resblock1_forward.1} parent=39 // pred_region
          %292 = vsyncadd %s214, 2432
        $region74: #{resblock1_forward.1} parent=39 // pred_fallthru
          _
      $region40: #{resblock1_forward.1} parent=35 // pred_fallthru
        _
      %s293 = sadd.s32 %s21, 1
      %p294 = scmp.lt.s32.totalorder %s293, 2
      // Predicated region
      $region75: #{resblock1_forward.1} parent=35 // pred_check
        %p295 = pneg %p294
      $region76: #{resblock1_forward.1} parent=35 // pred_check_branch
        %297 = sbr.rel (%p295) target = $region78
      $region77: #{resblock1_forward.1} parent=35 // pred_region
        %s298 = ssub.s32 1, %s203
        %s299 = smul.u32 %s293, 128
        %s300 = smul.u32 %s20, 280
        %s301 = sadd.s32 %s299, %s300
        %s302 = scalar_lea.vmem %s0, %s301
        %s303 = smul.u32 %s298, 152
        %s304 = scalar_lea.vmem [#allocation2], %s303
        %s305 = scalar_lea.sflag [#allocation3], %s298
        %p307 = scmp.lt.u32.totalorder 152, 8
        %p308 = pneg %p307
        // Predicated region
        $region79: #{resblock1_forward.1} parent=77 // pred_check
          _
        $region80: #{resblock1_forward.1} parent=77 // pred_check_branch
          %310 = sbr.rel (%p307) target = $region82
        $region81: #{resblock1_forward.1} parent=77 // pred_region
          %s325 = sand.u32 152, 7
          %p326 = scmp.eq.s32.totalorder %s325, 0
          // Predicated region
          $region94: #{resblock1_forward.1} parent=81 // pred_check
            %p327 = pneg %p326
          $region95: #{resblock1_forward.1} parent=81 // pred_check_branch
            %329 = sbr.rel (%p327) target = $region97
          $region96: #{resblock1_forward.1} parent=81 // pred_region
            loop: start=0, step=1, limit=1
            $region98: #{resblock1_forward.1} parent=96 // loop_pre_header
              _
            $region99: #{resblock1_forward.1} parent=96 // loop_header
              %s331 = sphi 0, %s335
              %p332 = scmp.ge.s32.totalorder %s331, 1
              %s336 = sphi %s302, %s302
              %s337 = sphi %s304, %s304
            $region100: #{resblock1_forward.1} parent=96 // loop_header_branch
              %334 = sbr.rel (%p332) target = $region104
            $region101: #{resblock1_forward.1} parent=96 // loop_body
              %v338 = vld [vmem:[%s336] sm:$0xff]
              %339 = vst [vmem:[%s337] sm:$0xff] %v338
              %v340 = vld [vmem:[%s336 + $0x8] sm:$0xff]
              %341 = vst [vmem:[%s337 + $0x8] sm:$0xff] %v340
              %v342 = vld [vmem:[%s336 + $0x10] sm:$0xff]
              %343 = vst [vmem:[%s337 + $0x10] sm:$0xff] %v342
              %v344 = vld [vmem:[%s336 + $0x18] sm:$0xff]
              %345 = vst [vmem:[%s337 + $0x18] sm:$0xff] %v344
              %v346 = vld [vmem:[%s336 + $0x20] sm:$0xff]
              %347 = vst [vmem:[%s337 + $0x20] sm:$0xff] %v346
              %v348 = vld [vmem:[%s336 + $0x28] sm:$0xff]
              %349 = vst [vmem:[%s337 + $0x28] sm:$0xff] %v348
              %v350 = vld [vmem:[%s336 + $0x30] sm:$0xff]
              %351 = vst [vmem:[%s337 + $0x30] sm:$0xff] %v350
              %v352 = vld [vmem:[%s336 + $0x38] sm:$0xff]
              %353 = vst [vmem:[%s337 + $0x38] sm:$0xff] %v352
              %v354 = vld [vmem:[%s336 + $0x40] sm:$0xff]
              %355 = vst [vmem:[%s337 + $0x40] sm:$0xff] %v354
              %v356 = vld [vmem:[%s336 + $0x48] sm:$0xff]
              %357 = vst [vmem:[%s337 + $0x48] sm:$0xff] %v356
              %v358 = vld [vmem:[%s336 + $0x50] sm:$0xff]
              %359 = vst [vmem:[%s337 + $0x50] sm:$0xff] %v358
              %v360 = vld [vmem:[%s336 + $0x58] sm:$0xff]
              %361 = vst [vmem:[%s337 + $0x58] sm:$0xff] %v360
              %v362 = vld [vmem:[%s336 + $0x60] sm:$0xff]
              %363 = vst [vmem:[%s337 + $0x60] sm:$0xff] %v362
              %v364 = vld [vmem:[%s336 + $0x68] sm:$0xff]
              %365 = vst [vmem:[%s337 + $0x68] sm:$0xff] %v364
              %v366 = vld [vmem:[%s336 + $0x70] sm:$0xff]
              %367 = vst [vmem:[%s337 + $0x70] sm:$0xff] %v366
              %v368 = vld [vmem:[%s336 + $0x78] sm:$0xff]
              %369 = vst [vmem:[%s337 + $0x78] sm:$0xff] %v368
              %v370 = vld [vmem:[%s336 + $0x80] sm:$0xff]
              %371 = vst [vmem:[%s337 + $0x80] sm:$0xff] %v370
              %v372 = vld [vmem:[%s336 + $0x88] sm:$0xff]
              %373 = vst [vmem:[%s337 + $0x88] sm:$0xff] %v372
              %v374 = vld [vmem:[%s336 + $0x90] sm:$0xff]
              %375 = vst [vmem:[%s337 + $0x90] sm:$0xff] %v374
            $region102: #{resblock1_forward.1} parent=96 // loop_footer
              %s335 = sadd.s32 1, %s331
            $region103: #{resblock1_forward.1} parent=96 // loop_footer_branch
              %330 = sbr.rel target = $region99
            $region104: #{resblock1_forward.1} parent=96 // loop_exit
              _
          $region97: #{resblock1_forward.1} parent=81 // pred_fallthru
            _
          %p376 = pneg %p326
          // Predicated region
          $region105: #{resblock1_forward.1} parent=81 // pred_check
            _
          $region106: #{resblock1_forward.1} parent=81 // pred_check_branch
            %378 = sbr.rel (%p326) target = $region108
          $region107: #{resblock1_forward.1} parent=81 // pred_region
            %s379 = sand.u32 152, 7
          $region108: #{resblock1_forward.1} parent=81 // pred_fallthru
            _
        $region82: #{resblock1_forward.1} parent=77 // pred_fallthru
          _
        // Predicated region
        $region83: #{resblock1_forward.1} parent=77 // pred_check
          %p311 = pneg %p307
        $region84: #{resblock1_forward.1} parent=77 // pred_check_branch
          %313 = sbr.rel (%p311) target = $region86
        $region85: #{resblock1_forward.1} parent=77 // pred_region
          %s314 = sshllo.u32 0, 152
          loop: start=0, step=1, limit=1
          $region87: #{resblock1_forward.1} parent=85 // loop_pre_header
            _
          $region88: #{resblock1_forward.1} parent=85 // loop_header
            %s316 = sphi 0, %s320
            %p317 = scmp.ge.s32.totalorder %s316, 1
            %s321 = sphi %s302, %s302
            %s322 = sphi %s304, %s304
          $region89: #{resblock1_forward.1} parent=85 // loop_header_branch
            %319 = sbr.rel (%p317) target = $region93
          $region90: #{resblock1_forward.1} parent=85 // loop_body
            %v323 = vld [vmem:[%s321] sm:%s314]
            %324 = vst [vmem:[%s322] sm:%s314] %v323
          $region91: #{resblock1_forward.1} parent=85 // loop_footer
            %s320 = sadd.s32 1, %s316
          $region92: #{resblock1_forward.1} parent=85 // loop_footer_branch
            %315 = sbr.rel target = $region88
          $region93: #{resblock1_forward.1} parent=85 // loop_exit
            _
        $region86: #{resblock1_forward.1} parent=77 // pred_fallthru
          _
        // Predicated region
        $region109: #{resblock1_forward.1} parent=77 // pred_check
          _
        $region110: #{resblock1_forward.1} parent=77 // pred_check_branch
          %382 = sbr.rel (0) target = $region112
        $region111: #{resblock1_forward.1} parent=77 // pred_region
          %383 = vsyncadd %s305, 2432
        $region112: #{resblock1_forward.1} parent=77 // pred_fallthru
          _
      $region78: #{resblock1_forward.1} parent=35 // pred_fallthru
        _
      %s384 = smul.u32 %s203, 152
      %s385 = scalar_lea.vmem [#allocation2], %s384
      %s386 = scalar_lea.sflag [#allocation3], %s203
      %s387 = smul.u32 152, 1
      %s388 = sshll.u32 %s387, 4
      %389 = dma.done %s386, %s388
      %v390 = vld [vmem:[%s385] sm:$0xff]
      %v391 = vld [vmem:[%s385 + $0x8] sm:$0xff]
      %v392 = vld [vmem:[%s385 + $0x10] sm:$0xff]
      %v393 = vld [vmem:[%s385 + $0x18] sm:$0xff]
      %v394 = vld [vmem:[%s385 + $0x20] sm:$0xff]
      %v395 = vld [vmem:[%s385 + $0x28] sm:$0xff]
      %v396 = vld [vmem:[%s385 + $0x30] sm:$0xff]
      %v397 = vld [vmem:[%s385 + $0x38] sm:$0xff]
      %v398 = vld [vmem:[%s385 + $0x40] sm:$0xff]
      %v399 = vld [vmem:[%s385 + $0x48] sm:$0xff]
      %v400 = vld [vmem:[%s385 + $0x50] sm:$0xff]
      %v401 = vld [vmem:[%s385 + $0x58] sm:$0xff]
      %v402 = vld [vmem:[%s385 + $0x60] sm:$0xff]
      %v403 = vld [vmem:[%s385 + $0x68] sm:$0xff]
      %v404 = vld [vmem:[%s385 + $0x70] sm:$0xff]
      %v405 = vld [vmem:[%s385 + $0x78] sm:$0xff]
      %v406 = vld [vmem:[%s385 + $0x80] sm:$0xff]
      %v407 = vld [vmem:[%s385 + $0x88] sm:$0xff]
      %v408 = vld [vmem:[%s385 + $0x90] sm:$0xff]
      %s409 = smul.u32 %s21, 128
      %s410 = ssub.s32 %s409, 12
      %v411 = vlaneseq
      %v412 = vshrl.u32 %v411, 7
      %v413 = vadd.s32 %v412, 8
      %v414 = vadd.s32 %v412, 16
      %v415 = vadd.s32 %v412, 24
      %v416 = vadd.s32 %v412, 32
      %v417 = vadd.s32 %v412, 40
      %v418 = vadd.s32 %v412, 48
      %v419 = vadd.s32 %v412, 56
      %v420 = vadd.s32 %v412, 64
      %v421 = vadd.s32 %v412, 72
      %v422 = vadd.s32 %v412, 80
      %v423 = vadd.s32 %v412, 88
      %v424 = vadd.s32 %v412, 96
      %v425 = vadd.s32 %v412, 104
      %v426 = vadd.s32 %v412, 112
      %v427 = vadd.s32 %v412, 120
      %v428 = vadd.s32 %v412, 128
      %v429 = vadd.s32 %v412, 136
      %v430 = vadd.s32 %v412, 144
      %v431 = vstv %s410
      %v432 = vadd.s32 %v431, %v412
      %v433 = vadd.s32 %v431, %v413
      %v434 = vadd.s32 %v431, %v414
      %v435 = vadd.s32 %v431, %v415
      %v436 = vadd.s32 %v431, %v416
      %v437 = vadd.s32 %v431, %v417
      %v438 = vadd.s32 %v431, %v418
      %v439 = vadd.s32 %v431, %v419
      %v440 = vadd.s32 %v431, %v420
      %v441 = vadd.s32 %v431, %v421
      %v442 = vadd.s32 %v431, %v422
      %v443 = vadd.s32 %v431, %v423
      %v444 = vadd.s32 %v431, %v424
      %v445 = vadd.s32 %v431, %v425
      %v446 = vadd.s32 %v431, %v426
      %v447 = vadd.s32 %v431, %v427
      %v448 = vadd.s32 %v431, %v428
      %v449 = vadd.s32 %v431, %v429
      %v450 = vadd.s32 %v431, %v430
      %vm451 = vcmp.ge.s32.totalorder %v432, 0
      %vm452 = vcmp.ge.s32.totalorder %v433, 0
      %vm453 = vcmp.ge.s32.totalorder %v434, 0
      %vm454 = vcmp.ge.s32.totalorder %v435, 0
      %vm455 = vcmp.ge.s32.totalorder %v436, 0
      %vm456 = vcmp.ge.s32.totalorder %v437, 0
      %vm457 = vcmp.ge.s32.totalorder %v438, 0
      %vm458 = vcmp.ge.s32.totalorder %v439, 0
      %vm459 = vcmp.ge.s32.totalorder %v440, 0
      %vm460 = vcmp.ge.s32.totalorder %v441, 0
      %vm461 = vcmp.ge.s32.totalorder %v442, 0
      %vm462 = vcmp.ge.s32.totalorder %v443, 0
      %vm463 = vcmp.ge.s32.totalorder %v444, 0
      %vm464 = vcmp.ge.s32.totalorder %v445, 0
      %vm465 = vcmp.ge.s32.totalorder %v446, 0
      %vm466 = vcmp.ge.s32.totalorder %v447, 0
      %vm467 = vcmp.ge.s32.totalorder %v448, 0
      %vm468 = vcmp.ge.s32.totalorder %v449, 0
      %vm469 = vcmp.ge.s32.totalorder %v450, 0
      %vm470 = vcmp.lt.s32.totalorder %v432, 256
      %vm471 = vcmp.lt.s32.totalorder %v433, 256
      %vm472 = vcmp.lt.s32.totalorder %v434, 256
      %vm473 = vcmp.lt.s32.totalorder %v435, 256
      %vm474 = vcmp.lt.s32.totalorder %v436, 256
      %vm475 = vcmp.lt.s32.totalorder %v437, 256
      %vm476 = vcmp.lt.s32.totalorder %v438, 256
      %vm477 = vcmp.lt.s32.totalorder %v439, 256
      %vm478 = vcmp.lt.s32.totalorder %v440, 256
      %vm479 = vcmp.lt.s32.totalorder %v441, 256
      %vm480 = vcmp.lt.s32.totalorder %v442, 256
      %vm481 = vcmp.lt.s32.totalorder %v443, 256
      %vm482 = vcmp.lt.s32.totalorder %v444, 256
      %vm483 = vcmp.lt.s32.totalorder %v445, 256
      %vm484 = vcmp.lt.s32.totalorder %v446, 256
      %vm485 = vcmp.lt.s32.totalorder %v447, 256
      %vm486 = vcmp.lt.s32.totalorder %v448, 256
      %vm487 = vcmp.lt.s32.totalorder %v449, 256
      %vm488 = vcmp.lt.s32.totalorder %v450, 256
      %vm489 = vmand %vm451, %vm470
      %vm490 = vmand %vm452, %vm471
      %vm491 = vmand %vm453, %vm472
      %vm492 = vmand %vm454, %vm473
      %vm493 = vmand %vm455, %vm474
      %vm494 = vmand %vm456, %vm475
      %vm495 = vmand %vm457, %vm476
      %vm496 = vmand %vm458, %vm477
      %vm497 = vmand %vm459, %vm478
      %vm498 = vmand %vm460, %vm479
      %vm499 = vmand %vm461, %vm480
      %vm500 = vmand %vm462, %vm481
      %vm501 = vmand %vm463, %vm482
      %vm502 = vmand %vm464, %vm483
      %vm503 = vmand %vm465, %vm484
      %vm504 = vmand %vm466, %vm485
      %vm505 = vmand %vm467, %vm486
      %vm506 = vmand %vm468, %vm487
      %vm507 = vmand %vm469, %vm488
      %vm508 = vcmp.ge.f32.partialorder %v390, 0.0
      %vm509 = vcmp.ge.f32.partialorder %v391, 0.0
      %vm510 = vcmp.ge.f32.partialorder %v392, 0.0
      %vm511 = vcmp.ge.f32.partialorder %v393, 0.0
      %vm512 = vcmp.ge.f32.partialorder %v394, 0.0
      %vm513 = vcmp.ge.f32.partialorder %v395, 0.0
      %vm514 = vcmp.ge.f32.partialorder %v396, 0.0
      %vm515 = vcmp.ge.f32.partialorder %v397, 0.0
      %vm516 = vcmp.ge.f32.partialorder %v398, 0.0
      %vm517 = vcmp.ge.f32.partialorder %v399, 0.0
      %vm518 = vcmp.ge.f32.partialorder %v400, 0.0
      %vm519 = vcmp.ge.f32.partialorder %v401, 0.0
      %vm520 = vcmp.ge.f32.partialorder %v402, 0.0
      %vm521 = vcmp.ge.f32.partialorder %v403, 0.0
      %vm522 = vcmp.ge.f32.partialorder %v404, 0.0
      %vm523 = vcmp.ge.f32.partialorder %v405, 0.0
      %vm524 = vcmp.ge.f32.partialorder %v406, 0.0
      %vm525 = vcmp.ge.f32.partialorder %v407, 0.0
      %vm526 = vcmp.ge.f32.partialorder %v408, 0.0
      %v527 = vmul.f32 %v390, 0.1
      %v528 = vmul.f32 %v391, 0.1
      %v529 = vmul.f32 %v392, 0.1
      %v530 = vmul.f32 %v393, 0.1
      %v531 = vmul.f32 %v394, 0.1
      %v532 = vmul.f32 %v395, 0.1
      %v533 = vmul.f32 %v396, 0.1
      %v534 = vmul.f32 %v397, 0.1
      %v535 = vmul.f32 %v398, 0.1
      %v536 = vmul.f32 %v399, 0.1
      %v537 = vmul.f32 %v400, 0.1
      %v538 = vmul.f32 %v401, 0.1
      %v539 = vmul.f32 %v402, 0.1
      %v540 = vmul.f32 %v403, 0.1
      %v541 = vmul.f32 %v404, 0.1
      %v542 = vmul.f32 %v405, 0.1
      %v543 = vmul.f32 %v406, 0.1
      %v544 = vmul.f32 %v407, 0.1
      %v545 = vmul.f32 %v408, 0.1
      %v546 = vsel %vm508, %v390, %v527
      %v547 = vsel %vm509, %v391, %v528
      %v548 = vsel %vm510, %v392, %v529
      %v549 = vsel %vm511, %v393, %v530
      %v550 = vsel %vm512, %v394, %v531
      %v551 = vsel %vm513, %v395, %v532
      %v552 = vsel %vm514, %v396, %v533
      %v553 = vsel %vm515, %v397, %v534
      %v554 = vsel %vm516, %v398, %v535
      %v555 = vsel %vm517, %v399, %v536
      %v556 = vsel %vm518, %v400, %v537
      %v557 = vsel %vm519, %v401, %v538
      %v558 = vsel %vm520, %v402, %v539
      %v559 = vsel %vm521, %v403, %v540
      %v560 = vsel %vm522, %v404, %v541
      %v561 = vsel %vm523, %v405, %v542
      %v562 = vsel %vm524, %v406, %v543
      %v563 = vsel %vm525, %v407, %v544
      %v564 = vsel %vm526, %v408, %v545
      %v565 = vsel %vm489, 1, 0
      %v566 = vsel %vm490, 1, 0
      %v567 = vsel %vm491, 1, 0
      %v568 = vsel %vm492, 1, 0
      %v569 = vsel %vm493, 1, 0
      %v570 = vsel %vm494, 1, 0
      %v571 = vsel %vm495, 1, 0
      %v572 = vsel %vm496, 1, 0
      %v573 = vsel %vm497, 1, 0
      %v574 = vsel %vm498, 1, 0
      %v575 = vsel %vm499, 1, 0
      %v576 = vsel %vm500, 1, 0
      %v577 = vsel %vm501, 1, 0
      %v578 = vsel %vm502, 1, 0
      %v579 = vsel %vm503, 1, 0
      %v580 = vsel %vm504, 1, 0
      %v581 = vsel %vm505, 1, 0
      %v582 = vsel %vm506, 1, 0
      %v583 = vsel %vm507, 1, 0
      %vm584 = vcmp.eq.s32.totalorder %v565, 1
      %vm585 = vcmp.eq.s32.totalorder %v566, 1
      %vm586 = vcmp.eq.s32.totalorder %v567, 1
      %vm587 = vcmp.eq.s32.totalorder %v568, 1
      %vm588 = vcmp.eq.s32.totalorder %v569, 1
      %vm589 = vcmp.eq.s32.totalorder %v570, 1
      %vm590 = vcmp.eq.s32.totalorder %v571, 1
      %vm591 = vcmp.eq.s32.totalorder %v572, 1
      %vm592 = vcmp.eq.s32.totalorder %v573, 1
      %vm593 = vcmp.eq.s32.totalorder %v574, 1
      %vm594 = vcmp.eq.s32.totalorder %v575, 1
      %vm595 = vcmp.eq.s32.totalorder %v576, 1
      %vm596 = vcmp.eq.s32.totalorder %v577, 1
      %vm597 = vcmp.eq.s32.totalorder %v578, 1
      %vm598 = vcmp.eq.s32.totalorder %v579, 1
      %vm599 = vcmp.eq.s32.totalorder %v580, 1
      %vm600 = vcmp.eq.s32.totalorder %v581, 1
      %vm601 = vcmp.eq.s32.totalorder %v582, 1
      %vm602 = vcmp.eq.s32.totalorder %v583, 1
      %v603 = vsel %vm584, %v546, 0.0
      %v604 = vsel %vm585, %v547, 0.0
      %v605 = vsel %vm586, %v548, 0.0
      %v606 = vsel %vm587, %v549, 0.0
      %v607 = vsel %vm588, %v550, 0.0
      %v608 = vsel %vm589, %v551, 0.0
      %v609 = vsel %vm590, %v552, 0.0
      %v610 = vsel %vm591, %v553, 0.0
      %v611 = vsel %vm592, %v554, 0.0
      %v612 = vsel %vm593, %v555, 0.0
      %v613 = vsel %vm594, %v556, 0.0
      %v614 = vsel %vm595, %v557, 0.0
      %v615 = vsel %vm596, %v558, 0.0
      %v616 = vsel %vm597, %v559, 0.0
      %v617 = vsel %vm598, %v560, 0.0
      %v618 = vsel %vm599, %v561, 0.0
      %v619 = vsel %vm600, %v562, 0.0
      %v620 = vsel %vm601, %v563, 0.0
      %v621 = vsel %vm602, %v564, 0.0
      %v622 = vrot.slane %v603, 7
      %v623 = vrot.slane %v604, 7
      %v624 = vrot.slane %v605, 7
      %v625 = vrot.slane %v606, 7
      %v626 = vrot.slane %v607, 7
      %v627 = vrot.slane %v608, 7
      %v628 = vrot.slane %v609, 7
      %v629 = vrot.slane %v610, 7
      %v630 = vrot.slane %v611, 7
      %v631 = vrot.slane %v612, 7
      %v632 = vrot.slane %v613, 7
      %v633 = vrot.slane %v614, 7
      %v634 = vrot.slane %v615, 7
      %v635 = vrot.slane %v616, 7
      %v636 = vrot.slane %v617, 7
      %v637 = vrot.slane %v618, 7
      %v638 = vrot.slane %v619, 7
      %v639 = vrot.slane %v620, 7
      %v640 = vrot.slane %v621, 7
      %vm641 = vcmp.lt.s32.totalorder %v412, 1
      %v642 = vsel %vm641, %v639, %v640
      %v643 = vsel %vm641, %v638, %v639
      %v644 = vsel %vm641, %v637, %v638
      %v645 = vsel %vm641, %v636, %v637
      %v646 = vsel %vm641, %v635, %v636
      %v647 = vsel %vm641, %v634, %v635
      %v648 = vsel %vm641, %v633, %v634
      %v649 = vsel %vm641, %v632, %v633
      %v650 = vsel %vm641, %v631, %v632
      %v651 = vsel %vm641, %v630, %v631
      %v652 = vsel %vm641, %v629, %v630
      %v653 = vsel %vm641, %v628, %v629
      %v654 = vsel %vm641, %v627, %v628
      %v655 = vsel %vm641, %v626, %v627
      %v656 = vsel %vm641, %v625, %v626
      %v657 = vsel %vm641, %v624, %v625
      %v658 = vsel %vm641, %v623, %v624
      %v659 = vsel %vm641, %v622, %v623
      %v660 = vsel %vm641, %v640, %v622
      %v661 = vrot.slane %v603, 1
      %v662 = vrot.slane %v604, 1
      %v663 = vrot.slane %v605, 1
      %v664 = vrot.slane %v606, 1
      %v665 = vrot.slane %v607, 1
      %v666 = vrot.slane %v608, 1
      %v667 = vrot.slane %v609, 1
      %v668 = vrot.slane %v610, 1
      %v669 = vrot.slane %v611, 1
      %v670 = vrot.slane %v612, 1
      %v671 = vrot.slane %v613, 1
      %v672 = vrot.slane %v614, 1
      %v673 = vrot.slane %v615, 1
      %v674 = vrot.slane %v616, 1
      %v675 = vrot.slane %v617, 1
      %v676 = vrot.slane %v618, 1
      %v677 = vrot.slane %v619, 1
      %v678 = vrot.slane %v620, 1
      %v679 = vrot.slane %v621, 1
      %vm680 = vcmp.lt.s32.totalorder %v412, 7
      %v681 = vsel %vm680, %v678, %v679
      %v682 = vsel %vm680, %v677, %v678
      %v683 = vsel %vm680, %v676, %v677
      %v684 = vsel %vm680, %v675, %v676
      %v685 = vsel %vm680, %v674, %v675
      %v686 = vsel %vm680, %v673, %v674
      %v687 = vsel %vm680, %v672, %v673
      %v688 = vsel %vm680, %v671, %v672
      %v689 = vsel %vm680, %v670, %v671
      %v690 = vsel %vm680, %v669, %v670
      %v691 = vsel %vm680, %v668, %v669
      %v692 = vsel %vm680, %v667, %v668
      %v693 = vsel %vm680, %v666, %v667
      %v694 = vsel %vm680, %v665, %v666
      %v695 = vsel %vm680, %v664, %v665
      %v696 = vsel %vm680, %v663, %v664
      %v697 = vsel %vm680, %v662, %v663
      %v698 = vsel %vm680, %v661, %v662
      %v699 = vsel %vm680, %v679, %v661
      %v700 = vpack.c.bf16 %v659, %v660
      %v701 = vpack.c.bf16 %v604, %v603
      %v702 = vpack.c.bf16 %v697, %v698
      %v703 = vpack.c.bf16 %v657, %v658
      %v704 = vpack.c.bf16 %v606, %v605
      %v705 = vpack.c.bf16 %v695, %v696
      %v706 = vpack.c.bf16 %v655, %v656
      %v707 = vpack.c.bf16 %v608, %v607
      %v708 = vpack.c.bf16 %v693, %v694
      %v709 = vpack.c.bf16 %v653, %v654
      %v710 = vpack.c.bf16 %v610, %v609
      %v711 = vpack.c.bf16 %v691, %v692
      %v712 = vpack.c.bf16 %v651, %v652
      %v713 = vpack.c.bf16 %v612, %v611
      %v714 = vpack.c.bf16 %v689, %v690
      %v715 = vpack.c.bf16 %v649, %v650
      %v716 = vpack.c.bf16 %v614, %v613
      %v717 = vpack.c.bf16 %v687, %v688
      %v718 = vpack.c.bf16 %v647, %v648
      %v719 = vpack.c.bf16 %v616, %v615
      %v720 = vpack.c.bf16 %v685, %v686
      %v721 = vpack.c.bf16 %v645, %v646
      %v722 = vpack.c.bf16 %v618, %v617
      %v723 = vpack.c.bf16 %v683, %v684
      %v724 = vpack.c.bf16 %v643, %v644
      %v725 = vpack.c.bf16 %v620, %v619
      %v726 = vpack.c.bf16 %v681, %v682
      %v727 = vpack.c.bf16 %v642, %v642
      %v728 = vpack.c.bf16 %v621, %v621
      %v729 = vpack.c.bf16 %v699, %v699
      %v730 = vld [vmem:[%s1] sm:$0xf]
      %v731 = vld [vmem:[%s1 + $0x4] sm:$0xf]
      %v732 = vld [vmem:[%s1 + $0x8] sm:$0xf]
      %v733 = vld [vmem:[%s1 + $0xc] sm:$0xf]
      %v734 = vld [vmem:[%s1 + $0x10] sm:$0xf]
      %v735 = vld [vmem:[%s1 + $0x14] sm:$0xf]
      %v736 = vld [vmem:[%s1 + $0x18] sm:$0xf]
      %v737 = vld [vmem:[%s1 + $0x1c] sm:$0xf]
      %v738 = vld [vmem:[%s1 + $0x20] sm:$0xf]
      %v739 = vld [vmem:[%s1 + $0x24] sm:$0xf]
      %v740 = vld [vmem:[%s1 + $0x28] sm:$0xf]
      %v741 = vld [vmem:[%s1 + $0x2c] sm:$0xf]
      %v742 = vld [vmem:[%s1 + $0x30] sm:$0xf]
      %v743 = vld [vmem:[%s1 + $0x34] sm:$0xf]
      %v744 = vld [vmem:[%s1 + $0x38] sm:$0xf]
      %v745 = vld [vmem:[%s1 + $0x3c] sm:$0xf]
      %v746 = vld [vmem:[%s1 + $0x40] sm:$0xf]
      %v747 = vld [vmem:[%s1 + $0x44] sm:$0xf]
      %v748 = vld [vmem:[%s1 + $0x48] sm:$0xf]
      %v749 = vld [vmem:[%s1 + $0x4c] sm:$0xf]
      %v750 = vld [vmem:[%s1 + $0x50] sm:$0xf]
      %v751 = vld [vmem:[%s1 + $0x54] sm:$0xf]
      %v752 = vld [vmem:[%s1 + $0x58] sm:$0xf]
      %v753 = vld [vmem:[%s1 + $0x5c] sm:$0xf]
      %v754 = vld [vmem:[%s1 + $0x60] sm:$0xf]
      %v755 = vld [vmem:[%s1 + $0x64] sm:$0xf]
      %v756 = vld [vmem:[%s1 + $0x68] sm:$0xf]
      %v757 = vld [vmem:[%s1 + $0x6c] sm:$0xf]
      %v758 = vld [vmem:[%s1 + $0x70] sm:$0xf]
      %v759 = vld [vmem:[%s1 + $0x74] sm:$0xf]
      %v760 = vld [vmem:[%s1 + $0x78] sm:$0xf]
      %v761 = vld [vmem:[%s1 + $0x7c] sm:$0xf]
      %v762 = vld [vmem:[%s1 + $0x80] sm:$0xf]
      %v763 = vld [vmem:[%s1 + $0x84] sm:$0xf]
      %v764 = vld [vmem:[%s1 + $0x88] sm:$0xf]
      %v765 = vld [vmem:[%s1 + $0x8c] sm:$0xf]
      %v766 = vld [vmem:[%s1 + $0x90] sm:$0xf]
      %v767 = vld [vmem:[%s1 + $0x94] sm:$0xf]
      %v768 = vld [vmem:[%s1 + $0x98] sm:$0xf]
      %v769 = vld [vmem:[%s1 + $0x9c] sm:$0xf]
      %v770 = vld [vmem:[%s1 + $0xa0] sm:$0xf]
      %v771 = vld [vmem:[%s1 + $0xa4] sm:$0xf]
      %v772 = vld [vmem:[%s1 + $0xa8] sm:$0xf]
      %v773 = vld [vmem:[%s1 + $0xac] sm:$0xf]
      %v774 = vld [vmem:[%s1 + $0xb0] sm:$0xf]
      %v775 = vld [vmem:[%s1 + $0xb4] sm:$0xf]
      %v776 = vld [vmem:[%s1 + $0xb8] sm:$0xf]
      %v777 = vld [vmem:[%s1 + $0xbc] sm:$0xf]
      %v778 = vld [vmem:[%s2] sm:$0x1]
      %v780 = vlaneseq
      %v781 = vshrl.u32 %v780, 7
      %v782 = vsub.s32 0, %v781
      %v783 = vrot.slane %v778, %v782
      %v833 = vunpack.c.l.b16 %v730
      %v834 = vunpack.c.l.b16 %v731
      %v835 = vunpack.c.l.b16 %v732
      %v836 = vunpack.c.l.b16 %v733
      %v837 = vunpack.c.l.b16 %v734
      %v838 = vunpack.c.l.b16 %v735
      %v839 = vunpack.c.l.b16 %v736
      %v840 = vunpack.c.l.b16 %v737
      %v841 = vunpack.c.l.b16 %v738
      %v842 = vunpack.c.l.b16 %v739
      %v843 = vunpack.c.l.b16 %v740
      %v844 = vunpack.c.l.b16 %v741
      %v845 = vunpack.c.l.b16 %v742
      %v846 = vunpack.c.l.b16 %v743
      %v847 = vunpack.c.l.b16 %v744
      %v848 = vunpack.c.l.b16 %v745
      %v849 = vunpack.c.l.b16 %v746
      %v850 = vunpack.c.l.b16 %v747
      %v851 = vunpack.c.l.b16 %v748
      %v852 = vunpack.c.l.b16 %v749
      %v853 = vunpack.c.l.b16 %v750
      %v854 = vunpack.c.l.b16 %v751
      %v855 = vunpack.c.l.b16 %v752
      %v856 = vunpack.c.l.b16 %v753
      %v857 = vunpack.c.l.b16 %v754
      %v858 = vunpack.c.l.b16 %v755
      %v859 = vunpack.c.l.b16 %v756
      %v860 = vunpack.c.l.b16 %v757
      %v861 = vunpack.c.l.b16 %v758
      %v862 = vunpack.c.l.b16 %v759
      %v863 = vunpack.c.l.b16 %v760
      %v864 = vunpack.c.l.b16 %v761
      %v865 = vunpack.c.l.b16 %v762
      %v866 = vunpack.c.l.b16 %v763
      %v867 = vunpack.c.l.b16 %v764
      %v868 = vunpack.c.l.b16 %v765
      %v869 = vunpack.c.l.b16 %v766
      %v870 = vunpack.c.l.b16 %v767
      %v871 = vunpack.c.l.b16 %v768
      %v872 = vunpack.c.l.b16 %v769
      %v873 = vunpack.c.l.b16 %v770
      %v874 = vunpack.c.l.b16 %v771
      %v875 = vunpack.c.l.b16 %v772
      %v876 = vunpack.c.l.b16 %v773
      %v877 = vunpack.c.l.b16 %v774
      %v878 = vunpack.c.l.b16 %v775
      %v879 = vunpack.c.l.b16 %v776
      %v880 = vunpack.c.l.b16 %v777
      %v881 = vpack.c.b16 %v834, %v833
      %v882 = vpack.c.b16 %v836, %v835
      %v883 = vpack.c.b16 %v838, %v837
      %v884 = vpack.c.b16 %v840, %v839
      %v885 = vpack.c.b16 %v842, %v841
      %v886 = vpack.c.b16 %v844, %v843
      %v887 = vpack.c.b16 %v846, %v845
      %v888 = vpack.c.b16 %v848, %v847
      %v889 = vpack.c.b16 %v850, %v849
      %v890 = vpack.c.b16 %v852, %v851
      %v891 = vpack.c.b16 %v854, %v853
      %v892 = vpack.c.b16 %v856, %v855
      %v893 = vpack.c.b16 %v858, %v857
      %v894 = vpack.c.b16 %v860, %v859
      %v895 = vpack.c.b16 %v862, %v861
      %v896 = vpack.c.b16 %v864, %v863
      %v897 = vpack.c.b16 %v866, %v865
      %v898 = vpack.c.b16 %v868, %v867
      %v899 = vpack.c.b16 %v870, %v869
      %v900 = vpack.c.b16 %v872, %v871
      %v901 = vpack.c.b16 %v874, %v873
      %v902 = vpack.c.b16 %v876, %v875
      %v903 = vpack.c.b16 %v878, %v877
      %v904 = vpack.c.b16 %v880, %v879
      %929 = vmatprep.subr.bf16.mxu0 0
      %930 = vmatpush1.bf16.msra.mxu0 %v881
      %931 = vmatprep.subr.bf16.mxu0 0
      %932 = vmatpush1.bf16.msra.mxu0 %v882
      %933 = vmatprep.subr.bf16.mxu0 0
      %934 = vmatpush1.bf16.msra.mxu0 %v883
      %935 = vmatprep.subr.bf16.mxu0 0
      %936 = vmatpush1.bf16.msra.mxu0 %v884
      %937 = vmatprep.subr.bf16.mxu0 0
      %938 = vmatpush1.bf16.msra.mxu0 %v885
      %939 = vmatprep.subr.bf16.mxu0 0
      %940 = vmatpush1.bf16.msra.mxu0 %v886
      %941 = vmatprep.subr.bf16.mxu0 0
      %942 = vmatpush1.bf16.msra.mxu0 %v887
      %943 = vmatprep.subr.bf16.mxu0 0
      %944 = vmatpush1.bf16.msra.mxu0 %v888
      %945 = vmatprep.subr.bf16.mxu0 0
      %946 = vmatpush1.bf16.msra.mxu0 %v889
      %947 = vmatprep.subr.bf16.mxu0 0
      %948 = vmatpush1.bf16.msra.mxu0 %v890
      %949 = vmatprep.subr.bf16.mxu0 0
      %950 = vmatpush1.bf16.msra.mxu0 %v891
      %951 = vmatprep.subr.bf16.mxu0 0
      %952 = vmatpush1.bf16.msra.mxu0 %v892
      %953 = vmatprep.subr.bf16.mxu0 0
      %954 = vmatpush1.bf16.msra.mxu0 %v893
      %955 = vmatprep.subr.bf16.mxu0 0
      %956 = vmatpush1.bf16.msra.mxu0 %v894
      %957 = vmatprep.subr.bf16.mxu0 0
      %958 = vmatpush1.bf16.msra.mxu0 %v895
      %959 = vmatprep.subr.bf16.mxu0 0
      %960 = vmatpush1.bf16.msra.mxu0 %v896
      %961 = vmatprep.mubr.bf16.mxu0 %v701
      %962 = vmatmul.mubr.bf16.gmra.mrb[0].mxu0 %v700
      %v963 = vpop.f32.mrb[0].mxu0
      %v964 = vadd.f32 %v783, %v963
      %v965 = vpop.f32.mrb[0].mxu0
      %v966 = vpop.f32.mrb[0].mxu0
      %v967 = vadd.f32 %v783, %v966
      %v968 = vpop.f32.mrb[0].mxu0
      %969 = vmatprep.mubr.bf16.mxu0 %v704
      %970 = vmatmul.mubr.bf16.gmra.mrb[0].mxu0 %v703
      %v971 = vpop.f32.mrb[0].mxu0
      %v972 = vadd.f32 %v783, %v971
      %v973 = vpop.f32.mrb[0].mxu0
      %v974 = vpop.f32.mrb[0].mxu0
      %v975 = vadd.f32 %v783, %v974
      %v976 = vpop.f32.mrb[0].mxu0
      %977 = vmatprep.mubr.bf16.mxu0 %v707
      %978 = vmatmul.mubr.bf16.gmra.mrb[0].mxu0 %v706
      %v979 = vpop.f32.mrb[0].mxu0
      %v980 = vadd.f32 %v783, %v979
      %v981 = vpop.f32.mrb[0].mxu0
      %v982 = vpop.f32.mrb[0].mxu0
      %v983 = vadd.f32 %v783, %v982
      %v984 = vpop.f32.mrb[0].mxu0
      %985 = vmatprep.mubr.bf16.mxu0 %v710
      %986 = vmatmul.mubr.bf16.gmra.mrb[0].mxu0 %v709
      %v987 = vpop.f32.mrb[0].mxu0
      %v988 = vadd.f32 %v783, %v987
      %v989 = vpop.f32.mrb[0].mxu0
      %v990 = vpop.f32.mrb[0].mxu0
      %v991 = vadd.f32 %v783, %v990
      %v992 = vpop.f32.mrb[0].mxu0
      %993 = vmatprep.mubr.bf16.mxu0 %v713
      %994 = vmatmul.mubr.bf16.gmra.mrb[0].mxu0 %v712
      %v995 = vpop.f32.mrb[0].mxu0
      %v996 = vadd.f32 %v783, %v995
      %v997 = vpop.f32.mrb[0].mxu0
      %v998 = vpop.f32.mrb[0].mxu0
      %v999 = vadd.f32 %v783, %v998
      %v1000 = vpop.f32.mrb[0].mxu0
      %1001 = vmatprep.mubr.bf16.mxu0 %v716
      %1002 = vmatmul.mubr.bf16.gmra.mrb[0].mxu0 %v715
      %v1003 = vpop.f32.mrb[0].mxu0
      %v1004 = vadd.f32 %v783, %v1003
      %v1005 = vpop.f32.mrb[0].mxu0
      %v1006 = vpop.f32.mrb[0].mxu0
      %v1007 = vadd.f32 %v783, %v1006
      %v1008 = vpop.f32.mrb[0].mxu0
      %1009 = vmatprep.mubr.bf16.mxu0 %v719
      %1010 = vmatmul.mubr.bf16.gmra.mrb[0].mxu0 %v718
      %v1011 = vpop.f32.mrb[0].mxu0
      %v1012 = vadd.f32 %v783, %v1011
      %v1013 = vpop.f32.mrb[0].mxu0
      %v1014 = vpop.f32.mrb[0].mxu0
      %v1015 = vadd.f32 %v783, %v1014
      %v1016 = vpop.f32.mrb[0].mxu0
      %1017 = vmatprep.mubr.bf16.mxu0 %v722
      %1018 = vmatmul.mubr.bf16.gmra.mrb[0].mxu0 %v721
      %v1019 = vpop.f32.mrb[0].mxu0
      %v1020 = vadd.f32 %v783, %v1019
      %v1021 = vpop.f32.mrb[0].mxu0
      %v1022 = vpop.f32.mrb[0].mxu0
      %v1023 = vadd.f32 %v783, %v1022
      %v1024 = vpop.f32.mrb[0].mxu0
      %1025 = vmatprep.mubr.bf16.mxu0 %v725
      %1026 = vmatmul.mubr.bf16.gmra.mrb[0].mxu0 %v724
      %v1027 = vpop.f32.mrb[0].mxu0
      %v1028 = vadd.f32 %v783, %v1027
      %v1029 = vpop.f32.mrb[0].mxu0
      %v1030 = vpop.f32.mrb[0].mxu0
      %v1031 = vadd.f32 %v783, %v1030
      %v1032 = vpop.f32.mrb[0].mxu0
      %1033 = vmatprep.mubr.bf16.mxu0 %v728
      %1034 = vmatmul.mubr.bf16.gmra.mrb[0].mxu0 %v727
      %v1035 = vpop.f32.mrb[0].mxu0
      %v1036 = vadd.f32 %v783, %v1035
      %v1037 = vpop.f32.mrb[0].mxu0
      %v1038 = vpop.f32.mrb[0].mxu0
      %v1039 = vpop.f32.mrb[0].mxu0
      %1040 = vdwg.mxu0
      %1041 = vmatprep.subr.bf16.mxu0 0
      %1042 = vmatpush1.bf16.msra.mxu0 %v897
      %1043 = vmatprep.subr.bf16.mxu0 0
      %1044 = vmatpush1.bf16.msra.mxu0 %v898
      %1045 = vmatprep.subr.bf16.mxu0 0
      %1046 = vmatpush1.bf16.msra.mxu0 %v899
      %1047 = vmatprep.subr.bf16.mxu0 0
      %1048 = vmatpush1.bf16.msra.mxu0 %v900
      %1049 = vmatprep.subr.bf16.mxu0 0
      %1050 = vmatpush1.bf16.msra.mxu0 %v901
      %1051 = vmatprep.subr.bf16.mxu0 0
      %1052 = vmatpush1.bf16.msra.mxu0 %v902
      %1053 = vmatprep.subr.bf16.mxu0 0
      %1054 = vmatpush1.bf16.msra.mxu0 %v903
      %1055 = vmatprep.subr.bf16.mxu0 0
      %1056 = vmatpush1.bf16.msra.mxu0 %v904
      %1057 = vmatprep.subr.bf16.mxu0 0
      %1058 = vmatpush1.bf16.msra.mxu0 0
      %1059 = vmatprep.subr.bf16.mxu0 0
      %1060 = vmatpush1.bf16.msra.mxu0 0
      %1061 = vmatprep.subr.bf16.mxu0 0
      %1062 = vmatpush1.bf16.msra.mxu0 0
      %1063 = vmatprep.subr.bf16.mxu0 0
      %1064 = vmatpush1.bf16.msra.mxu0 0
      %1065 = vmatprep.subr.bf16.mxu0 0
      %1066 = vmatpush1.bf16.msra.mxu0 0
      %1067 = vmatprep.subr.bf16.mxu0 0
      %1068 = vmatpush1.bf16.msra.mxu0 0
      %1069 = vmatprep.subr.bf16.mxu0 0
      %1070 = vmatpush1.bf16.msra.mxu0 0
      %1071 = vmatprep.subr.bf16.mxu0 0
      %1072 = vmatpush1.bf16.msra.mxu0 0
      %1073 = vmatprep.mubr.bf16.mxu0 0
      %1074 = vmatmul.mubr.bf16.gmra.mrb[0].mxu0 %v702
      %v1075 = vpop.f32.mrb[0].mxu0
      %v1076 = vadd.f32 %v964, %v1075
      %v1077 = vpop.f32.mrb[0].mxu0
      %v1078 = vpop.f32.mrb[0].mxu0
      %v1079 = vadd.f32 %v967, %v1078
      %v1080 = vpop.f32.mrb[0].mxu0
      %1081 = vmatprep.mubr.bf16.mxu0 0
      %1082 = vmatmul.mubr.bf16.gmra.mrb[0].mxu0 %v705
      %v1083 = vpop.f32.mrb[0].mxu0
      %v1084 = vadd.f32 %v972, %v1083
      %v1085 = vpop.f32.mrb[0].mxu0
      %v1086 = vpop.f32.mrb[0].mxu0
      %v1087 = vadd.f32 %v975, %v1086
      %v1088 = vpop.f32.mrb[0].mxu0
      %1089 = vmatprep.mubr.bf16.mxu0 0
      %1090 = vmatmul.mubr.bf16.gmra.mrb[0].mxu0 %v708
      %v1091 = vpop.f32.mrb[0].mxu0
      %v1092 = vadd.f32 %v980, %v1091
      %v1093 = vpop.f32.mrb[0].mxu0
      %v1094 = vpop.f32.mrb[0].mxu0
      %v1095 = vadd.f32 %v983, %v1094
      %v1096 = vpop.f32.mrb[0].mxu0
      %1097 = vmatprep.mubr.bf16.mxu0 0
      %1098 = vmatmul.mubr.bf16.gmra.mrb[0].mxu0 %v711
      %v1099 = vpop.f32.mrb[0].mxu0
      %v1100 = vadd.f32 %v988, %v1099
      %v1101 = vpop.f32.mrb[0].mxu0
      %v1102 = vpop.f32.mrb[0].mxu0
      %v1103 = vadd.f32 %v991, %v1102
      %v1104 = vpop.f32.mrb[0].mxu0
      %1105 = vmatprep.mubr.bf16.mxu0 0
      %1106 = vmatmul.mubr.bf16.gmra.mrb[0].mxu0 %v714
      %v1107 = vpop.f32.mrb[0].mxu0
      %v1108 = vadd.f32 %v996, %v1107
      %v1109 = vpop.f32.mrb[0].mxu0
      %v1110 = vpop.f32.mrb[0].mxu0
      %v1111 = vadd.f32 %v999, %v1110
      %v1112 = vpop.f32.mrb[0].mxu0
      %1113 = vmatprep.mubr.bf16.mxu0 0
      %1114 = vmatmul.mubr.bf16.gmra.mrb[0].mxu0 %v717
      %v1115 = vpop.f32.mrb[0].mxu0
      %v1116 = vadd.f32 %v1004, %v1115
      %v1117 = vpop.f32.mrb[0].mxu0
      %v1118 = vpop.f32.mrb[0].mxu0
      %v1119 = vadd.f32 %v1007, %v1118
      %v1120 = vpop.f32.mrb[0].mxu0
      %1121 = vmatprep.mubr.bf16.mxu0 0
      %1122 = vmatmul.mubr.bf16.gmra.mrb[0].mxu0 %v720
      %v1123 = vpop.f32.mrb[0].mxu0
      %v1124 = vadd.f32 %v1012, %v1123
      %v1125 = vpop.f32.mrb[0].mxu0
      %v1126 = vpop.f32.mrb[0].mxu0
      %v1127 = vadd.f32 %v1015, %v1126
      %v1128 = vpop.f32.mrb[0].mxu0
      %1129 = vmatprep.mubr.bf16.mxu0 0
      %1130 = vmatmul.mubr.bf16.gmra.mrb[0].mxu0 %v723
      %v1131 = vpop.f32.mrb[0].mxu0
      %v1132 = vadd.f32 %v1020, %v1131
      %v1133 = vpop.f32.mrb[0].mxu0
      %v1134 = vpop.f32.mrb[0].mxu0
      %v1135 = vadd.f32 %v1023, %v1134
      %v1136 = vpop.f32.mrb[0].mxu0
      %1137 = vmatprep.mubr.bf16.mxu0 0
      %1138 = vmatmul.mubr.bf16.gmra.mrb[0].mxu0 %v726
      %v1139 = vpop.f32.mrb[0].mxu0
      %v1140 = vadd.f32 %v1028, %v1139
      %v1141 = vpop.f32.mrb[0].mxu0
      %v1142 = vpop.f32.mrb[0].mxu0
      %v1143 = vadd.f32 %v1031, %v1142
      %v1144 = vpop.f32.mrb[0].mxu0
      %1145 = vmatprep.mubr.bf16.mxu0 0
      %1146 = vmatmul.mubr.bf16.gmra.mrb[0].mxu0 %v729
      %v1147 = vpop.f32.mrb[0].mxu0
      %v1148 = vadd.f32 %v1036, %v1147
      %v1149 = vpop.f32.mrb[0].mxu0
      %v1150 = vpop.f32.mrb[0].mxu0
      %v1151 = vpop.f32.mrb[0].mxu0
      %1152 = vdwg.mxu0
      %vm1153 = vcmp.ge.f32.partialorder %v1076, 0.0
      %vm1154 = vcmp.ge.f32.partialorder %v1079, 0.0
      %vm1155 = vcmp.ge.f32.partialorder %v1084, 0.0
      %vm1156 = vcmp.ge.f32.partialorder %v1087, 0.0
      %vm1157 = vcmp.ge.f32.partialorder %v1092, 0.0
      %vm1158 = vcmp.ge.f32.partialorder %v1095, 0.0
      %vm1159 = vcmp.ge.f32.partialorder %v1100, 0.0
      %vm1160 = vcmp.ge.f32.partialorder %v1103, 0.0
      %vm1161 = vcmp.ge.f32.partialorder %v1108, 0.0
      %vm1162 = vcmp.ge.f32.partialorder %v1111, 0.0
      %vm1163 = vcmp.ge.f32.partialorder %v1116, 0.0
      %vm1164 = vcmp.ge.f32.partialorder %v1119, 0.0
      %vm1165 = vcmp.ge.f32.partialorder %v1124, 0.0
      %vm1166 = vcmp.ge.f32.partialorder %v1127, 0.0
      %vm1167 = vcmp.ge.f32.partialorder %v1132, 0.0
      %vm1168 = vcmp.ge.f32.partialorder %v1135, 0.0
      %vm1169 = vcmp.ge.f32.partialorder %v1140, 0.0
      %vm1170 = vcmp.ge.f32.partialorder %v1143, 0.0
      %vm1171 = vcmp.ge.f32.partialorder %v1148, 0.0
      %v1172 = vmul.f32 %v1076, 0.1
      %v1173 = vmul.f32 %v1079, 0.1
      %v1174 = vmul.f32 %v1084, 0.1
      %v1175 = vmul.f32 %v1087, 0.1
      %v1176 = vmul.f32 %v1092, 0.1
      %v1177 = vmul.f32 %v1095, 0.1
      %v1178 = vmul.f32 %v1100, 0.1
      %v1179 = vmul.f32 %v1103, 0.1
      %v1180 = vmul.f32 %v1108, 0.1
      %v1181 = vmul.f32 %v1111, 0.1
      %v1182 = vmul.f32 %v1116, 0.1
      %v1183 = vmul.f32 %v1119, 0.1
      %v1184 = vmul.f32 %v1124, 0.1
      %v1185 = vmul.f32 %v1127, 0.1
      %v1186 = vmul.f32 %v1132, 0.1
      %v1187 = vmul.f32 %v1135, 0.1
      %v1188 = vmul.f32 %v1140, 0.1
      %v1189 = vmul.f32 %v1143, 0.1
      %v1190 = vmul.f32 %v1148, 0.1
      %v1191 = vsel %vm1153, %v1076, %v1172
      %v1192 = vsel %vm1154, %v1079, %v1173
      %v1193 = vsel %vm1155, %v1084, %v1174
      %v1194 = vsel %vm1156, %v1087, %v1175
      %v1195 = vsel %vm1157, %v1092, %v1176
      %v1196 = vsel %vm1158, %v1095, %v1177
      %v1197 = vsel %vm1159, %v1100, %v1178
      %v1198 = vsel %vm1160, %v1103, %v1179
      %v1199 = vsel %vm1161, %v1108, %v1180
      %v1200 = vsel %vm1162, %v1111, %v1181
      %v1201 = vsel %vm1163, %v1116, %v1182
      %v1202 = vsel %vm1164, %v1119, %v1183
      %v1203 = vsel %vm1165, %v1124, %v1184
      %v1204 = vsel %vm1166, %v1127, %v1185
      %v1205 = vsel %vm1167, %v1132, %v1186
      %v1206 = vsel %vm1168, %v1135, %v1187
      %v1207 = vsel %vm1169, %v1140, %v1188
      %v1208 = vsel %vm1170, %v1143, %v1189
      %v1209 = vsel %vm1171, %v1148, %v1190
      %v1210 = vsel %vm584, %v1191, 0.0
      %v1211 = vsel %vm585, %v1192, 0.0
      %v1212 = vsel %vm586, %v1193, 0.0
      %v1213 = vsel %vm587, %v1194, 0.0
      %v1214 = vsel %vm588, %v1195, 0.0
      %v1215 = vsel %vm589, %v1196, 0.0
      %v1216 = vsel %vm590, %v1197, 0.0
      %v1217 = vsel %vm591, %v1198, 0.0
      %v1218 = vsel %vm592, %v1199, 0.0
      %v1219 = vsel %vm593, %v1200, 0.0
      %v1220 = vsel %vm594, %v1201, 0.0
      %v1221 = vsel %vm595, %v1202, 0.0
      %v1222 = vsel %vm596, %v1203, 0.0
      %v1223 = vsel %vm597, %v1204, 0.0
      %v1224 = vsel %vm598, %v1205, 0.0
      %v1225 = vsel %vm599, %v1206, 0.0
      %v1226 = vsel %vm600, %v1207, 0.0
      %v1227 = vsel %vm601, %v1208, 0.0
      %v1228 = vsel %vm602, %v1209, 0.0
      %v1229 = vrot.slane %v1210, 7
      %v1230 = vrot.slane %v1211, 7
      %v1231 = vrot.slane %v1212, 7
      %v1232 = vrot.slane %v1213, 7
      %v1233 = vrot.slane %v1214, 7
      %v1234 = vrot.slane %v1215, 7
      %v1235 = vrot.slane %v1216, 7
      %v1236 = vrot.slane %v1217, 7
      %v1237 = vrot.slane %v1218, 7
      %v1238 = vrot.slane %v1219, 7
      %v1239 = vrot.slane %v1220, 7
      %v1240 = vrot.slane %v1221, 7
      %v1241 = vrot.slane %v1222, 7
      %v1242 = vrot.slane %v1223, 7
      %v1243 = vrot.slane %v1224, 7
      %v1244 = vrot.slane %v1225, 7
      %v1245 = vrot.slane %v1226, 7
      %v1246 = vrot.slane %v1227, 7
      %v1247 = vrot.slane %v1228, 7
      %v1248 = vsel %vm641, %v1246, %v1247
      %v1249 = vsel %vm641, %v1245, %v1246
      %v1250 = vsel %vm641, %v1244, %v1245
      %v1251 = vsel %vm641, %v1243, %v1244
      %v1252 = vsel %vm641, %v1242, %v1243
      %v1253 = vsel %vm641, %v1241, %v1242
      %v1254 = vsel %vm641, %v1240, %v1241
      %v1255 = vsel %vm641, %v1239, %v1240
      %v1256 = vsel %vm641, %v1238, %v1239
      %v1257 = vsel %vm641, %v1237, %v1238
      %v1258 = vsel %vm641, %v1236, %v1237
      %v1259 = vsel %vm641, %v1235, %v1236
      %v1260 = vsel %vm641, %v1234, %v1235
      %v1261 = vsel %vm641, %v1233, %v1234
      %v1262 = vsel %vm641, %v1232, %v1233
      %v1263 = vsel %vm641, %v1231, %v1232
      %v1264 = vsel %vm641, %v1230, %v1231
      %v1265 = vsel %vm641, %v1229, %v1230
      %v1266 = vsel %vm641, %v1247, %v1229
      %v1267 = vrot.slane %v1210, 1
      %v1268 = vrot.slane %v1211, 1
      %v1269 = vrot.slane %v1212, 1
      %v1270 = vrot.slane %v1213, 1
      %v1271 = vrot.slane %v1214, 1
      %v1272 = vrot.slane %v1215, 1
      %v1273 = vrot.slane %v1216, 1
      %v1274 = vrot.slane %v1217, 1
      %v1275 = vrot.slane %v1218, 1
      %v1276 = vrot.slane %v1219, 1
      %v1277 = vrot.slane %v1220, 1
      %v1278 = vrot.slane %v1221, 1
      %v1279 = vrot.slane %v1222, 1
      %v1280 = vrot.slane %v1223, 1
      %v1281 = vrot.slane %v1224, 1
      %v1282 = vrot.slane %v1225, 1
      %v1283 = vrot.slane %v1226, 1
      %v1284 = vrot.slane %v1227, 1
      %v1285 = vrot.slane %v1228, 1
      %v1286 = vsel %vm680, %v1284, %v1285
      %v1287 = vsel %vm680, %v1283, %v1284
      %v1288 = vsel %vm680, %v1282, %v1283
      %v1289 = vsel %vm680, %v1281, %v1282
      %v1290 = vsel %vm680, %v1280, %v1281
      %v1291 = vsel %vm680, %v1279, %v1280
      %v1292 = vsel %vm680, %v1278, %v1279
      %v1293 = vsel %vm680, %v1277, %v1278
      %v1294 = vsel %vm680, %v1276, %v1277
      %v1295 = vsel %vm680, %v1275, %v1276
      %v1296 = vsel %vm680, %v1274, %v1275
      %v1297 = vsel %vm680, %v1273, %v1274
      %v1298 = vsel %vm680, %v1272, %v1273
      %v1299 = vsel %vm680, %v1271, %v1272
      %v1300 = vsel %vm680, %v1270, %v1271
      %v1301 = vsel %vm680, %v1269, %v1270
      %v1302 = vsel %vm680, %v1268, %v1269
      %v1303 = vsel %vm680, %v1267, %v1268
      %v1304 = vsel %vm680, %v1285, %v1267
      %v1305 = vpack.c.bf16 %v1265, %v1266
      %v1306 = vpack.c.bf16 %v1211, %v1210
      %v1307 = vpack.c.bf16 %v1302, %v1303
      %v1308 = vpack.c.bf16 %v1263, %v1264
      %v1309 = vpack.c.bf16 %v1213, %v1212
      %v1310 = vpack.c.bf16 %v1300, %v1301
      %v1311 = vpack.c.bf16 %v1261, %v1262
      %v1312 = vpack.c.bf16 %v1215, %v1214
      %v1313 = vpack.c.bf16 %v1298, %v1299
      %v1314 = vpack.c.bf16 %v1259, %v1260
      %v1315 = vpack.c.bf16 %v1217, %v1216
      %v1316 = vpack.c.bf16 %v1296, %v1297
      %v1317 = vpack.c.bf16 %v1257, %v1258
      %v1318 = vpack.c.bf16 %v1219, %v1218
      %v1319 = vpack.c.bf16 %v1294, %v1295
      %v1320 = vpack.c.bf16 %v1255, %v1256
      %v1321 = vpack.c.bf16 %v1221, %v1220
      %v1322 = vpack.c.bf16 %v1292, %v1293
      %v1323 = vpack.c.bf16 %v1253, %v1254
      %v1324 = vpack.c.bf16 %v1223, %v1222
      %v1325 = vpack.c.bf16 %v1290, %v1291
      %v1326 = vpack.c.bf16 %v1251, %v1252
      %v1327 = vpack.c.bf16 %v1225, %v1224
      %v1328 = vpack.c.bf16 %v1288, %v1289
      %v1329 = vpack.c.bf16 %v1249, %v1250
      %v1330 = vpack.c.bf16 %v1227, %v1226
      %v1331 = vpack.c.bf16 %v1286, %v1287
      %v1332 = vpack.c.bf16 %v1248, %v1248
      %v1333 = vpack.c.bf16 %v1228, %v1228
      %v1334 = vpack.c.bf16 %v1304, %v1304
      %v1335 = vld [vmem:[%s3] sm:$0xf]
      %v1336 = vld [vmem:[%s3 + $0x4] sm:$0xf]
      %v1337 = vld [vmem:[%s3 + $0x8] sm:$0xf]
      %v1338 = vld [vmem:[%s3 + $0xc] sm:$0xf]
      %v1339 = vld [vmem:[%s3 + $0x10] sm:$0xf]
      %v1340 = vld [vmem:[%s3 + $0x14] sm:$0xf]
      %v1341 = vld [vmem:[%s3 + $0x18] sm:$0xf]
      %v1342 = vld [vmem:[%s3 + $0x1c] sm:$0xf]
      %v1343 = vld [vmem:[%s3 + $0x20] sm:$0xf]
      %v1344 = vld [vmem:[%s3 + $0x24] sm:$0xf]
      %v1345 = vld [vmem:[%s3 + $0x28] sm:$0xf]
      %v1346 = vld [vmem:[%s3 + $0x2c] sm:$0xf]
      %v1347 = vld [vmem:[%s3 + $0x30] sm:$0xf]
      %v1348 = vld [vmem:[%s3 + $0x34] sm:$0xf]
      %v1349 = vld [vmem:[%s3 + $0x38] sm:$0xf]
      %v1350 = vld [vmem:[%s3 + $0x3c] sm:$0xf]
      %v1351 = vld [vmem:[%s3 + $0x40] sm:$0xf]
      %v1352 = vld [vmem:[%s3 + $0x44] sm:$0xf]
      %v1353 = vld [vmem:[%s3 + $0x48] sm:$0xf]
      %v1354 = vld [vmem:[%s3 + $0x4c] sm:$0xf]
      %v1355 = vld [vmem:[%s3 + $0x50] sm:$0xf]
      %v1356 = vld [vmem:[%s3 + $0x54] sm:$0xf]
      %v1357 = vld [vmem:[%s3 + $0x58] sm:$0xf]
      %v1358 = vld [vmem:[%s3 + $0x5c] sm:$0xf]
      %v1359 = vld [vmem:[%s3 + $0x60] sm:$0xf]
      %v1360 = vld [vmem:[%s3 + $0x64] sm:$0xf]
      %v1361 = vld [vmem:[%s3 + $0x68] sm:$0xf]
      %v1362 = vld [vmem:[%s3 + $0x6c] sm:$0xf]
      %v1363 = vld [vmem:[%s3 + $0x70] sm:$0xf]
      %v1364 = vld [vmem:[%s3 + $0x74] sm:$0xf]
      %v1365 = vld [vmem:[%s3 + $0x78] sm:$0xf]
      %v1366 = vld [vmem:[%s3 + $0x7c] sm:$0xf]
      %v1367 = vld [vmem:[%s3 + $0x80] sm:$0xf]
      %v1368 = vld [vmem:[%s3 + $0x84] sm:$0xf]
      %v1369 = vld [vmem:[%s3 + $0x88] sm:$0xf]
      %v1370 = vld [vmem:[%s3 + $0x8c] sm:$0xf]
      %v1371 = vld [vmem:[%s3 + $0x90] sm:$0xf]
      %v1372 = vld [vmem:[%s3 + $0x94] sm:$0xf]
      %v1373 = vld [vmem:[%s3 + $0x98] sm:$0xf]
      %v1374 = vld [vmem:[%s3 + $0x9c] sm:$0xf]
      %v1375 = vld [vmem:[%s3 + $0xa0] sm:$0xf]
      %v1376 = vld [vmem:[%s3 + $0xa4] sm:$0xf]
      %v1377 = vld [vmem:[%s3 + $0xa8] sm:$0xf]
      %v1378 = vld [vmem:[%s3 + $0xac] sm:$0xf]
      %v1379 = vld [vmem:[%s3 + $0xb0] sm:$0xf]
      %v1380 = vld [vmem:[%s3 + $0xb4] sm:$0xf]
      %v1381 = vld [vmem:[%s3 + $0xb8] sm:$0xf]
      %v1382 = vld [vmem:[%s3 + $0xbc] sm:$0xf]
      %v1383 = vld [vmem:[%s4] sm:$0x1]
      %v1385 = vlaneseq
      %v1386 = vshrl.u32 %v1385, 7
      %v1387 = vsub.s32 0, %v1386
      %v1388 = vrot.slane %v1383, %v1387
      %v1438 = vunpack.c.l.b16 %v1335
      %v1439 = vunpack.c.l.b16 %v1336
      %v1440 = vunpack.c.l.b16 %v1337
      %v1441 = vunpack.c.l.b16 %v1338
      %v1442 = vunpack.c.l.b16 %v1339
      %v1443 = vunpack.c.l.b16 %v1340
      %v1444 = vunpack.c.l.b16 %v1341
      %v1445 = vunpack.c.l.b16 %v1342
      %v1446 = vunpack.c.l.b16 %v1343
      %v1447 = vunpack.c.l.b16 %v1344
      %v1448 = vunpack.c.l.b16 %v1345
      %v1449 = vunpack.c.l.b16 %v1346
      %v1450 = vunpack.c.l.b16 %v1347
      %v1451 = vunpack.c.l.b16 %v1348
      %v1452 = vunpack.c.l.b16 %v1349
      %v1453 = vunpack.c.l.b16 %v1350
      %v1454 = vunpack.c.l.b16 %v1351
      %v1455 = vunpack.c.l.b16 %v1352
      %v1456 = vunpack.c.l.b16 %v1353
      %v1457 = vunpack.c.l.b16 %v1354
      %v1458 = vunpack.c.l.b16 %v1355
      %v1459 = vunpack.c.l.b16 %v1356
      %v1460 = vunpack.c.l.b16 %v1357
      %v1461 = vunpack.c.l.b16 %v1358
      %v1462 = vunpack.c.l.b16 %v1359
      %v1463 = vunpack.c.l.b16 %v1360
      %v1464 = vunpack.c.l.b16 %v1361
      %v1465 = vunpack.c.l.b16 %v1362
      %v1466 = vunpack.c.l.b16 %v1363
      %v1467 = vunpack.c.l.b16 %v1364
      %v1468 = vunpack.c.l.b16 %v1365
      %v1469 = vunpack.c.l.b16 %v1366
      %v1470 = vunpack.c.l.b16 %v1367
      %v1471 = vunpack.c.l.b16 %v1368
      %v1472 = vunpack.c.l.b16 %v1369
      %v1473 = vunpack.c.l.b16 %v1370
      %v1474 = vunpack.c.l.b16 %v1371
      %v1475 = vunpack.c.l.b16 %v1372
      %v1476 = vunpack.c.l.b16 %v1373
      %v1477 = vunpack.c.l.b16 %v1374
      %v1478 = vunpack.c.l.b16 %v1375
      %v1479 = vunpack.c.l.b16 %v1376
      %v1480 = vunpack.c.l.b16 %v1377
      %v1481 = vunpack.c.l.b16 %v1378
      %v1482 = vunpack.c.l.b16 %v1379
      %v1483 = vunpack.c.l.b16 %v1380
      %v1484 = vunpack.c.l.b16 %v1381
      %v1485 = vunpack.c.l.b16 %v1382
      %v1486 = vpack.c.b16 %v1439, %v1438
      %v1487 = vpack.c.b16 %v1441, %v1440
      %v1488 = vpack.c.b16 %v1443, %v1442
      %v1489 = vpack.c.b16 %v1445, %v1444
      %v1490 = vpack.c.b16 %v1447, %v1446
      %v1491 = vpack.c.b16 %v1449, %v1448
      %v1492 = vpack.c.b16 %v1451, %v1450
      %v1493 = vpack.c.b16 %v1453, %v1452
      %v1494 = vpack.c.b16 %v1455, %v1454
      %v1495 = vpack.c.b16 %v1457, %v1456
      %v1496 = vpack.c.b16 %v1459, %v1458
      %v1497 = vpack.c.b16 %v1461, %v1460
      %v1498 = vpack.c.b16 %v1463, %v1462
      %v1499 = vpack.c.b16 %v1465, %v1464
      %v1500 = vpack.c.b16 %v1467, %v1466
      %v1501 = vpack.c.b16 %v1469, %v1468
      %v1502 = vpack.c.b16 %v1471, %v1470
      %v1503 = vpack.c.b16 %v1473, %v1472
      %v1504 = vpack.c.b16 %v1475, %v1474
      %v1505 = vpack.c.b16 %v1477, %v1476
      %v1506 = vpack.c.b16 %v1479, %v1478
      %v1507 = vpack.c.b16 %v1481, %v1480
      %v1508 = vpack.c.b16 %v1483, %v1482
      %v1509 = vpack.c.b16 %v1485, %v1484
      %1534 = vmatprep.subr.bf16.mxu0 0
      %1535 = vmatpush1.bf16.msra.mxu0 %v1486
      %1536 = vmatprep.subr.bf16.mxu0 0
      %1537 = vmatpush1.bf16.msra.mxu0 %v1487
      %1538 = vmatprep.subr.bf16.mxu0 0
      %1539 = vmatpush1.bf16.msra.mxu0 %v1488
      %1540 = vmatprep.subr.bf16.mxu0 0
      %1541 = vmatpush1.bf16.msra.mxu0 %v1489
      %1542 = vmatprep.subr.bf16.mxu0 0
      %1543 = vmatpush1.bf16.msra.mxu0 %v1490
      %1544 = vmatprep.subr.bf16.mxu0 0
      %1545 = vmatpush1.bf16.msra.mxu0 %v1491
      %1546 = vmatprep.subr.bf16.mxu0 0
      %1547 = vmatpush1.bf16.msra.mxu0 %v1492
      %1548 = vmatprep.subr.bf16.mxu0 0
      %1549 = vmatpush1.bf16.msra.mxu0 %v1493
      %1550 = vmatprep.subr.bf16.mxu0 0
      %1551 = vmatpush1.bf16.msra.mxu0 %v1494
      %1552 = vmatprep.subr.bf16.mxu0 0
      %1553 = vmatpush1.bf16.msra.mxu0 %v1495
      %1554 = vmatprep.subr.bf16.mxu0 0
      %1555 = vmatpush1.bf16.msra.mxu0 %v1496
      %1556 = vmatprep.subr.bf16.mxu0 0
      %1557 = vmatpush1.bf16.msra.mxu0 %v1497
      %1558 = vmatprep.subr.bf16.mxu0 0
      %1559 = vmatpush1.bf16.msra.mxu0 %v1498
      %1560 = vmatprep.subr.bf16.mxu0 0
      %1561 = vmatpush1.bf16.msra.mxu0 %v1499
      %1562 = vmatprep.subr.bf16.mxu0 0
      %1563 = vmatpush1.bf16.msra.mxu0 %v1500
      %1564 = vmatprep.subr.bf16.mxu0 0
      %1565 = vmatpush1.bf16.msra.mxu0 %v1501
      %1566 = vmatprep.mubr.bf16.mxu0 %v1306
      %1567 = vmatmul.mubr.bf16.gmra.mrb[0].mxu0 %v1305
      %v1568 = vpop.f32.mrb[0].mxu0
      %v1569 = vadd.f32 %v1388, %v1568
      %v1570 = vpop.f32.mrb[0].mxu0
      %v1571 = vpop.f32.mrb[0].mxu0
      %v1572 = vadd.f32 %v1388, %v1571
      %v1573 = vpop.f32.mrb[0].mxu0
      %1574 = vmatprep.mubr.bf16.mxu0 %v1309
      %1575 = vmatmul.mubr.bf16.gmra.mrb[0].mxu0 %v1308
      %v1576 = vpop.f32.mrb[0].mxu0
      %v1577 = vadd.f32 %v1388, %v1576
      %v1578 = vpop.f32.mrb[0].mxu0
      %v1579 = vpop.f32.mrb[0].mxu0
      %v1580 = vadd.f32 %v1388, %v1579
      %v1581 = vpop.f32.mrb[0].mxu0
      %1582 = vmatprep.mubr.bf16.mxu0 %v1312
      %1583 = vmatmul.mubr.bf16.gmra.mrb[0].mxu0 %v1311
      %v1584 = vpop.f32.mrb[0].mxu0
      %v1585 = vadd.f32 %v1388, %v1584
      %v1586 = vpop.f32.mrb[0].mxu0
      %v1587 = vpop.f32.mrb[0].mxu0
      %v1588 = vadd.f32 %v1388, %v1587
      %v1589 = vpop.f32.mrb[0].mxu0
      %1590 = vmatprep.mubr.bf16.mxu0 %v1315
      %1591 = vmatmul.mubr.bf16.gmra.mrb[0].mxu0 %v1314
      %v1592 = vpop.f32.mrb[0].mxu0
      %v1593 = vadd.f32 %v1388, %v1592
      %v1594 = vpop.f32.mrb[0].mxu0
      %v1595 = vpop.f32.mrb[0].mxu0
      %v1596 = vadd.f32 %v1388, %v1595
      %v1597 = vpop.f32.mrb[0].mxu0
      %1598 = vmatprep.mubr.bf16.mxu0 %v1318
      %1599 = vmatmul.mubr.bf16.gmra.mrb[0].mxu0 %v1317
      %v1600 = vpop.f32.mrb[0].mxu0
      %v1601 = vadd.f32 %v1388, %v1600
      %v1602 = vpop.f32.mrb[0].mxu0
      %v1603 = vpop.f32.mrb[0].mxu0
      %v1604 = vadd.f32 %v1388, %v1603
      %v1605 = vpop.f32.mrb[0].mxu0
      %1606 = vmatprep.mubr.bf16.mxu0 %v1321
      %1607 = vmatmul.mubr.bf16.gmra.mrb[0].mxu0 %v1320
      %v1608 = vpop.f32.mrb[0].mxu0
      %v1609 = vadd.f32 %v1388, %v1608
      %v1610 = vpop.f32.mrb[0].mxu0
      %v1611 = vpop.f32.mrb[0].mxu0
      %v1612 = vadd.f32 %v1388, %v1611
      %v1613 = vpop.f32.mrb[0].mxu0
      %1614 = vmatprep.mubr.bf16.mxu0 %v1324
      %1615 = vmatmul.mubr.bf16.gmra.mrb[0].mxu0 %v1323
      %v1616 = vpop.f32.mrb[0].mxu0
      %v1617 = vadd.f32 %v1388, %v1616
      %v1618 = vpop.f32.mrb[0].mxu0
      %v1619 = vpop.f32.mrb[0].mxu0
      %v1620 = vadd.f32 %v1388, %v1619
      %v1621 = vpop.f32.mrb[0].mxu0
      %1622 = vmatprep.mubr.bf16.mxu0 %v1327
      %1623 = vmatmul.mubr.bf16.gmra.mrb[0].mxu0 %v1326
      %v1624 = vpop.f32.mrb[0].mxu0
      %v1625 = vadd.f32 %v1388, %v1624
      %v1626 = vpop.f32.mrb[0].mxu0
      %v1627 = vpop.f32.mrb[0].mxu0
      %v1628 = vadd.f32 %v1388, %v1627
      %v1629 = vpop.f32.mrb[0].mxu0
      %1630 = vmatprep.mubr.bf16.mxu0 %v1330
      %1631 = vmatmul.mubr.bf16.gmra.mrb[0].mxu0 %v1329
      %v1632 = vpop.f32.mrb[0].mxu0
      %v1633 = vadd.f32 %v1388, %v1632
      %v1634 = vpop.f32.mrb[0].mxu0
      %v1635 = vpop.f32.mrb[0].mxu0
      %v1636 = vadd.f32 %v1388, %v1635
      %v1637 = vpop.f32.mrb[0].mxu0
      %1638 = vmatprep.mubr.bf16.mxu0 %v1333
      %1639 = vmatmul.mubr.bf16.gmra.mrb[0].mxu0 %v1332
      %v1640 = vpop.f32.mrb[0].mxu0
      %v1641 = vadd.f32 %v1388, %v1640
      %v1642 = vpop.f32.mrb[0].mxu0
      %v1643 = vpop.f32.mrb[0].mxu0
      %v1644 = vpop.f32.mrb[0].mxu0
      %1645 = vdwg.mxu0
      %1646 = vmatprep.subr.bf16.mxu0 0
      %1647 = vmatpush1.bf16.msra.mxu0 %v1502
      %1648 = vmatprep.subr.bf16.mxu0 0
      %1649 = vmatpush1.bf16.msra.mxu0 %v1503
      %1650 = vmatprep.subr.bf16.mxu0 0
      %1651 = vmatpush1.bf16.msra.mxu0 %v1504
      %1652 = vmatprep.subr.bf16.mxu0 0
      %1653 = vmatpush1.bf16.msra.mxu0 %v1505
      %1654 = vmatprep.subr.bf16.mxu0 0
      %1655 = vmatpush1.bf16.msra.mxu0 %v1506
      %1656 = vmatprep.subr.bf16.mxu0 0
      %1657 = vmatpush1.bf16.msra.mxu0 %v1507
      %1658 = vmatprep.subr.bf16.mxu0 0
      %1659 = vmatpush1.bf16.msra.mxu0 %v1508
      %1660 = vmatprep.subr.bf16.mxu0 0
      %1661 = vmatpush1.bf16.msra.mxu0 %v1509
      %1662 = vmatprep.subr.bf16.mxu0 0
      %1663 = vmatpush1.bf16.msra.mxu0 0
      %1664 = vmatprep.subr.bf16.mxu0 0
      %1665 = vmatpush1.bf16.msra.mxu0 0
      %1666 = vmatprep.subr.bf16.mxu0 0
      %1667 = vmatpush1.bf16.msra.mxu0 0
      %1668 = vmatprep.subr.bf16.mxu0 0
      %1669 = vmatpush1.bf16.msra.mxu0 0
      %1670 = vmatprep.subr.bf16.mxu0 0
      %1671 = vmatpush1.bf16.msra.mxu0 0
      %1672 = vmatprep.subr.bf16.mxu0 0
      %1673 = vmatpush1.bf16.msra.mxu0 0
      %1674 = vmatprep.subr.bf16.mxu0 0
      %1675 = vmatpush1.bf16.msra.mxu0 0
      %1676 = vmatprep.subr.bf16.mxu0 0
      %1677 = vmatpush1.bf16.msra.mxu0 0
      %1678 = vmatprep.mubr.bf16.mxu0 0
      %1679 = vmatmul.mubr.bf16.gmra.mrb[0].mxu0 %v1307
      %v1680 = vpop.f32.mrb[0].mxu0
      %v1681 = vadd.f32 %v1569, %v1680
      %v1682 = vpop.f32.mrb[0].mxu0
      %v1683 = vpop.f32.mrb[0].mxu0
      %v1684 = vadd.f32 %v1572, %v1683
      %v1685 = vpop.f32.mrb[0].mxu0
      %1686 = vmatprep.mubr.bf16.mxu0 0
      %1687 = vmatmul.mubr.bf16.gmra.mrb[0].mxu0 %v1310
      %v1688 = vpop.f32.mrb[0].mxu0
      %v1689 = vadd.f32 %v1577, %v1688
      %v1690 = vpop.f32.mrb[0].mxu0
      %v1691 = vpop.f32.mrb[0].mxu0
      %v1692 = vadd.f32 %v1580, %v1691
      %v1693 = vpop.f32.mrb[0].mxu0
      %1694 = vmatprep.mubr.bf16.mxu0 0
      %1695 = vmatmul.mubr.bf16.gmra.mrb[0].mxu0 %v1313
      %v1696 = vpop.f32.mrb[0].mxu0
      %v1697 = vadd.f32 %v1585, %v1696
      %v1698 = vpop.f32.mrb[0].mxu0
      %v1699 = vpop.f32.mrb[0].mxu0
      %v1700 = vadd.f32 %v1588, %v1699
      %v1701 = vpop.f32.mrb[0].mxu0
      %1702 = vmatprep.mubr.bf16.mxu0 0
      %1703 = vmatmul.mubr.bf16.gmra.mrb[0].mxu0 %v1316
      %v1704 = vpop.f32.mrb[0].mxu0
      %v1705 = vadd.f32 %v1593, %v1704
      %v1706 = vpop.f32.mrb[0].mxu0
      %v1707 = vpop.f32.mrb[0].mxu0
      %v1708 = vadd.f32 %v1596, %v1707
      %v1709 = vpop.f32.mrb[0].mxu0
      %1710 = vmatprep.mubr.bf16.mxu0 0
      %1711 = vmatmul.mubr.bf16.gmra.mrb[0].mxu0 %v1319
      %v1712 = vpop.f32.mrb[0].mxu0
      %v1713 = vadd.f32 %v1601, %v1712
      %v1714 = vpop.f32.mrb[0].mxu0
      %v1715 = vpop.f32.mrb[0].mxu0
      %v1716 = vadd.f32 %v1604, %v1715
      %v1717 = vpop.f32.mrb[0].mxu0
      %1718 = vmatprep.mubr.bf16.mxu0 0
      %1719 = vmatmul.mubr.bf16.gmra.mrb[0].mxu0 %v1322
      %v1720 = vpop.f32.mrb[0].mxu0
      %v1721 = vadd.f32 %v1609, %v1720
      %v1722 = vpop.f32.mrb[0].mxu0
      %v1723 = vpop.f32.mrb[0].mxu0
      %v1724 = vadd.f32 %v1612, %v1723
      %v1725 = vpop.f32.mrb[0].mxu0
      %1726 = vmatprep.mubr.bf16.mxu0 0
      %1727 = vmatmul.mubr.bf16.gmra.mrb[0].mxu0 %v1325
      %v1728 = vpop.f32.mrb[0].mxu0
      %v1729 = vadd.f32 %v1617, %v1728
      %v1730 = vpop.f32.mrb[0].mxu0
      %v1731 = vpop.f32.mrb[0].mxu0
      %v1732 = vadd.f32 %v1620, %v1731
      %v1733 = vpop.f32.mrb[0].mxu0
      %1734 = vmatprep.mubr.bf16.mxu0 0
      %1735 = vmatmul.mubr.bf16.gmra.mrb[0].mxu0 %v1328
      %v1736 = vpop.f32.mrb[0].mxu0
      %v1737 = vadd.f32 %v1625, %v1736
      %v1738 = vpop.f32.mrb[0].mxu0
      %v1739 = vpop.f32.mrb[0].mxu0
      %v1740 = vadd.f32 %v1628, %v1739
      %v1741 = vpop.f32.mrb[0].mxu0
      %1742 = vmatprep.mubr.bf16.mxu0 0
      %1743 = vmatmul.mubr.bf16.gmra.mrb[0].mxu0 %v1331
      %v1744 = vpop.f32.mrb[0].mxu0
      %v1745 = vadd.f32 %v1633, %v1744
      %v1746 = vpop.f32.mrb[0].mxu0
      %v1747 = vpop.f32.mrb[0].mxu0
      %v1748 = vadd.f32 %v1636, %v1747
      %v1749 = vpop.f32.mrb[0].mxu0
      %1750 = vmatprep.mubr.bf16.mxu0 0
      %1751 = vmatmul.mubr.bf16.gmra.mrb[0].mxu0 %v1334
      %v1752 = vpop.f32.mrb[0].mxu0
      %v1753 = vadd.f32 %v1641, %v1752
      %v1754 = vpop.f32.mrb[0].mxu0
      %v1755 = vpop.f32.mrb[0].mxu0
      %v1756 = vpop.f32.mrb[0].mxu0
      %1757 = vdwg.mxu0
      %v1758 = vadd.f32 %v1681, %v390
      %v1759 = vadd.f32 %v1684, %v391
      %v1760 = vadd.f32 %v1689, %v392
      %v1761 = vadd.f32 %v1692, %v393
      %v1762 = vadd.f32 %v1697, %v394
      %v1763 = vadd.f32 %v1700, %v395
      %v1764 = vadd.f32 %v1705, %v396
      %v1765 = vadd.f32 %v1708, %v397
      %v1766 = vadd.f32 %v1713, %v398
      %v1767 = vadd.f32 %v1716, %v399
      %v1768 = vadd.f32 %v1721, %v400
      %v1769 = vadd.f32 %v1724, %v401
      %v1770 = vadd.f32 %v1729, %v402
      %v1771 = vadd.f32 %v1732, %v403
      %v1772 = vadd.f32 %v1737, %v404
      %v1773 = vadd.f32 %v1740, %v405
      %v1774 = vadd.f32 %v1745, %v406
      %v1775 = vadd.f32 %v1748, %v407
      %v1776 = vadd.f32 %v1753, %v408
      %vm1777 = vcmp.ge.f32.partialorder %v1758, 0.0
      %vm1778 = vcmp.ge.f32.partialorder %v1759, 0.0
      %vm1779 = vcmp.ge.f32.partialorder %v1760, 0.0
      %vm1780 = vcmp.ge.f32.partialorder %v1761, 0.0
      %vm1781 = vcmp.ge.f32.partialorder %v1762, 0.0
      %vm1782 = vcmp.ge.f32.partialorder %v1763, 0.0
      %vm1783 = vcmp.ge.f32.partialorder %v1764, 0.0
      %vm1784 = vcmp.ge.f32.partialorder %v1765, 0.0
      %vm1785 = vcmp.ge.f32.partialorder %v1766, 0.0
      %vm1786 = vcmp.ge.f32.partialorder %v1767, 0.0
      %vm1787 = vcmp.ge.f32.partialorder %v1768, 0.0
      %vm1788 = vcmp.ge.f32.partialorder %v1769, 0.0
      %vm1789 = vcmp.ge.f32.partialorder %v1770, 0.0
      %vm1790 = vcmp.ge.f32.partialorder %v1771, 0.0
      %vm1791 = vcmp.ge.f32.partialorder %v1772, 0.0
      %vm1792 = vcmp.ge.f32.partialorder %v1773, 0.0
      %vm1793 = vcmp.ge.f32.partialorder %v1774, 0.0
      %vm1794 = vcmp.ge.f32.partialorder %v1775, 0.0
      %vm1795 = vcmp.ge.f32.partialorder %v1776, 0.0
      %v1796 = vmul.f32 %v1758, 0.1
      %v1797 = vmul.f32 %v1759, 0.1
      %v1798 = vmul.f32 %v1760, 0.1
      %v1799 = vmul.f32 %v1761, 0.1
      %v1800 = vmul.f32 %v1762, 0.1
      %v1801 = vmul.f32 %v1763, 0.1
      %v1802 = vmul.f32 %v1764, 0.1
      %v1803 = vmul.f32 %v1765, 0.1
      %v1804 = vmul.f32 %v1766, 0.1
      %v1805 = vmul.f32 %v1767, 0.1
      %v1806 = vmul.f32 %v1768, 0.1
      %v1807 = vmul.f32 %v1769, 0.1
      %v1808 = vmul.f32 %v1770, 0.1
      %v1809 = vmul.f32 %v1771, 0.1
      %v1810 = vmul.f32 %v1772, 0.1
      %v1811 = vmul.f32 %v1773, 0.1
      %v1812 = vmul.f32 %v1774, 0.1
      %v1813 = vmul.f32 %v1775, 0.1
      %v1814 = vmul.f32 %v1776, 0.1
      %v1815 = vsel %vm1777, %v1758, %v1796
      %v1816 = vsel %vm1778, %v1759, %v1797
      %v1817 = vsel %vm1779, %v1760, %v1798
      %v1818 = vsel %vm1780, %v1761, %v1799
      %v1819 = vsel %vm1781, %v1762, %v1800
      %v1820 = vsel %vm1782, %v1763, %v1801
      %v1821 = vsel %vm1783, %v1764, %v1802
      %v1822 = vsel %vm1784, %v1765, %v1803
      %v1823 = vsel %vm1785, %v1766, %v1804
      %v1824 = vsel %vm1786, %v1767, %v1805
      %v1825 = vsel %vm1787, %v1768, %v1806
      %v1826 = vsel %vm1788, %v1769, %v1807
      %v1827 = vsel %vm1789, %v1770, %v1808
      %v1828 = vsel %vm1790, %v1771, %v1809
      %v1829 = vsel %vm1791, %v1772, %v1810
      %v1830 = vsel %vm1792, %v1773, %v1811
      %v1831 = vsel %vm1793, %v1774, %v1812
      %v1832 = vsel %vm1794, %v1775, %v1813
      %v1833 = vsel %vm1795, %v1776, %v1814
      %v1834 = vsel %vm584, %v1815, 0.0
      %v1835 = vsel %vm585, %v1816, 0.0
      %v1836 = vsel %vm586, %v1817, 0.0
      %v1837 = vsel %vm587, %v1818, 0.0
      %v1838 = vsel %vm588, %v1819, 0.0
      %v1839 = vsel %vm589, %v1820, 0.0
      %v1840 = vsel %vm590, %v1821, 0.0
      %v1841 = vsel %vm591, %v1822, 0.0
      %v1842 = vsel %vm592, %v1823, 0.0
      %v1843 = vsel %vm593, %v1824, 0.0
      %v1844 = vsel %vm594, %v1825, 0.0
      %v1845 = vsel %vm595, %v1826, 0.0
      %v1846 = vsel %vm596, %v1827, 0.0
      %v1847 = vsel %vm597, %v1828, 0.0
      %v1848 = vsel %vm598, %v1829, 0.0
      %v1849 = vsel %vm599, %v1830, 0.0
      %v1850 = vsel %vm600, %v1831, 0.0
      %v1851 = vsel %vm601, %v1832, 0.0
      %v1852 = vsel %vm602, %v1833, 0.0
      %v1853 = vrot.slane %v1834, 5
      %v1854 = vrot.slane %v1835, 5
      %v1855 = vrot.slane %v1836, 5
      %v1856 = vrot.slane %v1837, 5
      %v1857 = vrot.slane %v1838, 5
      %v1858 = vrot.slane %v1839, 5
      %v1859 = vrot.slane %v1840, 5
      %v1860 = vrot.slane %v1841, 5
      %v1861 = vrot.slane %v1842, 5
      %v1862 = vrot.slane %v1843, 5
      %v1863 = vrot.slane %v1844, 5
      %v1864 = vrot.slane %v1845, 5
      %v1865 = vrot.slane %v1846, 5
      %v1866 = vrot.slane %v1847, 5
      %v1867 = vrot.slane %v1848, 5
      %v1868 = vrot.slane %v1849, 5
      %v1869 = vrot.slane %v1850, 5
      %v1870 = vrot.slane %v1851, 5
      %v1871 = vrot.slane %v1852, 5
      %vm1872 = vcmp.lt.s32.totalorder %v412, 3
      %v1873 = vsel %vm1872, %v1870, %v1871
      %v1874 = vsel %vm1872, %v1869, %v1870
      %v1875 = vsel %vm1872, %v1868, %v1869
      %v1876 = vsel %vm1872, %v1867, %v1868
      %v1877 = vsel %vm1872, %v1866, %v1867
      %v1878 = vsel %vm1872, %v1865, %v1866
      %v1879 = vsel %vm1872, %v1864, %v1865
      %v1880 = vsel %vm1872, %v1863, %v1864
      %v1881 = vsel %vm1872, %v1862, %v1863
      %v1882 = vsel %vm1872, %v1861, %v1862
      %v1883 = vsel %vm1872, %v1860, %v1861
      %v1884 = vsel %vm1872, %v1859, %v1860
      %v1885 = vsel %vm1872, %v1858, %v1859
      %v1886 = vsel %vm1872, %v1857, %v1858
      %v1887 = vsel %vm1872, %v1856, %v1857
      %v1888 = vsel %vm1872, %v1855, %v1856
      %v1889 = vsel %vm1872, %v1854, %v1855
      %v1890 = vsel %vm1872, %v1853, %v1854
      %v1891 = vsel %vm1872, %v1871, %v1853
      %v1892 = vrot.slane %v1834, 3
      %v1893 = vrot.slane %v1835, 3
      %v1894 = vrot.slane %v1836, 3
      %v1895 = vrot.slane %v1837, 3
      %v1896 = vrot.slane %v1838, 3
      %v1897 = vrot.slane %v1839, 3
      %v1898 = vrot.slane %v1840, 3
      %v1899 = vrot.slane %v1841, 3
      %v1900 = vrot.slane %v1842, 3
      %v1901 = vrot.slane %v1843, 3
      %v1902 = vrot.slane %v1844, 3
      %v1903 = vrot.slane %v1845, 3
      %v1904 = vrot.slane %v1846, 3
      %v1905 = vrot.slane %v1847, 3
      %v1906 = vrot.slane %v1848, 3
      %v1907 = vrot.slane %v1849, 3
      %v1908 = vrot.slane %v1850, 3
      %v1909 = vrot.slane %v1851, 3
      %v1910 = vrot.slane %v1852, 3
      %vm1911 = vcmp.lt.s32.totalorder %v412, 5
      %v1912 = vsel %vm1911, %v1909, %v1910
      %v1913 = vsel %vm1911, %v1908, %v1909
      %v1914 = vsel %vm1911, %v1907, %v1908
      %v1915 = vsel %vm1911, %v1906, %v1907
      %v1916 = vsel %vm1911, %v1905, %v1906
      %v1917 = vsel %vm1911, %v1904, %v1905
      %v1918 = vsel %vm1911, %v1903, %v1904
      %v1919 = vsel %vm1911, %v1902, %v1903
      %v1920 = vsel %vm1911, %v1901, %v1902
      %v1921 = vsel %vm1911, %v1900, %v1901
      %v1922 = vsel %vm1911, %v1899, %v1900
      %v1923 = vsel %vm1911, %v1898, %v1899
      %v1924 = vsel %vm1911, %v1897, %v1898
      %v1925 = vsel %vm1911, %v1896, %v1897
      %v1926 = vsel %vm1911, %v1895, %v1896
      %v1927 = vsel %vm1911, %v1894, %v1895
      %v1928 = vsel %vm1911, %v1893, %v1894
      %v1929 = vsel %vm1911, %v1892, %v1893
      %v1930 = vsel %vm1911, %v1910, %v1892
      %v1931 = vpack.c.bf16 %v1890, %v1891
      %v1932 = vpack.c.bf16 %v1835, %v1834
      %v1933 = vpack.c.bf16 %v1928, %v1929
      %v1934 = vpack.c.bf16 %v1888, %v1889
      %v1935 = vpack.c.bf16 %v1837, %v1836
      %v1936 = vpack.c.bf16 %v1926, %v1927
      %v1937 = vpack.c.bf16 %v1886, %v1887
      %v1938 = vpack.c.bf16 %v1839, %v1838
      %v1939 = vpack.c.bf16 %v1924, %v1925
      %v1940 = vpack.c.bf16 %v1884, %v1885
      %v1941 = vpack.c.bf16 %v1841, %v1840
      %v1942 = vpack.c.bf16 %v1922, %v1923
      %v1943 = vpack.c.bf16 %v1882, %v1883
      %v1944 = vpack.c.bf16 %v1843, %v1842
      %v1945 = vpack.c.bf16 %v1920, %v1921
      %v1946 = vpack.c.bf16 %v1880, %v1881
      %v1947 = vpack.c.bf16 %v1845, %v1844
      %v1948 = vpack.c.bf16 %v1918, %v1919
      %v1949 = vpack.c.bf16 %v1878, %v1879
      %v1950 = vpack.c.bf16 %v1847, %v1846
      %v1951 = vpack.c.bf16 %v1916, %v1917
      %v1952 = vpack.c.bf16 %v1876, %v1877
      %v1953 = vpack.c.bf16 %v1849, %v1848
      %v1954 = vpack.c.bf16 %v1914, %v1915
      %v1955 = vpack.c.bf16 %v1874, %v1875
      %v1956 = vpack.c.bf16 %v1851, %v1850
      %v1957 = vpack.c.bf16 %v1912, %v1913
      %v1958 = vpack.c.bf16 %v1873, %v1873
      %v1959 = vpack.c.bf16 %v1852, %v1852
      %v1960 = vpack.c.bf16 %v1930, %v1930
      %s1961 = scalar_lea.vmem %s1, 192
      %v1962 = vld [vmem:[%s1961] sm:$0xf]
      %v1963 = vld [vmem:[%s1961 + $0x4] sm:$0xf]
      %v1964 = vld [vmem:[%s1961 + $0x8] sm:$0xf]
      %v1965 = vld [vmem:[%s1961 + $0xc] sm:$0xf]
      %v1966 = vld [vmem:[%s1961 + $0x10] sm:$0xf]
      %v1967 = vld [vmem:[%s1961 + $0x14] sm:$0xf]
      %v1968 = vld [vmem:[%s1961 + $0x18] sm:$0xf]
      %v1969 = vld [vmem:[%s1961 + $0x1c] sm:$0xf]
      %v1970 = vld [vmem:[%s1961 + $0x20] sm:$0xf]
      %v1971 = vld [vmem:[%s1961 + $0x24] sm:$0xf]
      %v1972 = vld [vmem:[%s1961 + $0x28] sm:$0xf]
      %v1973 = vld [vmem:[%s1961 + $0x2c] sm:$0xf]
      %v1974 = vld [vmem:[%s1961 + $0x30] sm:$0xf]
      %v1975 = vld [vmem:[%s1961 + $0x34] sm:$0xf]
      %v1976 = vld [vmem:[%s1961 + $0x38] sm:$0xf]
      %v1977 = vld [vmem:[%s1961 + $0x3c] sm:$0xf]
      %v1978 = vld [vmem:[%s1961 + $0x40] sm:$0xf]
      %v1979 = vld [vmem:[%s1961 + $0x44] sm:$0xf]
      %v1980 = vld [vmem:[%s1961 + $0x48] sm:$0xf]
      %v1981 = vld [vmem:[%s1961 + $0x4c] sm:$0xf]
      %v1982 = vld [vmem:[%s1961 + $0x50] sm:$0xf]
      %v1983 = vld [vmem:[%s1961 + $0x54] sm:$0xf]
      %v1984 = vld [vmem:[%s1961 + $0x58] sm:$0xf]
      %v1985 = vld [vmem:[%s1961 + $0x5c] sm:$0xf]
      %v1986 = vld [vmem:[%s1961 + $0x60] sm:$0xf]
      %v1987 = vld [vmem:[%s1961 + $0x64] sm:$0xf]
      %v1988 = vld [vmem:[%s1961 + $0x68] sm:$0xf]
      %v1989 = vld [vmem:[%s1961 + $0x6c] sm:$0xf]
      %v1990 = vld [vmem:[%s1961 + $0x70] sm:$0xf]
      %v1991 = vld [vmem:[%s1961 + $0x74] sm:$0xf]
      %v1992 = vld [vmem:[%s1961 + $0x78] sm:$0xf]
      %v1993 = vld [vmem:[%s1961 + $0x7c] sm:$0xf]
      %v1994 = vld [vmem:[%s1961 + $0x80] sm:$0xf]
      %v1995 = vld [vmem:[%s1961 + $0x84] sm:$0xf]
      %v1996 = vld [vmem:[%s1961 + $0x88] sm:$0xf]
      %v1997 = vld [vmem:[%s1961 + $0x8c] sm:$0xf]
      %v1998 = vld [vmem:[%s1961 + $0x90] sm:$0xf]
      %v1999 = vld [vmem:[%s1961 + $0x94] sm:$0xf]
      %v2000 = vld [vmem:[%s1961 + $0x98] sm:$0xf]
      %v2001 = vld [vmem:[%s1961 + $0x9c] sm:$0xf]
      %v2002 = vld [vmem:[%s1961 + $0xa0] sm:$0xf]
      %v2003 = vld [vmem:[%s1961 + $0xa4] sm:$0xf]
      %v2004 = vld [vmem:[%s1961 + $0xa8] sm:$0xf]
      %v2005 = vld [vmem:[%s1961 + $0xac] sm:$0xf]
      %v2006 = vld [vmem:[%s1961 + $0xb0] sm:$0xf]
      %v2007 = vld [vmem:[%s1961 + $0xb4] sm:$0xf]
      %v2008 = vld [vmem:[%s1961 + $0xb8] sm:$0xf]
      %v2009 = vld [vmem:[%s1961 + $0xbc] sm:$0xf]
      %s2010 = scalar_lea.vmem %s2, 1
      %v2011 = vld [vmem:[%s2010] sm:$0x1]
      %v2013 = vlaneseq
      %v2014 = vshrl.u32 %v2013, 7
      %v2015 = vsub.s32 0, %v2014
      %v2016 = vrot.slane %v2011, %v2015
      %v2066 = vunpack.c.l.b16 %v1962
      %v2067 = vunpack.c.l.b16 %v1963
      %v2068 = vunpack.c.l.b16 %v1964
      %v2069 = vunpack.c.l.b16 %v1965
      %v2070 = vunpack.c.l.b16 %v1966
      %v2071 = vunpack.c.l.b16 %v1967
      %v2072 = vunpack.c.l.b16 %v1968
      %v2073 = vunpack.c.l.b16 %v1969
      %v2074 = vunpack.c.l.b16 %v1970
      %v2075 = vunpack.c.l.b16 %v1971
      %v2076 = vunpack.c.l.b16 %v1972
      %v2077 = vunpack.c.l.b16 %v1973
      %v2078 = vunpack.c.l.b16 %v1974
      %v2079 = vunpack.c.l.b16 %v1975
      %v2080 = vunpack.c.l.b16 %v1976
      %v2081 = vunpack.c.l.b16 %v1977
      %v2082 = vunpack.c.l.b16 %v1978
      %v2083 = vunpack.c.l.b16 %v1979
      %v2084 = vunpack.c.l.b16 %v1980
      %v2085 = vunpack.c.l.b16 %v1981
      %v2086 = vunpack.c.l.b16 %v1982
      %v2087 = vunpack.c.l.b16 %v1983
      %v2088 = vunpack.c.l.b16 %v1984
      %v2089 = vunpack.c.l.b16 %v1985
      %v2090 = vunpack.c.l.b16 %v1986
      %v2091 = vunpack.c.l.b16 %v1987
      %v2092 = vunpack.c.l.b16 %v1988
      %v2093 = vunpack.c.l.b16 %v1989
      %v2094 = vunpack.c.l.b16 %v1990
      %v2095 = vunpack.c.l.b16 %v1991
      %v2096 = vunpack.c.l.b16 %v1992
      %v2097 = vunpack.c.l.b16 %v1993
      %v2098 = vunpack.c.l.b16 %v1994
      %v2099 = vunpack.c.l.b16 %v1995
      %v2100 = vunpack.c.l.b16 %v1996
      %v2101 = vunpack.c.l.b16 %v1997
      %v2102 = vunpack.c.l.b16 %v1998
      %v2103 = vunpack.c.l.b16 %v1999
      %v2104 = vunpack.c.l.b16 %v2000
      %v2105 = vunpack.c.l.b16 %v2001
      %v2106 = vunpack.c.l.b16 %v2002
      %v2107 = vunpack.c.l.b16 %v2003
      %v2108 = vunpack.c.l.b16 %v2004
      %v2109 = vunpack.c.l.b16 %v2005
      %v2110 = vunpack.c.l.b16 %v2006
      %v2111 = vunpack.c.l.b16 %v2007
      %v2112 = vunpack.c.l.b16 %v2008
      %v2113 = vunpack.c.l.b16 %v2009
      %v2114 = vpack.c.b16 %v2067, %v2066
      %v2115 = vpack.c.b16 %v2069, %v2068
      %v2116 = vpack.c.b16 %v2071, %v2070
      %v2117 = vpack.c.b16 %v2073, %v2072
      %v2118 = vpack.c.b16 %v2075, %v2074
      %v2119 = vpack.c.b16 %v2077, %v2076
      %v2120 = vpack.c.b16 %v2079, %v2078
      %v2121 = vpack.c.b16 %v2081, %v2080
      %v2122 = vpack.c.b16 %v2083, %v2082
      %v2123 = vpack.c.b16 %v2085, %v2084
      %v2124 = vpack.c.b16 %v2087, %v2086
      %v2125 = vpack.c.b16 %v2089, %v2088
      %v2126 = vpack.c.b16 %v2091, %v2090
      %v2127 = vpack.c.b16 %v2093, %v2092
      %v2128 = vpack.c.b16 %v2095, %v2094
      %v2129 = vpack.c.b16 %v2097, %v2096
      %v2130 = vpack.c.b16 %v2099, %v2098
      %v2131 = vpack.c.b16 %v2101, %v2100
      %v2132 = vpack.c.b16 %v2103, %v2102
      %v2133 = vpack.c.b16 %v2105, %v2104
      %v2134 = vpack.c.b16 %v2107, %v2106
      %v2135 = vpack.c.b16 %v2109, %v2108
      %v2136 = vpack.c.b16 %v2111, %v2110
      %v2137 = vpack.c.b16 %v2113, %v2112
      %2162 = vmatprep.subr.bf16.mxu0 0
      %2163 = vmatpush1.bf16.msra.mxu0 %v2114
      %2164 = vmatprep.subr.bf16.mxu0 0
      %2165 = vmatpush1.bf16.msra.mxu0 %v2115
      %2166 = vmatprep.subr.bf16.mxu0 0
      %2167 = vmatpush1.bf16.msra.mxu0 %v2116
      %2168 = vmatprep.subr.bf16.mxu0 0
      %2169 = vmatpush1.bf16.msra.mxu0 %v2117
      %2170 = vmatprep.subr.bf16.mxu0 0
      %2171 = vmatpush1.bf16.msra.mxu0 %v2118
      %2172 = vmatprep.subr.bf16.mxu0 0
      %2173 = vmatpush1.bf16.msra.mxu0 %v2119
      %2174 = vmatprep.subr.bf16.mxu0 0
      %2175 = vmatpush1.bf16.msra.mxu0 %v2120
      %2176 = vmatprep.subr.bf16.mxu0 0
      %2177 = vmatpush1.bf16.msra.mxu0 %v2121
      %2178 = vmatprep.subr.bf16.mxu0 0
      %2179 = vmatpush1.bf16.msra.mxu0 %v2122
      %2180 = vmatprep.subr.bf16.mxu0 0
      %2181 = vmatpush1.bf16.msra.mxu0 %v2123
      %2182 = vmatprep.subr.bf16.mxu0 0
      %2183 = vmatpush1.bf16.msra.mxu0 %v2124
      %2184 = vmatprep.subr.bf16.mxu0 0
      %2185 = vmatpush1.bf16.msra.mxu0 %v2125
      %2186 = vmatprep.subr.bf16.mxu0 0
      %2187 = vmatpush1.bf16.msra.mxu0 %v2126
      %2188 = vmatprep.subr.bf16.mxu0 0
      %2189 = vmatpush1.bf16.msra.mxu0 %v2127
      %2190 = vmatprep.subr.bf16.mxu0 0
      %2191 = vmatpush1.bf16.msra.mxu0 %v2128
      %2192 = vmatprep.subr.bf16.mxu0 0
      %2193 = vmatpush1.bf16.msra.mxu0 %v2129
      %2194 = vmatprep.mubr.bf16.mxu0 %v1932
      %2195 = vmatmul.mubr.bf16.gmra.mrb[0].mxu0 %v1931
      %v2196 = vpop.f32.mrb[0].mxu0
      %v2197 = vadd.f32 %v2016, %v2196
      %v2198 = vpop.f32.mrb[0].mxu0
      %v2199 = vpop.f32.mrb[0].mxu0
      %v2200 = vadd.f32 %v2016, %v2199
      %v2201 = vpop.f32.mrb[0].mxu0
      %2202 = vmatprep.mubr.bf16.mxu0 %v1935
      %2203 = vmatmul.mubr.bf16.gmra.mrb[0].mxu0 %v1934
      %v2204 = vpop.f32.mrb[0].mxu0
      %v2205 = vadd.f32 %v2016, %v2204
      %v2206 = vpop.f32.mrb[0].mxu0
      %v2207 = vpop.f32.mrb[0].mxu0
      %v2208 = vadd.f32 %v2016, %v2207
      %v2209 = vpop.f32.mrb[0].mxu0
      %2210 = vmatprep.mubr.bf16.mxu0 %v1938
      %2211 = vmatmul.mubr.bf16.gmra.mrb[0].mxu0 %v1937
      %v2212 = vpop.f32.mrb[0].mxu0
      %v2213 = vadd.f32 %v2016, %v2212
      %v2214 = vpop.f32.mrb[0].mxu0
      %v2215 = vpop.f32.mrb[0].mxu0
      %v2216 = vadd.f32 %v2016, %v2215
      %v2217 = vpop.f32.mrb[0].mxu0
      %2218 = vmatprep.mubr.bf16.mxu0 %v1941
      %2219 = vmatmul.mubr.bf16.gmra.mrb[0].mxu0 %v1940
      %v2220 = vpop.f32.mrb[0].mxu0
      %v2221 = vadd.f32 %v2016, %v2220
      %v2222 = vpop.f32.mrb[0].mxu0
      %v2223 = vpop.f32.mrb[0].mxu0
      %v2224 = vadd.f32 %v2016, %v2223
      %v2225 = vpop.f32.mrb[0].mxu0
      %2226 = vmatprep.mubr.bf16.mxu0 %v1944
      %2227 = vmatmul.mubr.bf16.gmra.mrb[0].mxu0 %v1943
      %v2228 = vpop.f32.mrb[0].mxu0
      %v2229 = vadd.f32 %v2016, %v2228
      %v2230 = vpop.f32.mrb[0].mxu0
      %v2231 = vpop.f32.mrb[0].mxu0
      %v2232 = vadd.f32 %v2016, %v2231
      %v2233 = vpop.f32.mrb[0].mxu0
      %2234 = vmatprep.mubr.bf16.mxu0 %v1947
      %2235 = vmatmul.mubr.bf16.gmra.mrb[0].mxu0 %v1946
      %v2236 = vpop.f32.mrb[0].mxu0
      %v2237 = vadd.f32 %v2016, %v2236
      %v2238 = vpop.f32.mrb[0].mxu0
      %v2239 = vpop.f32.mrb[0].mxu0
      %v2240 = vadd.f32 %v2016, %v2239
      %v2241 = vpop.f32.mrb[0].mxu0
      %2242 = vmatprep.mubr.bf16.mxu0 %v1950
      %2243 = vmatmul.mubr.bf16.gmra.mrb[0].mxu0 %v1949
      %v2244 = vpop.f32.mrb[0].mxu0
      %v2245 = vadd.f32 %v2016, %v2244
      %v2246 = vpop.f32.mrb[0].mxu0
      %v2247 = vpop.f32.mrb[0].mxu0
      %v2248 = vadd.f32 %v2016, %v2247
      %v2249 = vpop.f32.mrb[0].mxu0
      %2250 = vmatprep.mubr.bf16.mxu0 %v1953
      %2251 = vmatmul.mubr.bf16.gmra.mrb[0].mxu0 %v1952
      %v2252 = vpop.f32.mrb[0].mxu0
      %v2253 = vadd.f32 %v2016, %v2252
      %v2254 = vpop.f32.mrb[0].mxu0
      %v2255 = vpop.f32.mrb[0].mxu0
      %v2256 = vadd.f32 %v2016, %v2255
      %v2257 = vpop.f32.mrb[0].mxu0
      %2258 = vmatprep.mubr.bf16.mxu0 %v1956
      %2259 = vmatmul.mubr.bf16.gmra.mrb[0].mxu0 %v1955
      %v2260 = vpop.f32.mrb[0].mxu0
      %v2261 = vadd.f32 %v2016, %v2260
      %v2262 = vpop.f32.mrb[0].mxu0
      %v2263 = vpop.f32.mrb[0].mxu0
      %v2264 = vadd.f32 %v2016, %v2263
      %v2265 = vpop.f32.mrb[0].mxu0
      %2266 = vmatprep.mubr.bf16.mxu0 %v1959
      %2267 = vmatmul.mubr.bf16.gmra.mrb[0].mxu0 %v1958
      %v2268 = vpop.f32.mrb[0].mxu0
      %v2269 = vadd.f32 %v2016, %v2268
      %v2270 = vpop.f32.mrb[0].mxu0
      %v2271 = vpop.f32.mrb[0].mxu0
      %v2272 = vpop.f32.mrb[0].mxu0
      %2273 = vdwg.mxu0
      %2274 = vmatprep.subr.bf16.mxu0 0
      %2275 = vmatpush1.bf16.msra.mxu0 %v2130
      %2276 = vmatprep.subr.bf16.mxu0 0
      %2277 = vmatpush1.bf16.msra.mxu0 %v2131
      %2278 = vmatprep.subr.bf16.mxu0 0
      %2279 = vmatpush1.bf16.msra.mxu0 %v2132
      %2280 = vmatprep.subr.bf16.mxu0 0
      %2281 = vmatpush1.bf16.msra.mxu0 %v2133
      %2282 = vmatprep.subr.bf16.mxu0 0
      %2283 = vmatpush1.bf16.msra.mxu0 %v2134
      %2284 = vmatprep.subr.bf16.mxu0 0
      %2285 = vmatpush1.bf16.msra.mxu0 %v2135
      %2286 = vmatprep.subr.bf16.mxu0 0
      %2287 = vmatpush1.bf16.msra.mxu0 %v2136
      %2288 = vmatprep.subr.bf16.mxu0 0
      %2289 = vmatpush1.bf16.msra.mxu0 %v2137
      %2290 = vmatprep.subr.bf16.mxu0 0
      %2291 = vmatpush1.bf16.msra.mxu0 0
      %2292 = vmatprep.subr.bf16.mxu0 0
      %2293 = vmatpush1.bf16.msra.mxu0 0
      %2294 = vmatprep.subr.bf16.mxu0 0
      %2295 = vmatpush1.bf16.msra.mxu0 0
      %2296 = vmatprep.subr.bf16.mxu0 0
      %2297 = vmatpush1.bf16.msra.mxu0 0
      %2298 = vmatprep.subr.bf16.mxu0 0
      %2299 = vmatpush1.bf16.msra.mxu0 0
      %2300 = vmatprep.subr.bf16.mxu0 0
      %2301 = vmatpush1.bf16.msra.mxu0 0
      %2302 = vmatprep.subr.bf16.mxu0 0
      %2303 = vmatpush1.bf16.msra.mxu0 0
      %2304 = vmatprep.subr.bf16.mxu0 0
      %2305 = vmatpush1.bf16.msra.mxu0 0
      %2306 = vmatprep.mubr.bf16.mxu0 0
      %2307 = vmatmul.mubr.bf16.gmra.mrb[0].mxu0 %v1933
      %v2308 = vpop.f32.mrb[0].mxu0
      %v2309 = vadd.f32 %v2197, %v2308
      %v2310 = vpop.f32.mrb[0].mxu0
      %v2311 = vpop.f32.mrb[0].mxu0
      %v2312 = vadd.f32 %v2200, %v2311
      %v2313 = vpop.f32.mrb[0].mxu0
      %2314 = vmatprep.mubr.bf16.mxu0 0
      %2315 = vmatmul.mubr.bf16.gmra.mrb[0].mxu0 %v1936
      %v2316 = vpop.f32.mrb[0].mxu0
      %v2317 = vadd.f32 %v2205, %v2316
      %v2318 = vpop.f32.mrb[0].mxu0
      %v2319 = vpop.f32.mrb[0].mxu0
      %v2320 = vadd.f32 %v2208, %v2319
      %v2321 = vpop.f32.mrb[0].mxu0
      %2322 = vmatprep.mubr.bf16.mxu0 0
      %2323 = vmatmul.mubr.bf16.gmra.mrb[0].mxu0 %v1939
      %v2324 = vpop.f32.mrb[0].mxu0
      %v2325 = vadd.f32 %v2213, %v2324
      %v2326 = vpop.f32.mrb[0].mxu0
      %v2327 = vpop.f32.mrb[0].mxu0
      %v2328 = vadd.f32 %v2216, %v2327
      %v2329 = vpop.f32.mrb[0].mxu0
      %2330 = vmatprep.mubr.bf16.mxu0 0
      %2331 = vmatmul.mubr.bf16.gmra.mrb[0].mxu0 %v1942
      %v2332 = vpop.f32.mrb[0].mxu0
      %v2333 = vadd.f32 %v2221, %v2332
      %v2334 = vpop.f32.mrb[0].mxu0
      %v2335 = vpop.f32.mrb[0].mxu0
      %v2336 = vadd.f32 %v2224, %v2335
      %v2337 = vpop.f32.mrb[0].mxu0
      %2338 = vmatprep.mubr.bf16.mxu0 0
      %2339 = vmatmul.mubr.bf16.gmra.mrb[0].mxu0 %v1945
      %v2340 = vpop.f32.mrb[0].mxu0
      %v2341 = vadd.f32 %v2229, %v2340
      %v2342 = vpop.f32.mrb[0].mxu0
      %v2343 = vpop.f32.mrb[0].mxu0
      %v2344 = vadd.f32 %v2232, %v2343
      %v2345 = vpop.f32.mrb[0].mxu0
      %2346 = vmatprep.mubr.bf16.mxu0 0
      %2347 = vmatmul.mubr.bf16.gmra.mrb[0].mxu0 %v1948
      %v2348 = vpop.f32.mrb[0].mxu0
      %v2349 = vadd.f32 %v2237, %v2348
      %v2350 = vpop.f32.mrb[0].mxu0
      %v2351 = vpop.f32.mrb[0].mxu0
      %v2352 = vadd.f32 %v2240, %v2351
      %v2353 = vpop.f32.mrb[0].mxu0
      %2354 = vmatprep.mubr.bf16.mxu0 0
      %2355 = vmatmul.mubr.bf16.gmra.mrb[0].mxu0 %v1951
      %v2356 = vpop.f32.mrb[0].mxu0
      %v2357 = vadd.f32 %v2245, %v2356
      %v2358 = vpop.f32.mrb[0].mxu0
      %v2359 = vpop.f32.mrb[0].mxu0
      %v2360 = vadd.f32 %v2248, %v2359
      %v2361 = vpop.f32.mrb[0].mxu0
      %2362 = vmatprep.mubr.bf16.mxu0 0
      %2363 = vmatmul.mubr.bf16.gmra.mrb[0].mxu0 %v1954
      %v2364 = vpop.f32.mrb[0].mxu0
      %v2365 = vadd.f32 %v2253, %v2364
      %v2366 = vpop.f32.mrb[0].mxu0
      %v2367 = vpop.f32.mrb[0].mxu0
      %v2368 = vadd.f32 %v2256, %v2367
      %v2369 = vpop.f32.mrb[0].mxu0
      %2370 = vmatprep.mubr.bf16.mxu0 0
      %2371 = vmatmul.mubr.bf16.gmra.mrb[0].mxu0 %v1957
      %v2372 = vpop.f32.mrb[0].mxu0
      %v2373 = vadd.f32 %v2261, %v2372
      %v2374 = vpop.f32.mrb[0].mxu0
      %v2375 = vpop.f32.mrb[0].mxu0
      %v2376 = vadd.f32 %v2264, %v2375
      %v2377 = vpop.f32.mrb[0].mxu0
      %2378 = vmatprep.mubr.bf16.mxu0 0
      %2379 = vmatmul.mubr.bf16.gmra.mrb[0].mxu0 %v1960
      %v2380 = vpop.f32.mrb[0].mxu0
      %v2381 = vadd.f32 %v2269, %v2380
      %v2382 = vpop.f32.mrb[0].mxu0
      %v2383 = vpop.f32.mrb[0].mxu0
      %v2384 = vpop.f32.mrb[0].mxu0
      %2385 = vdwg.mxu0
      %vm2386 = vcmp.ge.f32.partialorder %v2309, 0.0
      %vm2387 = vcmp.ge.f32.partialorder %v2312, 0.0
      %vm2388 = vcmp.ge.f32.partialorder %v2317, 0.0
      %vm2389 = vcmp.ge.f32.partialorder %v2320, 0.0
      %vm2390 = vcmp.ge.f32.partialorder %v2325, 0.0
      %vm2391 = vcmp.ge.f32.partialorder %v2328, 0.0
      %vm2392 = vcmp.ge.f32.partialorder %v2333, 0.0
      %vm2393 = vcmp.ge.f32.partialorder %v2336, 0.0
      %vm2394 = vcmp.ge.f32.partialorder %v2341, 0.0
      %vm2395 = vcmp.ge.f32.partialorder %v2344, 0.0
      %vm2396 = vcmp.ge.f32.partialorder %v2349, 0.0
      %vm2397 = vcmp.ge.f32.partialorder %v2352, 0.0
      %vm2398 = vcmp.ge.f32.partialorder %v2357, 0.0
      %vm2399 = vcmp.ge.f32.partialorder %v2360, 0.0
      %vm2400 = vcmp.ge.f32.partialorder %v2365, 0.0
      %vm2401 = vcmp.ge.f32.partialorder %v2368, 0.0
      %vm2402 = vcmp.ge.f32.partialorder %v2373, 0.0
      %vm2403 = vcmp.ge.f32.partialorder %v2376, 0.0
      %vm2404 = vcmp.ge.f32.partialorder %v2381, 0.0
      %v2405 = vmul.f32 %v2309, 0.1
      %v2406 = vmul.f32 %v2312, 0.1
      %v2407 = vmul.f32 %v2317, 0.1
      %v2408 = vmul.f32 %v2320, 0.1
      %v2409 = vmul.f32 %v2325, 0.1
      %v2410 = vmul.f32 %v2328, 0.1
      %v2411 = vmul.f32 %v2333, 0.1
      %v2412 = vmul.f32 %v2336, 0.1
      %v2413 = vmul.f32 %v2341, 0.1
      %v2414 = vmul.f32 %v2344, 0.1
      %v2415 = vmul.f32 %v2349, 0.1
      %v2416 = vmul.f32 %v2352, 0.1
      %v2417 = vmul.f32 %v2357, 0.1
      %v2418 = vmul.f32 %v2360, 0.1
      %v2419 = vmul.f32 %v2365, 0.1
      %v2420 = vmul.f32 %v2368, 0.1
      %v2421 = vmul.f32 %v2373, 0.1
      %v2422 = vmul.f32 %v2376, 0.1
      %v2423 = vmul.f32 %v2381, 0.1
      %v2424 = vsel %vm2386, %v2309, %v2405
      %v2425 = vsel %vm2387, %v2312, %v2406
      %v2426 = vsel %vm2388, %v2317, %v2407
      %v2427 = vsel %vm2389, %v2320, %v2408
      %v2428 = vsel %vm2390, %v2325, %v2409
      %v2429 = vsel %vm2391, %v2328, %v2410
      %v2430 = vsel %vm2392, %v2333, %v2411
      %v2431 = vsel %vm2393, %v2336, %v2412
      %v2432 = vsel %vm2394, %v2341, %v2413
      %v2433 = vsel %vm2395, %v2344, %v2414
      %v2434 = vsel %vm2396, %v2349, %v2415
      %v2435 = vsel %vm2397, %v2352, %v2416
      %v2436 = vsel %vm2398, %v2357, %v2417
      %v2437 = vsel %vm2399, %v2360, %v2418
      %v2438 = vsel %vm2400, %v2365, %v2419
      %v2439 = vsel %vm2401, %v2368, %v2420
      %v2440 = vsel %vm2402, %v2373, %v2421
      %v2441 = vsel %vm2403, %v2376, %v2422
      %v2442 = vsel %vm2404, %v2381, %v2423
      %v2443 = vsel %vm584, %v2424, 0.0
      %v2444 = vsel %vm585, %v2425, 0.0
      %v2445 = vsel %vm586, %v2426, 0.0
      %v2446 = vsel %vm587, %v2427, 0.0
      %v2447 = vsel %vm588, %v2428, 0.0
      %v2448 = vsel %vm589, %v2429, 0.0
      %v2449 = vsel %vm590, %v2430, 0.0
      %v2450 = vsel %vm591, %v2431, 0.0
      %v2451 = vsel %vm592, %v2432, 0.0
      %v2452 = vsel %vm593, %v2433, 0.0
      %v2453 = vsel %vm594, %v2434, 0.0
      %v2454 = vsel %vm595, %v2435, 0.0
      %v2455 = vsel %vm596, %v2436, 0.0
      %v2456 = vsel %vm597, %v2437, 0.0
      %v2457 = vsel %vm598, %v2438, 0.0
      %v2458 = vsel %vm599, %v2439, 0.0
      %v2459 = vsel %vm600, %v2440, 0.0
      %v2460 = vsel %vm601, %v2441, 0.0
      %v2461 = vsel %vm602, %v2442, 0.0
      %v2462 = vrot.slane %v2443, 7
      %v2463 = vrot.slane %v2444, 7
      %v2464 = vrot.slane %v2445, 7
      %v2465 = vrot.slane %v2446, 7
      %v2466 = vrot.slane %v2447, 7
      %v2467 = vrot.slane %v2448, 7
      %v2468 = vrot.slane %v2449, 7
      %v2469 = vrot.slane %v2450, 7
      %v2470 = vrot.slane %v2451, 7
      %v2471 = vrot.slane %v2452, 7
      %v2472 = vrot.slane %v2453, 7
      %v2473 = vrot.slane %v2454, 7
      %v2474 = vrot.slane %v2455, 7
      %v2475 = vrot.slane %v2456, 7
      %v2476 = vrot.slane %v2457, 7
      %v2477 = vrot.slane %v2458, 7
      %v2478 = vrot.slane %v2459, 7
      %v2479 = vrot.slane %v2460, 7
      %v2480 = vrot.slane %v2461, 7
      %v2481 = vsel %vm641, %v2479, %v2480
      %v2482 = vsel %vm641, %v2478, %v2479
      %v2483 = vsel %vm641, %v2477, %v2478
      %v2484 = vsel %vm641, %v2476, %v2477
      %v2485 = vsel %vm641, %v2475, %v2476
      %v2486 = vsel %vm641, %v2474, %v2475
      %v2487 = vsel %vm641, %v2473, %v2474
      %v2488 = vsel %vm641, %v2472, %v2473
      %v2489 = vsel %vm641, %v2471, %v2472
      %v2490 = vsel %vm641, %v2470, %v2471
      %v2491 = vsel %vm641, %v2469, %v2470
      %v2492 = vsel %vm641, %v2468, %v2469
      %v2493 = vsel %vm641, %v2467, %v2468
      %v2494 = vsel %vm641, %v2466, %v2467
      %v2495 = vsel %vm641, %v2465, %v2466
      %v2496 = vsel %vm641, %v2464, %v2465
      %v2497 = vsel %vm641, %v2463, %v2464
      %v2498 = vsel %vm641, %v2462, %v2463
      %v2499 = vsel %vm641, %v2480, %v2462
      %v2500 = vrot.slane %v2443, 1
      %v2501 = vrot.slane %v2444, 1
      %v2502 = vrot.slane %v2445, 1
      %v2503 = vrot.slane %v2446, 1
      %v2504 = vrot.slane %v2447, 1
      %v2505 = vrot.slane %v2448, 1
      %v2506 = vrot.slane %v2449, 1
      %v2507 = vrot.slane %v2450, 1
      %v2508 = vrot.slane %v2451, 1
      %v2509 = vrot.slane %v2452, 1
      %v2510 = vrot.slane %v2453, 1
      %v2511 = vrot.slane %v2454, 1
      %v2512 = vrot.slane %v2455, 1
      %v2513 = vrot.slane %v2456, 1
      %v2514 = vrot.slane %v2457, 1
      %v2515 = vrot.slane %v2458, 1
      %v2516 = vrot.slane %v2459, 1
      %v2517 = vrot.slane %v2460, 1
      %v2518 = vrot.slane %v2461, 1
      %v2519 = vsel %vm680, %v2517, %v2518
      %v2520 = vsel %vm680, %v2516, %v2517
      %v2521 = vsel %vm680, %v2515, %v2516
      %v2522 = vsel %vm680, %v2514, %v2515
      %v2523 = vsel %vm680, %v2513, %v2514
      %v2524 = vsel %vm680, %v2512, %v2513
      %v2525 = vsel %vm680, %v2511, %v2512
      %v2526 = vsel %vm680, %v2510, %v2511
      %v2527 = vsel %vm680, %v2509, %v2510
      %v2528 = vsel %vm680, %v2508, %v2509
      %v2529 = vsel %vm680, %v2507, %v2508
      %v2530 = vsel %vm680, %v2506, %v2507
      %v2531 = vsel %vm680, %v2505, %v2506
      %v2532 = vsel %vm680, %v2504, %v2505
      %v2533 = vsel %vm680, %v2503, %v2504
      %v2534 = vsel %vm680, %v2502, %v2503
      %v2535 = vsel %vm680, %v2501, %v2502
      %v2536 = vsel %vm680, %v2500, %v2501
      %v2537 = vsel %vm680, %v2518, %v2500
      %v2538 = vpack.c.bf16 %v2498, %v2499
      %v2539 = vpack.c.bf16 %v2444, %v2443
      %v2540 = vpack.c.bf16 %v2535, %v2536
      %v2541 = vpack.c.bf16 %v2496, %v2497
      %v2542 = vpack.c.bf16 %v2446, %v2445
      %v2543 = vpack.c.bf16 %v2533, %v2534
      %v2544 = vpack.c.bf16 %v2494, %v2495
      %v2545 = vpack.c.bf16 %v2448, %v2447
      %v2546 = vpack.c.bf16 %v2531, %v2532
      %v2547 = vpack.c.bf16 %v2492, %v2493
      %v2548 = vpack.c.bf16 %v2450, %v2449
      %v2549 = vpack.c.bf16 %v2529, %v2530
      %v2550 = vpack.c.bf16 %v2490, %v2491
      %v2551 = vpack.c.bf16 %v2452, %v2451
      %v2552 = vpack.c.bf16 %v2527, %v2528
      %v2553 = vpack.c.bf16 %v2488, %v2489
      %v2554 = vpack.c.bf16 %v2454, %v2453
      %v2555 = vpack.c.bf16 %v2525, %v2526
      %v2556 = vpack.c.bf16 %v2486, %v2487
      %v2557 = vpack.c.bf16 %v2456, %v2455
      %v2558 = vpack.c.bf16 %v2523, %v2524
      %v2559 = vpack.c.bf16 %v2484, %v2485
      %v2560 = vpack.c.bf16 %v2458, %v2457
      %v2561 = vpack.c.bf16 %v2521, %v2522
      %v2562 = vpack.c.bf16 %v2482, %v2483
      %v2563 = vpack.c.bf16 %v2460, %v2459
      %v2564 = vpack.c.bf16 %v2519, %v2520
      %v2565 = vpack.c.bf16 %v2481, %v2481
      %v2566 = vpack.c.bf16 %v2461, %v2461
      %v2567 = vpack.c.bf16 %v2537, %v2537
      %s2568 = scalar_lea.vmem %s3, 192
      %v2569 = vld [vmem:[%s2568] sm:$0xf]
      %v2570 = vld [vmem:[%s2568 + $0x4] sm:$0xf]
      %v2571 = vld [vmem:[%s2568 + $0x8] sm:$0xf]
      %v2572 = vld [vmem:[%s2568 + $0xc] sm:$0xf]
      %v2573 = vld [vmem:[%s2568 + $0x10] sm:$0xf]
      %v2574 = vld [vmem:[%s2568 + $0x14] sm:$0xf]
      %v2575 = vld [vmem:[%s2568 + $0x18] sm:$0xf]
      %v2576 = vld [vmem:[%s2568 + $0x1c] sm:$0xf]
      %v2577 = vld [vmem:[%s2568 + $0x20] sm:$0xf]
      %v2578 = vld [vmem:[%s2568 + $0x24] sm:$0xf]
      %v2579 = vld [vmem:[%s2568 + $0x28] sm:$0xf]
      %v2580 = vld [vmem:[%s2568 + $0x2c] sm:$0xf]
      %v2581 = vld [vmem:[%s2568 + $0x30] sm:$0xf]
      %v2582 = vld [vmem:[%s2568 + $0x34] sm:$0xf]
      %v2583 = vld [vmem:[%s2568 + $0x38] sm:$0xf]
      %v2584 = vld [vmem:[%s2568 + $0x3c] sm:$0xf]
      %v2585 = vld [vmem:[%s2568 + $0x40] sm:$0xf]
      %v2586 = vld [vmem:[%s2568 + $0x44] sm:$0xf]
      %v2587 = vld [vmem:[%s2568 + $0x48] sm:$0xf]
      %v2588 = vld [vmem:[%s2568 + $0x4c] sm:$0xf]
      %v2589 = vld [vmem:[%s2568 + $0x50] sm:$0xf]
      %v2590 = vld [vmem:[%s2568 + $0x54] sm:$0xf]
      %v2591 = vld [vmem:[%s2568 + $0x58] sm:$0xf]
      %v2592 = vld [vmem:[%s2568 + $0x5c] sm:$0xf]
      %v2593 = vld [vmem:[%s2568 + $0x60] sm:$0xf]
      %v2594 = vld [vmem:[%s2568 + $0x64] sm:$0xf]
      %v2595 = vld [vmem:[%s2568 + $0x68] sm:$0xf]
      %v2596 = vld [vmem:[%s2568 + $0x6c] sm:$0xf]
      %v2597 = vld [vmem:[%s2568 + $0x70] sm:$0xf]
      %v2598 = vld [vmem:[%s2568 + $0x74] sm:$0xf]
      %v2599 = vld [vmem:[%s2568 + $0x78] sm:$0xf]
      %v2600 = vld [vmem:[%s2568 + $0x7c] sm:$0xf]
      %v2601 = vld [vmem:[%s2568 + $0x80] sm:$0xf]
      %v2602 = vld [vmem:[%s2568 + $0x84] sm:$0xf]
      %v2603 = vld [vmem:[%s2568 + $0x88] sm:$0xf]
      %v2604 = vld [vmem:[%s2568 + $0x8c] sm:$0xf]
      %v2605 = vld [vmem:[%s2568 + $0x90] sm:$0xf]
      %v2606 = vld [vmem:[%s2568 + $0x94] sm:$0xf]
      %v2607 = vld [vmem:[%s2568 + $0x98] sm:$0xf]
      %v2608 = vld [vmem:[%s2568 + $0x9c] sm:$0xf]
      %v2609 = vld [vmem:[%s2568 + $0xa0] sm:$0xf]
      %v2610 = vld [vmem:[%s2568 + $0xa4] sm:$0xf]
      %v2611 = vld [vmem:[%s2568 + $0xa8] sm:$0xf]
      %v2612 = vld [vmem:[%s2568 + $0xac] sm:$0xf]
      %v2613 = vld [vmem:[%s2568 + $0xb0] sm:$0xf]
      %v2614 = vld [vmem:[%s2568 + $0xb4] sm:$0xf]
      %v2615 = vld [vmem:[%s2568 + $0xb8] sm:$0xf]
      %v2616 = vld [vmem:[%s2568 + $0xbc] sm:$0xf]
      %s2617 = scalar_lea.vmem %s4, 1
      %v2618 = vld [vmem:[%s2617] sm:$0x1]
      %v2620 = vlaneseq
      %v2621 = vshrl.u32 %v2620, 7
      %v2622 = vsub.s32 0, %v2621
      %v2623 = vrot.slane %v2618, %v2622
      %v2673 = vunpack.c.l.b16 %v2569
      %v2674 = vunpack.c.l.b16 %v2570
      %v2675 = vunpack.c.l.b16 %v2571
      %v2676 = vunpack.c.l.b16 %v2572
      %v2677 = vunpack.c.l.b16 %v2573
      %v2678 = vunpack.c.l.b16 %v2574
      %v2679 = vunpack.c.l.b16 %v2575
      %v2680 = vunpack.c.l.b16 %v2576
      %v2681 = vunpack.c.l.b16 %v2577
      %v2682 = vunpack.c.l.b16 %v2578
      %v2683 = vunpack.c.l.b16 %v2579
      %v2684 = vunpack.c.l.b16 %v2580
      %v2685 = vunpack.c.l.b16 %v2581
      %v2686 = vunpack.c.l.b16 %v2582
      %v2687 = vunpack.c.l.b16 %v2583
      %v2688 = vunpack.c.l.b16 %v2584
      %v2689 = vunpack.c.l.b16 %v2585
      %v2690 = vunpack.c.l.b16 %v2586
      %v2691 = vunpack.c.l.b16 %v2587
      %v2692 = vunpack.c.l.b16 %v2588
      %v2693 = vunpack.c.l.b16 %v2589
      %v2694 = vunpack.c.l.b16 %v2590
      %v2695 = vunpack.c.l.b16 %v2591
      %v2696 = vunpack.c.l.b16 %v2592
      %v2697 = vunpack.c.l.b16 %v2593
      %v2698 = vunpack.c.l.b16 %v2594
      %v2699 = vunpack.c.l.b16 %v2595
      %v2700 = vunpack.c.l.b16 %v2596
      %v2701 = vunpack.c.l.b16 %v2597
      %v2702 = vunpack.c.l.b16 %v2598
      %v2703 = vunpack.c.l.b16 %v2599
      %v2704 = vunpack.c.l.b16 %v2600
      %v2705 = vunpack.c.l.b16 %v2601
      %v2706 = vunpack.c.l.b16 %v2602
      %v2707 = vunpack.c.l.b16 %v2603
      %v2708 = vunpack.c.l.b16 %v2604
      %v2709 = vunpack.c.l.b16 %v2605
      %v2710 = vunpack.c.l.b16 %v2606
      %v2711 = vunpack.c.l.b16 %v2607
      %v2712 = vunpack.c.l.b16 %v2608
      %v2713 = vunpack.c.l.b16 %v2609
      %v2714 = vunpack.c.l.b16 %v2610
      %v2715 = vunpack.c.l.b16 %v2611
      %v2716 = vunpack.c.l.b16 %v2612
      %v2717 = vunpack.c.l.b16 %v2613
      %v2718 = vunpack.c.l.b16 %v2614
      %v2719 = vunpack.c.l.b16 %v2615
      %v2720 = vunpack.c.l.b16 %v2616
      %v2721 = vpack.c.b16 %v2674, %v2673
      %v2722 = vpack.c.b16 %v2676, %v2675
      %v2723 = vpack.c.b16 %v2678, %v2677
      %v2724 = vpack.c.b16 %v2680, %v2679
      %v2725 = vpack.c.b16 %v2682, %v2681
      %v2726 = vpack.c.b16 %v2684, %v2683
      %v2727 = vpack.c.b16 %v2686, %v2685
      %v2728 = vpack.c.b16 %v2688, %v2687
      %v2729 = vpack.c.b16 %v2690, %v2689
      %v2730 = vpack.c.b16 %v2692, %v2691
      %v2731 = vpack.c.b16 %v2694, %v2693
      %v2732 = vpack.c.b16 %v2696, %v2695
      %v2733 = vpack.c.b16 %v2698, %v2697
      %v2734 = vpack.c.b16 %v2700, %v2699
      %v2735 = vpack.c.b16 %v2702, %v2701
      %v2736 = vpack.c.b16 %v2704, %v2703
      %v2737 = vpack.c.b16 %v2706, %v2705
      %v2738 = vpack.c.b16 %v2708, %v2707
      %v2739 = vpack.c.b16 %v2710, %v2709
      %v2740 = vpack.c.b16 %v2712, %v2711
      %v2741 = vpack.c.b16 %v2714, %v2713
      %v2742 = vpack.c.b16 %v2716, %v2715
      %v2743 = vpack.c.b16 %v2718, %v2717
      %v2744 = vpack.c.b16 %v2720, %v2719
      %2769 = vmatprep.subr.bf16.mxu0 0
      %2770 = vmatpush1.bf16.msra.mxu0 %v2721
      %2771 = vmatprep.subr.bf16.mxu0 0
      %2772 = vmatpush1.bf16.msra.mxu0 %v2722
      %2773 = vmatprep.subr.bf16.mxu0 0
      %2774 = vmatpush1.bf16.msra.mxu0 %v2723
      %2775 = vmatprep.subr.bf16.mxu0 0
      %2776 = vmatpush1.bf16.msra.mxu0 %v2724
      %2777 = vmatprep.subr.bf16.mxu0 0
      %2778 = vmatpush1.bf16.msra.mxu0 %v2725
      %2779 = vmatprep.subr.bf16.mxu0 0
      %2780 = vmatpush1.bf16.msra.mxu0 %v2726
      %2781 = vmatprep.subr.bf16.mxu0 0
      %2782 = vmatpush1.bf16.msra.mxu0 %v2727
      %2783 = vmatprep.subr.bf16.mxu0 0
      %2784 = vmatpush1.bf16.msra.mxu0 %v2728
      %2785 = vmatprep.subr.bf16.mxu0 0
      %2786 = vmatpush1.bf16.msra.mxu0 %v2729
      %2787 = vmatprep.subr.bf16.mxu0 0
      %2788 = vmatpush1.bf16.msra.mxu0 %v2730
      %2789 = vmatprep.subr.bf16.mxu0 0
      %2790 = vmatpush1.bf16.msra.mxu0 %v2731
      %2791 = vmatprep.subr.bf16.mxu0 0
      %2792 = vmatpush1.bf16.msra.mxu0 %v2732
      %2793 = vmatprep.subr.bf16.mxu0 0
      %2794 = vmatpush1.bf16.msra.mxu0 %v2733
      %2795 = vmatprep.subr.bf16.mxu0 0
      %2796 = vmatpush1.bf16.msra.mxu0 %v2734
      %2797 = vmatprep.subr.bf16.mxu0 0
      %2798 = vmatpush1.bf16.msra.mxu0 %v2735
      %2799 = vmatprep.subr.bf16.mxu0 0
      %2800 = vmatpush1.bf16.msra.mxu0 %v2736
      %2801 = vmatprep.mubr.bf16.mxu0 %v2539
      %2802 = vmatmul.mubr.bf16.gmra.mrb[0].mxu0 %v2538
      %v2803 = vpop.f32.mrb[0].mxu0
      %v2804 = vadd.f32 %v2623, %v2803
      %v2805 = vpop.f32.mrb[0].mxu0
      %v2806 = vpop.f32.mrb[0].mxu0
      %v2807 = vadd.f32 %v2623, %v2806
      %v2808 = vpop.f32.mrb[0].mxu0
      %2809 = vmatprep.mubr.bf16.mxu0 %v2542
      %2810 = vmatmul.mubr.bf16.gmra.mrb[0].mxu0 %v2541
      %v2811 = vpop.f32.mrb[0].mxu0
      %v2812 = vadd.f32 %v2623, %v2811
      %v2813 = vpop.f32.mrb[0].mxu0
      %v2814 = vpop.f32.mrb[0].mxu0
      %v2815 = vadd.f32 %v2623, %v2814
      %v2816 = vpop.f32.mrb[0].mxu0
      %2817 = vmatprep.mubr.bf16.mxu0 %v2545
      %2818 = vmatmul.mubr.bf16.gmra.mrb[0].mxu0 %v2544
      %v2819 = vpop.f32.mrb[0].mxu0
      %v2820 = vadd.f32 %v2623, %v2819
      %v2821 = vpop.f32.mrb[0].mxu0
      %v2822 = vpop.f32.mrb[0].mxu0
      %v2823 = vadd.f32 %v2623, %v2822
      %v2824 = vpop.f32.mrb[0].mxu0
      %2825 = vmatprep.mubr.bf16.mxu0 %v2548
      %2826 = vmatmul.mubr.bf16.gmra.mrb[0].mxu0 %v2547
      %v2827 = vpop.f32.mrb[0].mxu0
      %v2828 = vadd.f32 %v2623, %v2827
      %v2829 = vpop.f32.mrb[0].mxu0
      %v2830 = vpop.f32.mrb[0].mxu0
      %v2831 = vadd.f32 %v2623, %v2830
      %v2832 = vpop.f32.mrb[0].mxu0
      %2833 = vmatprep.mubr.bf16.mxu0 %v2551
      %2834 = vmatmul.mubr.bf16.gmra.mrb[0].mxu0 %v2550
      %v2835 = vpop.f32.mrb[0].mxu0
      %v2836 = vadd.f32 %v2623, %v2835
      %v2837 = vpop.f32.mrb[0].mxu0
      %v2838 = vpop.f32.mrb[0].mxu0
      %v2839 = vadd.f32 %v2623, %v2838
      %v2840 = vpop.f32.mrb[0].mxu0
      %2841 = vmatprep.mubr.bf16.mxu0 %v2554
      %2842 = vmatmul.mubr.bf16.gmra.mrb[0].mxu0 %v2553
      %v2843 = vpop.f32.mrb[0].mxu0
      %v2844 = vadd.f32 %v2623, %v2843
      %v2845 = vpop.f32.mrb[0].mxu0
      %v2846 = vpop.f32.mrb[0].mxu0
      %v2847 = vadd.f32 %v2623, %v2846
      %v2848 = vpop.f32.mrb[0].mxu0
      %2849 = vmatprep.mubr.bf16.mxu0 %v2557
      %2850 = vmatmul.mubr.bf16.gmra.mrb[0].mxu0 %v2556
      %v2851 = vpop.f32.mrb[0].mxu0
      %v2852 = vadd.f32 %v2623, %v2851
      %v2853 = vpop.f32.mrb[0].mxu0
      %v2854 = vpop.f32.mrb[0].mxu0
      %v2855 = vadd.f32 %v2623, %v2854
      %v2856 = vpop.f32.mrb[0].mxu0
      %2857 = vmatprep.mubr.bf16.mxu0 %v2560
      %2858 = vmatmul.mubr.bf16.gmra.mrb[0].mxu0 %v2559
      %v2859 = vpop.f32.mrb[0].mxu0
      %v2860 = vadd.f32 %v2623, %v2859
      %v2861 = vpop.f32.mrb[0].mxu0
      %v2862 = vpop.f32.mrb[0].mxu0
      %v2863 = vadd.f32 %v2623, %v2862
      %v2864 = vpop.f32.mrb[0].mxu0
      %2865 = vmatprep.mubr.bf16.mxu0 %v2563
      %2866 = vmatmul.mubr.bf16.gmra.mrb[0].mxu0 %v2562
      %v2867 = vpop.f32.mrb[0].mxu0
      %v2868 = vadd.f32 %v2623, %v2867
      %v2869 = vpop.f32.mrb[0].mxu0
      %v2870 = vpop.f32.mrb[0].mxu0
      %v2871 = vadd.f32 %v2623, %v2870
      %v2872 = vpop.f32.mrb[0].mxu0
      %2873 = vmatprep.mubr.bf16.mxu0 %v2566
      %2874 = vmatmul.mubr.bf16.gmra.mrb[0].mxu0 %v2565
      %v2875 = vpop.f32.mrb[0].mxu0
      %v2876 = vadd.f32 %v2623, %v2875
      %v2877 = vpop.f32.mrb[0].mxu0
      %v2878 = vpop.f32.mrb[0].mxu0
      %v2879 = vpop.f32.mrb[0].mxu0
      %2880 = vdwg.mxu0
      %2881 = vmatprep.subr.bf16.mxu0 0
      %2882 = vmatpush1.bf16.msra.mxu0 %v2737
      %2883 = vmatprep.subr.bf16.mxu0 0
      %2884 = vmatpush1.bf16.msra.mxu0 %v2738
      %2885 = vmatprep.subr.bf16.mxu0 0
      %2886 = vmatpush1.bf16.msra.mxu0 %v2739
      %2887 = vmatprep.subr.bf16.mxu0 0
      %2888 = vmatpush1.bf16.msra.mxu0 %v2740
      %2889 = vmatprep.subr.bf16.mxu0 0
      %2890 = vmatpush1.bf16.msra.mxu0 %v2741
      %2891 = vmatprep.subr.bf16.mxu0 0
      %2892 = vmatpush1.bf16.msra.mxu0 %v2742
      %2893 = vmatprep.subr.bf16.mxu0 0
      %2894 = vmatpush1.bf16.msra.mxu0 %v2743
      %2895 = vmatprep.subr.bf16.mxu0 0
      %2896 = vmatpush1.bf16.msra.mxu0 %v2744
      %2897 = vmatprep.subr.bf16.mxu0 0
      %2898 = vmatpush1.bf16.msra.mxu0 0
      %2899 = vmatprep.subr.bf16.mxu0 0
      %2900 = vmatpush1.bf16.msra.mxu0 0
      %2901 = vmatprep.subr.bf16.mxu0 0
      %2902 = vmatpush1.bf16.msra.mxu0 0
      %2903 = vmatprep.subr.bf16.mxu0 0
      %2904 = vmatpush1.bf16.msra.mxu0 0
      %2905 = vmatprep.subr.bf16.mxu0 0
      %2906 = vmatpush1.bf16.msra.mxu0 0
      %2907 = vmatprep.subr.bf16.mxu0 0
      %2908 = vmatpush1.bf16.msra.mxu0 0
      %2909 = vmatprep.subr.bf16.mxu0 0
      %2910 = vmatpush1.bf16.msra.mxu0 0
      %2911 = vmatprep.subr.bf16.mxu0 0
      %2912 = vmatpush1.bf16.msra.mxu0 0
      %2913 = vmatprep.mubr.bf16.mxu0 0
      %2914 = vmatmul.mubr.bf16.gmra.mrb[0].mxu0 %v2540
      %v2915 = vpop.f32.mrb[0].mxu0
      %v2916 = vadd.f32 %v2804, %v2915
      %v2917 = vpop.f32.mrb[0].mxu0
      %v2918 = vpop.f32.mrb[0].mxu0
      %v2919 = vadd.f32 %v2807, %v2918
      %v2920 = vpop.f32.mrb[0].mxu0
      %2921 = vmatprep.mubr.bf16.mxu0 0
      %2922 = vmatmul.mubr.bf16.gmra.mrb[0].mxu0 %v2543
      %v2923 = vpop.f32.mrb[0].mxu0
      %v2924 = vadd.f32 %v2812, %v2923
      %v2925 = vpop.f32.mrb[0].mxu0
      %v2926 = vpop.f32.mrb[0].mxu0
      %v2927 = vadd.f32 %v2815, %v2926
      %v2928 = vpop.f32.mrb[0].mxu0
      %2929 = vmatprep.mubr.bf16.mxu0 0
      %2930 = vmatmul.mubr.bf16.gmra.mrb[0].mxu0 %v2546
      %v2931 = vpop.f32.mrb[0].mxu0
      %v2932 = vadd.f32 %v2820, %v2931
      %v2933 = vpop.f32.mrb[0].mxu0
      %v2934 = vpop.f32.mrb[0].mxu0
      %v2935 = vadd.f32 %v2823, %v2934
      %v2936 = vpop.f32.mrb[0].mxu0
      %2937 = vmatprep.mubr.bf16.mxu0 0
      %2938 = vmatmul.mubr.bf16.gmra.mrb[0].mxu0 %v2549
      %v2939 = vpop.f32.mrb[0].mxu0
      %v2940 = vadd.f32 %v2828, %v2939
      %v2941 = vpop.f32.mrb[0].mxu0
      %v2942 = vpop.f32.mrb[0].mxu0
      %v2943 = vadd.f32 %v2831, %v2942
      %v2944 = vpop.f32.mrb[0].mxu0
      %2945 = vmatprep.mubr.bf16.mxu0 0
      %2946 = vmatmul.mubr.bf16.gmra.mrb[0].mxu0 %v2552
      %v2947 = vpop.f32.mrb[0].mxu0
      %v2948 = vadd.f32 %v2836, %v2947
      %v2949 = vpop.f32.mrb[0].mxu0
      %v2950 = vpop.f32.mrb[0].mxu0
      %v2951 = vadd.f32 %v2839, %v2950
      %v2952 = vpop.f32.mrb[0].mxu0
      %2953 = vmatprep.mubr.bf16.mxu0 0
      %2954 = vmatmul.mubr.bf16.gmra.mrb[0].mxu0 %v2555
      %v2955 = vpop.f32.mrb[0].mxu0
      %v2956 = vadd.f32 %v2844, %v2955
      %v2957 = vpop.f32.mrb[0].mxu0
      %v2958 = vpop.f32.mrb[0].mxu0
      %v2959 = vadd.f32 %v2847, %v2958
      %v2960 = vpop.f32.mrb[0].mxu0
      %2961 = vmatprep.mubr.bf16.mxu0 0
      %2962 = vmatmul.mubr.bf16.gmra.mrb[0].mxu0 %v2558
      %v2963 = vpop.f32.mrb[0].mxu0
      %v2964 = vadd.f32 %v2852, %v2963
      %v2965 = vpop.f32.mrb[0].mxu0
      %v2966 = vpop.f32.mrb[0].mxu0
      %v2967 = vadd.f32 %v2855, %v2966
      %v2968 = vpop.f32.mrb[0].mxu0
      %2969 = vmatprep.mubr.bf16.mxu0 0
      %2970 = vmatmul.mubr.bf16.gmra.mrb[0].mxu0 %v2561
      %v2971 = vpop.f32.mrb[0].mxu0
      %v2972 = vadd.f32 %v2860, %v2971
      %v2973 = vpop.f32.mrb[0].mxu0
      %v2974 = vpop.f32.mrb[0].mxu0
      %v2975 = vadd.f32 %v2863, %v2974
      %v2976 = vpop.f32.mrb[0].mxu0
      %2977 = vmatprep.mubr.bf16.mxu0 0
      %2978 = vmatmul.mubr.bf16.gmra.mrb[0].mxu0 %v2564
      %v2979 = vpop.f32.mrb[0].mxu0
      %v2980 = vadd.f32 %v2868, %v2979
      %v2981 = vpop.f32.mrb[0].mxu0
      %v2982 = vpop.f32.mrb[0].mxu0
      %v2983 = vadd.f32 %v2871, %v2982
      %v2984 = vpop.f32.mrb[0].mxu0
      %2985 = vmatprep.mubr.bf16.mxu0 0
      %2986 = vmatmul.mubr.bf16.gmra.mrb[0].mxu0 %v2567
      %v2987 = vpop.f32.mrb[0].mxu0
      %v2988 = vadd.f32 %v2876, %v2987
      %v2989 = vpop.f32.mrb[0].mxu0
      %v2990 = vpop.f32.mrb[0].mxu0
      %v2991 = vpop.f32.mrb[0].mxu0
      %2992 = vdwg.mxu0
      %v2993 = vadd.f32 %v2916, %v1758
      %v2994 = vadd.f32 %v2919, %v1759
      %v2995 = vadd.f32 %v2924, %v1760
      %v2996 = vadd.f32 %v2927, %v1761
      %v2997 = vadd.f32 %v2932, %v1762
      %v2998 = vadd.f32 %v2935, %v1763
      %v2999 = vadd.f32 %v2940, %v1764
      %v3000 = vadd.f32 %v2943, %v1765
      %v3001 = vadd.f32 %v2948, %v1766
      %v3002 = vadd.f32 %v2951, %v1767
      %v3003 = vadd.f32 %v2956, %v1768
      %v3004 = vadd.f32 %v2959, %v1769
      %v3005 = vadd.f32 %v2964, %v1770
      %v3006 = vadd.f32 %v2967, %v1771
      %v3007 = vadd.f32 %v2972, %v1772
      %v3008 = vadd.f32 %v2975, %v1773
      %v3009 = vadd.f32 %v2980, %v1774
      %v3010 = vadd.f32 %v2983, %v1775
      %v3011 = vadd.f32 %v2988, %v1776
      %vm3012 = vcmp.ge.f32.partialorder %v2993, 0.0
      %vm3013 = vcmp.ge.f32.partialorder %v2994, 0.0
      %vm3014 = vcmp.ge.f32.partialorder %v2995, 0.0
      %vm3015 = vcmp.ge.f32.partialorder %v2996, 0.0
      %vm3016 = vcmp.ge.f32.partialorder %v2997, 0.0
      %vm3017 = vcmp.ge.f32.partialorder %v2998, 0.0
      %vm3018 = vcmp.ge.f32.partialorder %v2999, 0.0
      %vm3019 = vcmp.ge.f32.partialorder %v3000, 0.0
      %vm3020 = vcmp.ge.f32.partialorder %v3001, 0.0
      %vm3021 = vcmp.ge.f32.partialorder %v3002, 0.0
      %vm3022 = vcmp.ge.f32.partialorder %v3003, 0.0
      %vm3023 = vcmp.ge.f32.partialorder %v3004, 0.0
      %vm3024 = vcmp.ge.f32.partialorder %v3005, 0.0
      %vm3025 = vcmp.ge.f32.partialorder %v3006, 0.0
      %vm3026 = vcmp.ge.f32.partialorder %v3007, 0.0
      %vm3027 = vcmp.ge.f32.partialorder %v3008, 0.0
      %vm3028 = vcmp.ge.f32.partialorder %v3009, 0.0
      %vm3029 = vcmp.ge.f32.partialorder %v3010, 0.0
      %vm3030 = vcmp.ge.f32.partialorder %v3011, 0.0
      %v3031 = vmul.f32 %v2993, 0.1
      %v3032 = vmul.f32 %v2994, 0.1
      %v3033 = vmul.f32 %v2995, 0.1
      %v3034 = vmul.f32 %v2996, 0.1
      %v3035 = vmul.f32 %v2997, 0.1
      %v3036 = vmul.f32 %v2998, 0.1
      %v3037 = vmul.f32 %v2999, 0.1
      %v3038 = vmul.f32 %v3000, 0.1
      %v3039 = vmul.f32 %v3001, 0.1
      %v3040 = vmul.f32 %v3002, 0.1
      %v3041 = vmul.f32 %v3003, 0.1
      %v3042 = vmul.f32 %v3004, 0.1
      %v3043 = vmul.f32 %v3005, 0.1
      %v3044 = vmul.f32 %v3006, 0.1
      %v3045 = vmul.f32 %v3007, 0.1
      %v3046 = vmul.f32 %v3008, 0.1
      %v3047 = vmul.f32 %v3009, 0.1
      %v3048 = vmul.f32 %v3010, 0.1
      %v3049 = vmul.f32 %v3011, 0.1
      %v3050 = vsel %vm3012, %v2993, %v3031
      %v3051 = vsel %vm3013, %v2994, %v3032
      %v3052 = vsel %vm3014, %v2995, %v3033
      %v3053 = vsel %vm3015, %v2996, %v3034
      %v3054 = vsel %vm3016, %v2997, %v3035
      %v3055 = vsel %vm3017, %v2998, %v3036
      %v3056 = vsel %vm3018, %v2999, %v3037
      %v3057 = vsel %vm3019, %v3000, %v3038
      %v3058 = vsel %vm3020, %v3001, %v3039
      %v3059 = vsel %vm3021, %v3002, %v3040
      %v3060 = vsel %vm3022, %v3003, %v3041
      %v3061 = vsel %vm3023, %v3004, %v3042
      %v3062 = vsel %vm3024, %v3005, %v3043
      %v3063 = vsel %vm3025, %v3006, %v3044
      %v3064 = vsel %vm3026, %v3007, %v3045
      %v3065 = vsel %vm3027, %v3008, %v3046
      %v3066 = vsel %vm3028, %v3009, %v3047
      %v3067 = vsel %vm3029, %v3010, %v3048
      %v3068 = vsel %vm3030, %v3011, %v3049
      %v3069 = vsel %vm584, %v3050, 0.0
      %v3070 = vsel %vm585, %v3051, 0.0
      %v3071 = vsel %vm586, %v3052, 0.0
      %v3072 = vsel %vm587, %v3053, 0.0
      %v3073 = vsel %vm588, %v3054, 0.0
      %v3074 = vsel %vm589, %v3055, 0.0
      %v3075 = vsel %vm590, %v3056, 0.0
      %v3076 = vsel %vm591, %v3057, 0.0
      %v3077 = vsel %vm592, %v3058, 0.0
      %v3078 = vsel %vm593, %v3059, 0.0
      %v3079 = vsel %vm594, %v3060, 0.0
      %v3080 = vsel %vm595, %v3061, 0.0
      %v3081 = vsel %vm596, %v3062, 0.0
      %v3082 = vsel %vm597, %v3063, 0.0
      %v3083 = vsel %vm598, %v3064, 0.0
      %v3084 = vsel %vm599, %v3065, 0.0
      %v3085 = vsel %vm600, %v3066, 0.0
      %v3086 = vsel %vm601, %v3067, 0.0
      %v3087 = vsel %vm602, %v3068, 0.0
      %v3088 = vrot.slane %v3069, 3
      %v3089 = vrot.slane %v3070, 3
      %v3090 = vrot.slane %v3071, 3
      %v3091 = vrot.slane %v3072, 3
      %v3092 = vrot.slane %v3073, 3
      %v3093 = vrot.slane %v3074, 3
      %v3094 = vrot.slane %v3075, 3
      %v3095 = vrot.slane %v3076, 3
      %v3096 = vrot.slane %v3077, 3
      %v3097 = vrot.slane %v3078, 3
      %v3098 = vrot.slane %v3079, 3
      %v3099 = vrot.slane %v3080, 3
      %v3100 = vrot.slane %v3081, 3
      %v3101 = vrot.slane %v3082, 3
      %v3102 = vrot.slane %v3083, 3
      %v3103 = vrot.slane %v3084, 3
      %v3104 = vrot.slane %v3085, 3
      %v3105 = vrot.slane %v3086, 3
      %v3106 = vrot.slane %v3087, 3
      %v3107 = vsel %vm1911, %v3105, %v3106
      %v3108 = vsel %vm1911, %v3104, %v3105
      %v3109 = vsel %vm1911, %v3103, %v3104
      %v3110 = vsel %vm1911, %v3102, %v3103
      %v3111 = vsel %vm1911, %v3101, %v3102
      %v3112 = vsel %vm1911, %v3100, %v3101
      %v3113 = vsel %vm1911, %v3099, %v3100
      %v3114 = vsel %vm1911, %v3098, %v3099
      %v3115 = vsel %vm1911, %v3097, %v3098
      %v3116 = vsel %vm1911, %v3096, %v3097
      %v3117 = vsel %vm1911, %v3095, %v3096
      %v3118 = vsel %vm1911, %v3094, %v3095
      %v3119 = vsel %vm1911, %v3093, %v3094
      %v3120 = vsel %vm1911, %v3092, %v3093
      %v3121 = vsel %vm1911, %v3091, %v3092
      %v3122 = vsel %vm1911, %v3090, %v3091
      %v3123 = vsel %vm1911, %v3089, %v3090
      %v3124 = vsel %vm1911, %v3088, %v3089
      %v3125 = vsel %vm1911, %v3106, %v3088
      %v3126 = vrot.slane %v3069, 5
      %v3127 = vrot.slane %v3070, 5
      %v3128 = vrot.slane %v3071, 5
      %v3129 = vrot.slane %v3072, 5
      %v3130 = vrot.slane %v3073, 5
      %v3131 = vrot.slane %v3074, 5
      %v3132 = vrot.slane %v3075, 5
      %v3133 = vrot.slane %v3076, 5
      %v3134 = vrot.slane %v3077, 5
      %v3135 = vrot.slane %v3078, 5
      %v3136 = vrot.slane %v3079, 5
      %v3137 = vrot.slane %v3080, 5
      %v3138 = vrot.slane %v3081, 5
      %v3139 = vrot.slane %v3082, 5
      %v3140 = vrot.slane %v3083, 5
      %v3141 = vrot.slane %v3084, 5
      %v3142 = vrot.slane %v3085, 5
      %v3143 = vrot.slane %v3086, 5
      %v3144 = vrot.slane %v3087, 5
      %v3145 = vsel %vm1872, %v3143, %v3144
      %v3146 = vsel %vm1872, %v3142, %v3143
      %v3147 = vsel %vm1872, %v3141, %v3142
      %v3148 = vsel %vm1872, %v3140, %v3141
      %v3149 = vsel %vm1872, %v3139, %v3140
      %v3150 = vsel %vm1872, %v3138, %v3139
      %v3151 = vsel %vm1872, %v3137, %v3138
      %v3152 = vsel %vm1872, %v3136, %v3137
      %v3153 = vsel %vm1872, %v3135, %v3136
      %v3154 = vsel %vm1872, %v3134, %v3135
      %v3155 = vsel %vm1872, %v3133, %v3134
      %v3156 = vsel %vm1872, %v3132, %v3133
      %v3157 = vsel %vm1872, %v3131, %v3132
      %v3158 = vsel %vm1872, %v3130, %v3131
      %v3159 = vsel %vm1872, %v3129, %v3130
      %v3160 = vsel %vm1872, %v3128, %v3129
      %v3161 = vsel %vm1872, %v3127, %v3128
      %v3162 = vsel %vm1872, %v3126, %v3127
      %v3163 = vsel %vm1872, %v3144, %v3126
      %v3164 = vpack.c.bf16 %v3124, %v3125
      %v3165 = vpack.c.bf16 %v3070, %v3069
      %v3166 = vpack.c.bf16 %v3161, %v3162
      %v3167 = vpack.c.bf16 %v3122, %v3123
      %v3168 = vpack.c.bf16 %v3072, %v3071
      %v3169 = vpack.c.bf16 %v3159, %v3160
      %v3170 = vpack.c.bf16 %v3120, %v3121
      %v3171 = vpack.c.bf16 %v3074, %v3073
      %v3172 = vpack.c.bf16 %v3157, %v3158
      %v3173 = vpack.c.bf16 %v3118, %v3119
      %v3174 = vpack.c.bf16 %v3076, %v3075
      %v3175 = vpack.c.bf16 %v3155, %v3156
      %v3176 = vpack.c.bf16 %v3116, %v3117
      %v3177 = vpack.c.bf16 %v3078, %v3077
      %v3178 = vpack.c.bf16 %v3153, %v3154
      %v3179 = vpack.c.bf16 %v3114, %v3115
      %v3180 = vpack.c.bf16 %v3080, %v3079
      %v3181 = vpack.c.bf16 %v3151, %v3152
      %v3182 = vpack.c.bf16 %v3112, %v3113
      %v3183 = vpack.c.bf16 %v3082, %v3081
      %v3184 = vpack.c.bf16 %v3149, %v3150
      %v3185 = vpack.c.bf16 %v3110, %v3111
      %v3186 = vpack.c.bf16 %v3084, %v3083
      %v3187 = vpack.c.bf16 %v3147, %v3148
      %v3188 = vpack.c.bf16 %v3108, %v3109
      %v3189 = vpack.c.bf16 %v3086, %v3085
      %v3190 = vpack.c.bf16 %v3145, %v3146
      %v3191 = vpack.c.bf16 %v3107, %v3107
      %v3192 = vpack.c.bf16 %v3087, %v3087
      %v3193 = vpack.c.bf16 %v3163, %v3163
      %s3194 = scalar_lea.vmem %s1, 384
      %v3195 = vld [vmem:[%s3194] sm:$0xf]
      %v3196 = vld [vmem:[%s3194 + $0x4] sm:$0xf]
      %v3197 = vld [vmem:[%s3194 + $0x8] sm:$0xf]
      %v3198 = vld [vmem:[%s3194 + $0xc] sm:$0xf]
      %v3199 = vld [vmem:[%s3194 + $0x10] sm:$0xf]
      %v3200 = vld [vmem:[%s3194 + $0x14] sm:$0xf]
      %v3201 = vld [vmem:[%s3194 + $0x18] sm:$0xf]
      %v3202 = vld [vmem:[%s3194 + $0x1c] sm:$0xf]
      %v3203 = vld [vmem:[%s3194 + $0x20] sm:$0xf]
      %v3204 = vld [vmem:[%s3194 + $0x24] sm:$0xf]
      %v3205 = vld [vmem:[%s3194 + $0x28] sm:$0xf]
      %v3206 = vld [vmem:[%s3194 + $0x2c] sm:$0xf]
      %v3207 = vld [vmem:[%s3194 + $0x30] sm:$0xf]
      %v3208 = vld [vmem:[%s3194 + $0x34] sm:$0xf]
      %v3209 = vld [vmem:[%s3194 + $0x38] sm:$0xf]
      %v3210 = vld [vmem:[%s3194 + $0x3c] sm:$0xf]
      %v3211 = vld [vmem:[%s3194 + $0x40] sm:$0xf]
      %v3212 = vld [vmem:[%s3194 + $0x44] sm:$0xf]
      %v3213 = vld [vmem:[%s3194 + $0x48] sm:$0xf]
      %v3214 = vld [vmem:[%s3194 + $0x4c] sm:$0xf]
      %v3215 = vld [vmem:[%s3194 + $0x50] sm:$0xf]
      %v3216 = vld [vmem:[%s3194 + $0x54] sm:$0xf]
      %v3217 = vld [vmem:[%s3194 + $0x58] sm:$0xf]
      %v3218 = vld [vmem:[%s3194 + $0x5c] sm:$0xf]
      %v3219 = vld [vmem:[%s3194 + $0x60] sm:$0xf]
      %v3220 = vld [vmem:[%s3194 + $0x64] sm:$0xf]
      %v3221 = vld [vmem:[%s3194 + $0x68] sm:$0xf]
      %v3222 = vld [vmem:[%s3194 + $0x6c] sm:$0xf]
      %v3223 = vld [vmem:[%s3194 + $0x70] sm:$0xf]
      %v3224 = vld [vmem:[%s3194 + $0x74] sm:$0xf]
      %v3225 = vld [vmem:[%s3194 + $0x78] sm:$0xf]
      %v3226 = vld [vmem:[%s3194 + $0x7c] sm:$0xf]
      %v3227 = vld [vmem:[%s3194 + $0x80] sm:$0xf]
      %v3228 = vld [vmem:[%s3194 + $0x84] sm:$0xf]
      %v3229 = vld [vmem:[%s3194 + $0x88] sm:$0xf]
      %v3230 = vld [vmem:[%s3194 + $0x8c] sm:$0xf]
      %v3231 = vld [vmem:[%s3194 + $0x90] sm:$0xf]
      %v3232 = vld [vmem:[%s3194 + $0x94] sm:$0xf]
      %v3233 = vld [vmem:[%s3194 + $0x98] sm:$0xf]
      %v3234 = vld [vmem:[%s3194 + $0x9c] sm:$0xf]
      %v3235 = vld [vmem:[%s3194 + $0xa0] sm:$0xf]
      %v3236 = vld [vmem:[%s3194 + $0xa4] sm:$0xf]
      %v3237 = vld [vmem:[%s3194 + $0xa8] sm:$0xf]
      %v3238 = vld [vmem:[%s3194 + $0xac] sm:$0xf]
      %v3239 = vld [vmem:[%s3194 + $0xb0] sm:$0xf]
      %v3240 = vld [vmem:[%s3194 + $0xb4] sm:$0xf]
      %v3241 = vld [vmem:[%s3194 + $0xb8] sm:$0xf]
      %v3242 = vld [vmem:[%s3194 + $0xbc] sm:$0xf]
      %s3243 = scalar_lea.vmem %s2, 2
      %v3244 = vld [vmem:[%s3243] sm:$0x1]
      %v3246 = vlaneseq
      %v3247 = vshrl.u32 %v3246, 7
      %v3248 = vsub.s32 0, %v3247
      %v3249 = vrot.slane %v3244, %v3248
      %v3299 = vunpack.c.l.b16 %v3195
      %v3300 = vunpack.c.l.b16 %v3196
      %v3301 = vunpack.c.l.b16 %v3197
      %v3302 = vunpack.c.l.b16 %v3198
      %v3303 = vunpack.c.l.b16 %v3199
      %v3304 = vunpack.c.l.b16 %v3200
      %v3305 = vunpack.c.l.b16 %v3201
      %v3306 = vunpack.c.l.b16 %v3202
      %v3307 = vunpack.c.l.b16 %v3203
      %v3308 = vunpack.c.l.b16 %v3204
      %v3309 = vunpack.c.l.b16 %v3205
      %v3310 = vunpack.c.l.b16 %v3206
      %v3311 = vunpack.c.l.b16 %v3207
      %v3312 = vunpack.c.l.b16 %v3208
      %v3313 = vunpack.c.l.b16 %v3209
      %v3314 = vunpack.c.l.b16 %v3210
      %v3315 = vunpack.c.l.b16 %v3211
      %v3316 = vunpack.c.l.b16 %v3212
      %v3317 = vunpack.c.l.b16 %v3213
      %v3318 = vunpack.c.l.b16 %v3214
      %v3319 = vunpack.c.l.b16 %v3215
      %v3320 = vunpack.c.l.b16 %v3216
      %v3321 = vunpack.c.l.b16 %v3217
      %v3322 = vunpack.c.l.b16 %v3218
      %v3323 = vunpack.c.l.b16 %v3219
      %v3324 = vunpack.c.l.b16 %v3220
      %v3325 = vunpack.c.l.b16 %v3221
      %v3326 = vunpack.c.l.b16 %v3222
      %v3327 = vunpack.c.l.b16 %v3223
      %v3328 = vunpack.c.l.b16 %v3224
      %v3329 = vunpack.c.l.b16 %v3225
      %v3330 = vunpack.c.l.b16 %v3226
      %v3331 = vunpack.c.l.b16 %v3227
      %v3332 = vunpack.c.l.b16 %v3228
      %v3333 = vunpack.c.l.b16 %v3229
      %v3334 = vunpack.c.l.b16 %v3230
      %v3335 = vunpack.c.l.b16 %v3231
      %v3336 = vunpack.c.l.b16 %v3232
      %v3337 = vunpack.c.l.b16 %v3233
      %v3338 = vunpack.c.l.b16 %v3234
      %v3339 = vunpack.c.l.b16 %v3235
      %v3340 = vunpack.c.l.b16 %v3236
      %v3341 = vunpack.c.l.b16 %v3237
      %v3342 = vunpack.c.l.b16 %v3238
      %v3343 = vunpack.c.l.b16 %v3239
      %v3344 = vunpack.c.l.b16 %v3240
      %v3345 = vunpack.c.l.b16 %v3241
      %v3346 = vunpack.c.l.b16 %v3242
      %v3347 = vpack.c.b16 %v3300, %v3299
      %v3348 = vpack.c.b16 %v3302, %v3301
      %v3349 = vpack.c.b16 %v3304, %v3303
      %v3350 = vpack.c.b16 %v3306, %v3305
      %v3351 = vpack.c.b16 %v3308, %v3307
      %v3352 = vpack.c.b16 %v3310, %v3309
      %v3353 = vpack.c.b16 %v3312, %v3311
      %v3354 = vpack.c.b16 %v3314, %v3313
      %v3355 = vpack.c.b16 %v3316, %v3315
      %v3356 = vpack.c.b16 %v3318, %v3317
      %v3357 = vpack.c.b16 %v3320, %v3319
      %v3358 = vpack.c.b16 %v3322, %v3321
      %v3359 = vpack.c.b16 %v3324, %v3323
      %v3360 = vpack.c.b16 %v3326, %v3325
      %v3361 = vpack.c.b16 %v3328, %v3327
      %v3362 = vpack.c.b16 %v3330, %v3329
      %v3363 = vpack.c.b16 %v3332, %v3331
      %v3364 = vpack.c.b16 %v3334, %v3333
      %v3365 = vpack.c.b16 %v3336, %v3335
      %v3366 = vpack.c.b16 %v3338, %v3337
      %v3367 = vpack.c.b16 %v3340, %v3339
      %v3368 = vpack.c.b16 %v3342, %v3341
      %v3369 = vpack.c.b16 %v3344, %v3343
      %v3370 = vpack.c.b16 %v3346, %v3345
      %3395 = vmatprep.subr.bf16.mxu0 0
      %3396 = vmatpush1.bf16.msra.mxu0 %v3347
      %3397 = vmatprep.subr.bf16.mxu0 0
      %3398 = vmatpush1.bf16.msra.mxu0 %v3348
      %3399 = vmatprep.subr.bf16.mxu0 0
      %3400 = vmatpush1.bf16.msra.mxu0 %v3349
      %3401 = vmatprep.subr.bf16.mxu0 0
      %3402 = vmatpush1.bf16.msra.mxu0 %v3350
      %3403 = vmatprep.subr.bf16.mxu0 0
      %3404 = vmatpush1.bf16.msra.mxu0 %v3351
      %3405 = vmatprep.subr.bf16.mxu0 0
      %3406 = vmatpush1.bf16.msra.mxu0 %v3352
      %3407 = vmatprep.subr.bf16.mxu0 0
      %3408 = vmatpush1.bf16.msra.mxu0 %v3353
      %3409 = vmatprep.subr.bf16.mxu0 0
      %3410 = vmatpush1.bf16.msra.mxu0 %v3354
      %3411 = vmatprep.subr.bf16.mxu0 0
      %3412 = vmatpush1.bf16.msra.mxu0 %v3355
      %3413 = vmatprep.subr.bf16.mxu0 0
      %3414 = vmatpush1.bf16.msra.mxu0 %v3356
      %3415 = vmatprep.subr.bf16.mxu0 0
      %3416 = vmatpush1.bf16.msra.mxu0 %v3357
      %3417 = vmatprep.subr.bf16.mxu0 0
      %3418 = vmatpush1.bf16.msra.mxu0 %v3358
      %3419 = vmatprep.subr.bf16.mxu0 0
      %3420 = vmatpush1.bf16.msra.mxu0 %v3359
      %3421 = vmatprep.subr.bf16.mxu0 0
      %3422 = vmatpush1.bf16.msra.mxu0 %v3360
      %3423 = vmatprep.subr.bf16.mxu0 0
      %3424 = vmatpush1.bf16.msra.mxu0 %v3361
      %3425 = vmatprep.subr.bf16.mxu0 0
      %3426 = vmatpush1.bf16.msra.mxu0 %v3362
      %3427 = vmatprep.mubr.bf16.mxu0 %v3165
      %3428 = vmatmul.mubr.bf16.gmra.mrb[0].mxu0 %v3164
      %v3429 = vpop.f32.mrb[0].mxu0
      %v3430 = vadd.f32 %v3249, %v3429
      %v3431 = vpop.f32.mrb[0].mxu0
      %v3432 = vpop.f32.mrb[0].mxu0
      %v3433 = vadd.f32 %v3249, %v3432
      %v3434 = vpop.f32.mrb[0].mxu0
      %3435 = vmatprep.mubr.bf16.mxu0 %v3168
      %3436 = vmatmul.mubr.bf16.gmra.mrb[0].mxu0 %v3167
      %v3437 = vpop.f32.mrb[0].mxu0
      %v3438 = vadd.f32 %v3249, %v3437
      %v3439 = vpop.f32.mrb[0].mxu0
      %v3440 = vpop.f32.mrb[0].mxu0
      %v3441 = vadd.f32 %v3249, %v3440
      %v3442 = vpop.f32.mrb[0].mxu0
      %3443 = vmatprep.mubr.bf16.mxu0 %v3171
      %3444 = vmatmul.mubr.bf16.gmra.mrb[0].mxu0 %v3170
      %v3445 = vpop.f32.mrb[0].mxu0
      %v3446 = vadd.f32 %v3249, %v3445
      %v3447 = vpop.f32.mrb[0].mxu0
      %v3448 = vpop.f32.mrb[0].mxu0
      %v3449 = vadd.f32 %v3249, %v3448
      %v3450 = vpop.f32.mrb[0].mxu0
      %3451 = vmatprep.mubr.bf16.mxu0 %v3174
      %3452 = vmatmul.mubr.bf16.gmra.mrb[0].mxu0 %v3173
      %v3453 = vpop.f32.mrb[0].mxu0
      %v3454 = vadd.f32 %v3249, %v3453
      %v3455 = vpop.f32.mrb[0].mxu0
      %v3456 = vpop.f32.mrb[0].mxu0
      %v3457 = vadd.f32 %v3249, %v3456
      %v3458 = vpop.f32.mrb[0].mxu0
      %3459 = vmatprep.mubr.bf16.mxu0 %v3177
      %3460 = vmatmul.mubr.bf16.gmra.mrb[0].mxu0 %v3176
      %v3461 = vpop.f32.mrb[0].mxu0
      %v3462 = vadd.f32 %v3249, %v3461
      %v3463 = vpop.f32.mrb[0].mxu0
      %v3464 = vpop.f32.mrb[0].mxu0
      %v3465 = vadd.f32 %v3249, %v3464
      %v3466 = vpop.f32.mrb[0].mxu0
      %3467 = vmatprep.mubr.bf16.mxu0 %v3180
      %3468 = vmatmul.mubr.bf16.gmra.mrb[0].mxu0 %v3179
      %v3469 = vpop.f32.mrb[0].mxu0
      %v3470 = vadd.f32 %v3249, %v3469
      %v3471 = vpop.f32.mrb[0].mxu0
      %v3472 = vpop.f32.mrb[0].mxu0
      %v3473 = vadd.f32 %v3249, %v3472
      %v3474 = vpop.f32.mrb[0].mxu0
      %3475 = vmatprep.mubr.bf16.mxu0 %v3183
      %3476 = vmatmul.mubr.bf16.gmra.mrb[0].mxu0 %v3182
      %v3477 = vpop.f32.mrb[0].mxu0
      %v3478 = vadd.f32 %v3249, %v3477
      %v3479 = vpop.f32.mrb[0].mxu0
      %v3480 = vpop.f32.mrb[0].mxu0
      %v3481 = vadd.f32 %v3249, %v3480
      %v3482 = vpop.f32.mrb[0].mxu0
      %3483 = vmatprep.mubr.bf16.mxu0 %v3186
      %3484 = vmatmul.mubr.bf16.gmra.mrb[0].mxu0 %v3185
      %v3485 = vpop.f32.mrb[0].mxu0
      %v3486 = vadd.f32 %v3249, %v3485
      %v3487 = vpop.f32.mrb[0].mxu0
      %v3488 = vpop.f32.mrb[0].mxu0
      %v3489 = vadd.f32 %v3249, %v3488
      %v3490 = vpop.f32.mrb[0].mxu0
      %3491 = vmatprep.mubr.bf16.mxu0 %v3189
      %3492 = vmatmul.mubr.bf16.gmra.mrb[0].mxu0 %v3188
      %v3493 = vpop.f32.mrb[0].mxu0
      %v3494 = vadd.f32 %v3249, %v3493
      %v3495 = vpop.f32.mrb[0].mxu0
      %v3496 = vpop.f32.mrb[0].mxu0
      %v3497 = vadd.f32 %v3249, %v3496
      %v3498 = vpop.f32.mrb[0].mxu0
      %3499 = vmatprep.mubr.bf16.mxu0 %v3192
      %3500 = vmatmul.mubr.bf16.gmra.mrb[0].mxu0 %v3191
      %v3501 = vpop.f32.mrb[0].mxu0
      %v3502 = vadd.f32 %v3249, %v3501
      %v3503 = vpop.f32.mrb[0].mxu0
      %v3504 = vpop.f32.mrb[0].mxu0
      %v3505 = vpop.f32.mrb[0].mxu0
      %3506 = vdwg.mxu0
      %3507 = vmatprep.subr.bf16.mxu0 0
      %3508 = vmatpush1.bf16.msra.mxu0 %v3363
      %3509 = vmatprep.subr.bf16.mxu0 0
      %3510 = vmatpush1.bf16.msra.mxu0 %v3364
      %3511 = vmatprep.subr.bf16.mxu0 0
      %3512 = vmatpush1.bf16.msra.mxu0 %v3365
      %3513 = vmatprep.subr.bf16.mxu0 0
      %3514 = vmatpush1.bf16.msra.mxu0 %v3366
      %3515 = vmatprep.subr.bf16.mxu0 0
      %3516 = vmatpush1.bf16.msra.mxu0 %v3367
      %3517 = vmatprep.subr.bf16.mxu0 0
      %3518 = vmatpush1.bf16.msra.mxu0 %v3368
      %3519 = vmatprep.subr.bf16.mxu0 0
      %3520 = vmatpush1.bf16.msra.mxu0 %v3369
      %3521 = vmatprep.subr.bf16.mxu0 0
      %3522 = vmatpush1.bf16.msra.mxu0 %v3370
      %3523 = vmatprep.subr.bf16.mxu0 0
      %3524 = vmatpush1.bf16.msra.mxu0 0
      %3525 = vmatprep.subr.bf16.mxu0 0
      %3526 = vmatpush1.bf16.msra.mxu0 0
      %3527 = vmatprep.subr.bf16.mxu0 0
      %3528 = vmatpush1.bf16.msra.mxu0 0
      %3529 = vmatprep.subr.bf16.mxu0 0
      %3530 = vmatpush1.bf16.msra.mxu0 0
      %3531 = vmatprep.subr.bf16.mxu0 0
      %3532 = vmatpush1.bf16.msra.mxu0 0
      %3533 = vmatprep.subr.bf16.mxu0 0
      %3534 = vmatpush1.bf16.msra.mxu0 0
      %3535 = vmatprep.subr.bf16.mxu0 0
      %3536 = vmatpush1.bf16.msra.mxu0 0
      %3537 = vmatprep.subr.bf16.mxu0 0
      %3538 = vmatpush1.bf16.msra.mxu0 0
      %3539 = vmatprep.mubr.bf16.mxu0 0
      %3540 = vmatmul.mubr.bf16.gmra.mrb[0].mxu0 %v3166
      %v3541 = vpop.f32.mrb[0].mxu0
      %v3542 = vadd.f32 %v3430, %v3541
      %v3543 = vpop.f32.mrb[0].mxu0
      %v3544 = vpop.f32.mrb[0].mxu0
      %v3545 = vadd.f32 %v3433, %v3544
      %v3546 = vpop.f32.mrb[0].mxu0
      %3547 = vmatprep.mubr.bf16.mxu0 0
      %3548 = vmatmul.mubr.bf16.gmra.mrb[0].mxu0 %v3169
      %v3549 = vpop.f32.mrb[0].mxu0
      %v3550 = vadd.f32 %v3438, %v3549
      %v3551 = vpop.f32.mrb[0].mxu0
      %v3552 = vpop.f32.mrb[0].mxu0
      %v3553 = vadd.f32 %v3441, %v3552
      %v3554 = vpop.f32.mrb[0].mxu0
      %3555 = vmatprep.mubr.bf16.mxu0 0
      %3556 = vmatmul.mubr.bf16.gmra.mrb[0].mxu0 %v3172
      %v3557 = vpop.f32.mrb[0].mxu0
      %v3558 = vadd.f32 %v3446, %v3557
      %v3559 = vpop.f32.mrb[0].mxu0
      %v3560 = vpop.f32.mrb[0].mxu0
      %v3561 = vadd.f32 %v3449, %v3560
      %v3562 = vpop.f32.mrb[0].mxu0
      %3563 = vmatprep.mubr.bf16.mxu0 0
      %3564 = vmatmul.mubr.bf16.gmra.mrb[0].mxu0 %v3175
      %v3565 = vpop.f32.mrb[0].mxu0
      %v3566 = vadd.f32 %v3454, %v3565
      %v3567 = vpop.f32.mrb[0].mxu0
      %v3568 = vpop.f32.mrb[0].mxu0
      %v3569 = vadd.f32 %v3457, %v3568
      %v3570 = vpop.f32.mrb[0].mxu0
      %3571 = vmatprep.mubr.bf16.mxu0 0
      %3572 = vmatmul.mubr.bf16.gmra.mrb[0].mxu0 %v3178
      %v3573 = vpop.f32.mrb[0].mxu0
      %v3574 = vadd.f32 %v3462, %v3573
      %v3575 = vpop.f32.mrb[0].mxu0
      %v3576 = vpop.f32.mrb[0].mxu0
      %v3577 = vadd.f32 %v3465, %v3576
      %v3578 = vpop.f32.mrb[0].mxu0
      %3579 = vmatprep.mubr.bf16.mxu0 0
      %3580 = vmatmul.mubr.bf16.gmra.mrb[0].mxu0 %v3181
      %v3581 = vpop.f32.mrb[0].mxu0
      %v3582 = vadd.f32 %v3470, %v3581
      %v3583 = vpop.f32.mrb[0].mxu0
      %v3584 = vpop.f32.mrb[0].mxu0
      %v3585 = vadd.f32 %v3473, %v3584
      %v3586 = vpop.f32.mrb[0].mxu0
      %3587 = vmatprep.mubr.bf16.mxu0 0
      %3588 = vmatmul.mubr.bf16.gmra.mrb[0].mxu0 %v3184
      %v3589 = vpop.f32.mrb[0].mxu0
      %v3590 = vadd.f32 %v3478, %v3589
      %v3591 = vpop.f32.mrb[0].mxu0
      %v3592 = vpop.f32.mrb[0].mxu0
      %v3593 = vadd.f32 %v3481, %v3592
      %v3594 = vpop.f32.mrb[0].mxu0
      %3595 = vmatprep.mubr.bf16.mxu0 0
      %3596 = vmatmul.mubr.bf16.gmra.mrb[0].mxu0 %v3187
      %v3597 = vpop.f32.mrb[0].mxu0
      %v3598 = vadd.f32 %v3486, %v3597
      %v3599 = vpop.f32.mrb[0].mxu0
      %v3600 = vpop.f32.mrb[0].mxu0
      %v3601 = vadd.f32 %v3489, %v3600
      %v3602 = vpop.f32.mrb[0].mxu0
      %3603 = vmatprep.mubr.bf16.mxu0 0
      %3604 = vmatmul.mubr.bf16.gmra.mrb[0].mxu0 %v3190
      %v3605 = vpop.f32.mrb[0].mxu0
      %v3606 = vadd.f32 %v3494, %v3605
      %v3607 = vpop.f32.mrb[0].mxu0
      %v3608 = vpop.f32.mrb[0].mxu0
      %v3609 = vadd.f32 %v3497, %v3608
      %v3610 = vpop.f32.mrb[0].mxu0
      %3611 = vmatprep.mubr.bf16.mxu0 0
      %3612 = vmatmul.mubr.bf16.gmra.mrb[0].mxu0 %v3193
      %v3613 = vpop.f32.mrb[0].mxu0
      %v3614 = vadd.f32 %v3502, %v3613
      %v3615 = vpop.f32.mrb[0].mxu0
      %v3616 = vpop.f32.mrb[0].mxu0
      %v3617 = vpop.f32.mrb[0].mxu0
      %3618 = vdwg.mxu0
      %vm3619 = vcmp.ge.f32.partialorder %v3542, 0.0
      %vm3620 = vcmp.ge.f32.partialorder %v3545, 0.0
      %vm3621 = vcmp.ge.f32.partialorder %v3550, 0.0
      %vm3622 = vcmp.ge.f32.partialorder %v3553, 0.0
      %vm3623 = vcmp.ge.f32.partialorder %v3558, 0.0
      %vm3624 = vcmp.ge.f32.partialorder %v3561, 0.0
      %vm3625 = vcmp.ge.f32.partialorder %v3566, 0.0
      %vm3626 = vcmp.ge.f32.partialorder %v3569, 0.0
      %vm3627 = vcmp.ge.f32.partialorder %v3574, 0.0
      %vm3628 = vcmp.ge.f32.partialorder %v3577, 0.0
      %vm3629 = vcmp.ge.f32.partialorder %v3582, 0.0
      %vm3630 = vcmp.ge.f32.partialorder %v3585, 0.0
      %vm3631 = vcmp.ge.f32.partialorder %v3590, 0.0
      %vm3632 = vcmp.ge.f32.partialorder %v3593, 0.0
      %vm3633 = vcmp.ge.f32.partialorder %v3598, 0.0
      %vm3634 = vcmp.ge.f32.partialorder %v3601, 0.0
      %vm3635 = vcmp.ge.f32.partialorder %v3606, 0.0
      %vm3636 = vcmp.ge.f32.partialorder %v3609, 0.0
      %vm3637 = vcmp.ge.f32.partialorder %v3614, 0.0
      %v3638 = vmul.f32 %v3542, 0.1
      %v3639 = vmul.f32 %v3545, 0.1
      %v3640 = vmul.f32 %v3550, 0.1
      %v3641 = vmul.f32 %v3553, 0.1
      %v3642 = vmul.f32 %v3558, 0.1
      %v3643 = vmul.f32 %v3561, 0.1
      %v3644 = vmul.f32 %v3566, 0.1
      %v3645 = vmul.f32 %v3569, 0.1
      %v3646 = vmul.f32 %v3574, 0.1
      %v3647 = vmul.f32 %v3577, 0.1
      %v3648 = vmul.f32 %v3582, 0.1
      %v3649 = vmul.f32 %v3585, 0.1
      %v3650 = vmul.f32 %v3590, 0.1
      %v3651 = vmul.f32 %v3593, 0.1
      %v3652 = vmul.f32 %v3598, 0.1
      %v3653 = vmul.f32 %v3601, 0.1
      %v3654 = vmul.f32 %v3606, 0.1
      %v3655 = vmul.f32 %v3609, 0.1
      %v3656 = vmul.f32 %v3614, 0.1
      %v3657 = vsel %vm3619, %v3542, %v3638
      %v3658 = vsel %vm3620, %v3545, %v3639
      %v3659 = vsel %vm3621, %v3550, %v3640
      %v3660 = vsel %vm3622, %v3553, %v3641
      %v3661 = vsel %vm3623, %v3558, %v3642
      %v3662 = vsel %vm3624, %v3561, %v3643
      %v3663 = vsel %vm3625, %v3566, %v3644
      %v3664 = vsel %vm3626, %v3569, %v3645
      %v3665 = vsel %vm3627, %v3574, %v3646
      %v3666 = vsel %vm3628, %v3577, %v3647
      %v3667 = vsel %vm3629, %v3582, %v3648
      %v3668 = vsel %vm3630, %v3585, %v3649
      %v3669 = vsel %vm3631, %v3590, %v3650
      %v3670 = vsel %vm3632, %v3593, %v3651
      %v3671 = vsel %vm3633, %v3598, %v3652
      %v3672 = vsel %vm3634, %v3601, %v3653
      %v3673 = vsel %vm3635, %v3606, %v3654
      %v3674 = vsel %vm3636, %v3609, %v3655
      %v3675 = vsel %vm3637, %v3614, %v3656
      %v3676 = vsel %vm584, %v3657, 0.0
      %v3677 = vsel %vm585, %v3658, 0.0
      %v3678 = vsel %vm586, %v3659, 0.0
      %v3679 = vsel %vm587, %v3660, 0.0
      %v3680 = vsel %vm588, %v3661, 0.0
      %v3681 = vsel %vm589, %v3662, 0.0
      %v3682 = vsel %vm590, %v3663, 0.0
      %v3683 = vsel %vm591, %v3664, 0.0
      %v3684 = vsel %vm592, %v3665, 0.0
      %v3685 = vsel %vm593, %v3666, 0.0
      %v3686 = vsel %vm594, %v3667, 0.0
      %v3687 = vsel %vm595, %v3668, 0.0
      %v3688 = vsel %vm596, %v3669, 0.0
      %v3689 = vsel %vm597, %v3670, 0.0
      %v3690 = vsel %vm598, %v3671, 0.0
      %v3691 = vsel %vm599, %v3672, 0.0
      %v3692 = vsel %vm600, %v3673, 0.0
      %v3693 = vsel %vm601, %v3674, 0.0
      %v3694 = vsel %vm602, %v3675, 0.0
      %v3695 = vrot.slane %v3676, 7
      %v3696 = vrot.slane %v3677, 7
      %v3697 = vrot.slane %v3678, 7
      %v3698 = vrot.slane %v3679, 7
      %v3699 = vrot.slane %v3680, 7
      %v3700 = vrot.slane %v3681, 7
      %v3701 = vrot.slane %v3682, 7
      %v3702 = vrot.slane %v3683, 7
      %v3703 = vrot.slane %v3684, 7
      %v3704 = vrot.slane %v3685, 7
      %v3705 = vrot.slane %v3686, 7
      %v3706 = vrot.slane %v3687, 7
      %v3707 = vrot.slane %v3688, 7
      %v3708 = vrot.slane %v3689, 7
      %v3709 = vrot.slane %v3690, 7
      %v3710 = vrot.slane %v3691, 7
      %v3711 = vrot.slane %v3692, 7
      %v3712 = vrot.slane %v3693, 7
      %v3713 = vrot.slane %v3694, 7
      %v3714 = vsel %vm641, %v3712, %v3713
      %v3715 = vsel %vm641, %v3711, %v3712
      %v3716 = vsel %vm641, %v3710, %v3711
      %v3717 = vsel %vm641, %v3709, %v3710
      %v3718 = vsel %vm641, %v3708, %v3709
      %v3719 = vsel %vm641, %v3707, %v3708
      %v3720 = vsel %vm641, %v3706, %v3707
      %v3721 = vsel %vm641, %v3705, %v3706
      %v3722 = vsel %vm641, %v3704, %v3705
      %v3723 = vsel %vm641, %v3703, %v3704
      %v3724 = vsel %vm641, %v3702, %v3703
      %v3725 = vsel %vm641, %v3701, %v3702
      %v3726 = vsel %vm641, %v3700, %v3701
      %v3727 = vsel %vm641, %v3699, %v3700
      %v3728 = vsel %vm641, %v3698, %v3699
      %v3729 = vsel %vm641, %v3697, %v3698
      %v3730 = vsel %vm641, %v3696, %v3697
      %v3731 = vsel %vm641, %v3695, %v3696
      %v3732 = vsel %vm641, %v3713, %v3695
      %v3733 = vrot.slane %v3676, 1
      %v3734 = vrot.slane %v3677, 1
      %v3735 = vrot.slane %v3678, 1
      %v3736 = vrot.slane %v3679, 1
      %v3737 = vrot.slane %v3680, 1
      %v3738 = vrot.slane %v3681, 1
      %v3739 = vrot.slane %v3682, 1
      %v3740 = vrot.slane %v3683, 1
      %v3741 = vrot.slane %v3684, 1
      %v3742 = vrot.slane %v3685, 1
      %v3743 = vrot.slane %v3686, 1
      %v3744 = vrot.slane %v3687, 1
      %v3745 = vrot.slane %v3688, 1
      %v3746 = vrot.slane %v3689, 1
      %v3747 = vrot.slane %v3690, 1
      %v3748 = vrot.slane %v3691, 1
      %v3749 = vrot.slane %v3692, 1
      %v3750 = vrot.slane %v3693, 1
      %v3751 = vrot.slane %v3694, 1
      %v3752 = vsel %vm680, %v3750, %v3751
      %v3753 = vsel %vm680, %v3749, %v3750
      %v3754 = vsel %vm680, %v3748, %v3749
      %v3755 = vsel %vm680, %v3747, %v3748
      %v3756 = vsel %vm680, %v3746, %v3747
      %v3757 = vsel %vm680, %v3745, %v3746
      %v3758 = vsel %vm680, %v3744, %v3745
      %v3759 = vsel %vm680, %v3743, %v3744
      %v3760 = vsel %vm680, %v3742, %v3743
      %v3761 = vsel %vm680, %v3741, %v3742
      %v3762 = vsel %vm680, %v3740, %v3741
      %v3763 = vsel %vm680, %v3739, %v3740
      %v3764 = vsel %vm680, %v3738, %v3739
      %v3765 = vsel %vm680, %v3737, %v3738
      %v3766 = vsel %vm680, %v3736, %v3737
      %v3767 = vsel %vm680, %v3735, %v3736
      %v3768 = vsel %vm680, %v3734, %v3735
      %v3769 = vsel %vm680, %v3733, %v3734
      %v3770 = vsel %vm680, %v3751, %v3733
      %v3771 = vpack.c.bf16 %v3731, %v3732
      %v3772 = vpack.c.bf16 %v3677, %v3676
      %v3773 = vpack.c.bf16 %v3768, %v3769
      %v3774 = vpack.c.bf16 %v3729, %v3730
      %v3775 = vpack.c.bf16 %v3679, %v3678
      %v3776 = vpack.c.bf16 %v3766, %v3767
      %v3777 = vpack.c.bf16 %v3727, %v3728
      %v3778 = vpack.c.bf16 %v3681, %v3680
      %v3779 = vpack.c.bf16 %v3764, %v3765
      %v3780 = vpack.c.bf16 %v3725, %v3726
      %v3781 = vpack.c.bf16 %v3683, %v3682
      %v3782 = vpack.c.bf16 %v3762, %v3763
      %v3783 = vpack.c.bf16 %v3723, %v3724
      %v3784 = vpack.c.bf16 %v3685, %v3684
      %v3785 = vpack.c.bf16 %v3760, %v3761
      %v3786 = vpack.c.bf16 %v3721, %v3722
      %v3787 = vpack.c.bf16 %v3687, %v3686
      %v3788 = vpack.c.bf16 %v3758, %v3759
      %v3789 = vpack.c.bf16 %v3719, %v3720
      %v3790 = vpack.c.bf16 %v3689, %v3688
      %v3791 = vpack.c.bf16 %v3756, %v3757
      %v3792 = vpack.c.bf16 %v3717, %v3718
      %v3793 = vpack.c.bf16 %v3691, %v3690
      %v3794 = vpack.c.bf16 %v3754, %v3755
      %v3795 = vpack.c.bf16 %v3715, %v3716
      %v3796 = vpack.c.bf16 %v3693, %v3692
      %v3797 = vpack.c.bf16 %v3752, %v3753
      %v3798 = vpack.c.bf16 %v3714, %v3714
      %v3799 = vpack.c.bf16 %v3694, %v3694
      %v3800 = vpack.c.bf16 %v3770, %v3770
      %s3801 = scalar_lea.vmem %s3, 384
      %v3802 = vld [vmem:[%s3801] sm:$0xf]
      %v3803 = vld [vmem:[%s3801 + $0x4] sm:$0xf]
      %v3804 = vld [vmem:[%s3801 + $0x8] sm:$0xf]
      %v3805 = vld [vmem:[%s3801 + $0xc] sm:$0xf]
      %v3806 = vld [vmem:[%s3801 + $0x10] sm:$0xf]
      %v3807 = vld [vmem:[%s3801 + $0x14] sm:$0xf]
      %v3808 = vld [vmem:[%s3801 + $0x18] sm:$0xf]
      %v3809 = vld [vmem:[%s3801 + $0x1c] sm:$0xf]
      %v3810 = vld [vmem:[%s3801 + $0x20] sm:$0xf]
      %v3811 = vld [vmem:[%s3801 + $0x24] sm:$0xf]
      %v3812 = vld [vmem:[%s3801 + $0x28] sm:$0xf]
      %v3813 = vld [vmem:[%s3801 + $0x2c] sm:$0xf]
      %v3814 = vld [vmem:[%s3801 + $0x30] sm:$0xf]
      %v3815 = vld [vmem:[%s3801 + $0x34] sm:$0xf]
      %v3816 = vld [vmem:[%s3801 + $0x38] sm:$0xf]
      %v3817 = vld [vmem:[%s3801 + $0x3c] sm:$0xf]
      %v3818 = vld [vmem:[%s3801 + $0x40] sm:$0xf]
      %v3819 = vld [vmem:[%s3801 + $0x44] sm:$0xf]
      %v3820 = vld [vmem:[%s3801 + $0x48] sm:$0xf]
      %v3821 = vld [vmem:[%s3801 + $0x4c] sm:$0xf]
      %v3822 = vld [vmem:[%s3801 + $0x50] sm:$0xf]
      %v3823 = vld [vmem:[%s3801 + $0x54] sm:$0xf]
      %v3824 = vld [vmem:[%s3801 + $0x58] sm:$0xf]
      %v3825 = vld [vmem:[%s3801 + $0x5c] sm:$0xf]
      %v3826 = vld [vmem:[%s3801 + $0x60] sm:$0xf]
      %v3827 = vld [vmem:[%s3801 + $0x64] sm:$0xf]
      %v3828 = vld [vmem:[%s3801 + $0x68] sm:$0xf]
      %v3829 = vld [vmem:[%s3801 + $0x6c] sm:$0xf]
      %v3830 = vld [vmem:[%s3801 + $0x70] sm:$0xf]
      %v3831 = vld [vmem:[%s3801 + $0x74] sm:$0xf]
      %v3832 = vld [vmem:[%s3801 + $0x78] sm:$0xf]
      %v3833 = vld [vmem:[%s3801 + $0x7c] sm:$0xf]
      %v3834 = vld [vmem:[%s3801 + $0x80] sm:$0xf]
      %v3835 = vld [vmem:[%s3801 + $0x84] sm:$0xf]
      %v3836 = vld [vmem:[%s3801 + $0x88] sm:$0xf]
      %v3837 = vld [vmem:[%s3801 + $0x8c] sm:$0xf]
      %v3838 = vld [vmem:[%s3801 + $0x90] sm:$0xf]
      %v3839 = vld [vmem:[%s3801 + $0x94] sm:$0xf]
      %v3840 = vld [vmem:[%s3801 + $0x98] sm:$0xf]
      %v3841 = vld [vmem:[%s3801 + $0x9c] sm:$0xf]
      %v3842 = vld [vmem:[%s3801 + $0xa0] sm:$0xf]
      %v3843 = vld [vmem:[%s3801 + $0xa4] sm:$0xf]
      %v3844 = vld [vmem:[%s3801 + $0xa8] sm:$0xf]
      %v3845 = vld [vmem:[%s3801 + $0xac] sm:$0xf]
      %v3846 = vld [vmem:[%s3801 + $0xb0] sm:$0xf]
      %v3847 = vld [vmem:[%s3801 + $0xb4] sm:$0xf]
      %v3848 = vld [vmem:[%s3801 + $0xb8] sm:$0xf]
      %v3849 = vld [vmem:[%s3801 + $0xbc] sm:$0xf]
      %s3850 = scalar_lea.vmem %s4, 2
      %v3851 = vld [vmem:[%s3850] sm:$0x1]
      %v3853 = vlaneseq
      %v3854 = vshrl.u32 %v3853, 7
      %v3855 = vsub.s32 0, %v3854
      %v3856 = vrot.slane %v3851, %v3855
      %v3906 = vunpack.c.l.b16 %v3802
      %v3907 = vunpack.c.l.b16 %v3803
      %v3908 = vunpack.c.l.b16 %v3804
      %v3909 = vunpack.c.l.b16 %v3805
      %v3910 = vunpack.c.l.b16 %v3806
      %v3911 = vunpack.c.l.b16 %v3807
      %v3912 = vunpack.c.l.b16 %v3808
      %v3913 = vunpack.c.l.b16 %v3809
      %v3914 = vunpack.c.l.b16 %v3810
      %v3915 = vunpack.c.l.b16 %v3811
      %v3916 = vunpack.c.l.b16 %v3812
      %v3917 = vunpack.c.l.b16 %v3813
      %v3918 = vunpack.c.l.b16 %v3814
      %v3919 = vunpack.c.l.b16 %v3815
      %v3920 = vunpack.c.l.b16 %v3816
      %v3921 = vunpack.c.l.b16 %v3817
      %v3922 = vunpack.c.l.b16 %v3818
      %v3923 = vunpack.c.l.b16 %v3819
      %v3924 = vunpack.c.l.b16 %v3820
      %v3925 = vunpack.c.l.b16 %v3821
      %v3926 = vunpack.c.l.b16 %v3822
      %v3927 = vunpack.c.l.b16 %v3823
      %v3928 = vunpack.c.l.b16 %v3824
      %v3929 = vunpack.c.l.b16 %v3825
      %v3930 = vunpack.c.l.b16 %v3826
      %v3931 = vunpack.c.l.b16 %v3827
      %v3932 = vunpack.c.l.b16 %v3828
      %v3933 = vunpack.c.l.b16 %v3829
      %v3934 = vunpack.c.l.b16 %v3830
      %v3935 = vunpack.c.l.b16 %v3831
      %v3936 = vunpack.c.l.b16 %v3832
      %v3937 = vunpack.c.l.b16 %v3833
      %v3938 = vunpack.c.l.b16 %v3834
      %v3939 = vunpack.c.l.b16 %v3835
      %v3940 = vunpack.c.l.b16 %v3836
      %v3941 = vunpack.c.l.b16 %v3837
      %v3942 = vunpack.c.l.b16 %v3838
      %v3943 = vunpack.c.l.b16 %v3839
      %v3944 = vunpack.c.l.b16 %v3840
      %v3945 = vunpack.c.l.b16 %v3841
      %v3946 = vunpack.c.l.b16 %v3842
      %v3947 = vunpack.c.l.b16 %v3843
      %v3948 = vunpack.c.l.b16 %v3844
      %v3949 = vunpack.c.l.b16 %v3845
      %v3950 = vunpack.c.l.b16 %v3846
      %v3951 = vunpack.c.l.b16 %v3847
      %v3952 = vunpack.c.l.b16 %v3848
      %v3953 = vunpack.c.l.b16 %v3849
      %v3954 = vpack.c.b16 %v3907, %v3906
      %v3955 = vpack.c.b16 %v3909, %v3908
      %v3956 = vpack.c.b16 %v3911, %v3910
      %v3957 = vpack.c.b16 %v3913, %v3912
      %v3958 = vpack.c.b16 %v3915, %v3914
      %v3959 = vpack.c.b16 %v3917, %v3916
      %v3960 = vpack.c.b16 %v3919, %v3918
      %v3961 = vpack.c.b16 %v3921, %v3920
      %v3962 = vpack.c.b16 %v3923, %v3922
      %v3963 = vpack.c.b16 %v3925, %v3924
      %v3964 = vpack.c.b16 %v3927, %v3926
      %v3965 = vpack.c.b16 %v3929, %v3928
      %v3966 = vpack.c.b16 %v3931, %v3930
      %v3967 = vpack.c.b16 %v3933, %v3932
      %v3968 = vpack.c.b16 %v3935, %v3934
      %v3969 = vpack.c.b16 %v3937, %v3936
      %v3970 = vpack.c.b16 %v3939, %v3938
      %v3971 = vpack.c.b16 %v3941, %v3940
      %v3972 = vpack.c.b16 %v3943, %v3942
      %v3973 = vpack.c.b16 %v3945, %v3944
      %v3974 = vpack.c.b16 %v3947, %v3946
      %v3975 = vpack.c.b16 %v3949, %v3948
      %v3976 = vpack.c.b16 %v3951, %v3950
      %v3977 = vpack.c.b16 %v3953, %v3952
      %4002 = vmatprep.subr.bf16.mxu0 0
      %4003 = vmatpush1.bf16.msra.mxu0 %v3954
      %4004 = vmatprep.subr.bf16.mxu0 0
      %4005 = vmatpush1.bf16.msra.mxu0 %v3955
      %4006 = vmatprep.subr.bf16.mxu0 0
      %4007 = vmatpush1.bf16.msra.mxu0 %v3956
      %4008 = vmatprep.subr.bf16.mxu0 0
      %4009 = vmatpush1.bf16.msra.mxu0 %v3957
      %4010 = vmatprep.subr.bf16.mxu0 0
      %4011 = vmatpush1.bf16.msra.mxu0 %v3958
      %4012 = vmatprep.subr.bf16.mxu0 0
      %4013 = vmatpush1.bf16.msra.mxu0 %v3959
      %4014 = vmatprep.subr.bf16.mxu0 0
      %4015 = vmatpush1.bf16.msra.mxu0 %v3960
      %4016 = vmatprep.subr.bf16.mxu0 0
      %4017 = vmatpush1.bf16.msra.mxu0 %v3961
      %4018 = vmatprep.subr.bf16.mxu0 0
      %4019 = vmatpush1.bf16.msra.mxu0 %v3962
      %4020 = vmatprep.subr.bf16.mxu0 0
      %4021 = vmatpush1.bf16.msra.mxu0 %v3963
      %4022 = vmatprep.subr.bf16.mxu0 0
      %4023 = vmatpush1.bf16.msra.mxu0 %v3964
      %4024 = vmatprep.subr.bf16.mxu0 0
      %4025 = vmatpush1.bf16.msra.mxu0 %v3965
      %4026 = vmatprep.subr.bf16.mxu0 0
      %4027 = vmatpush1.bf16.msra.mxu0 %v3966
      %4028 = vmatprep.subr.bf16.mxu0 0
      %4029 = vmatpush1.bf16.msra.mxu0 %v3967
      %4030 = vmatprep.subr.bf16.mxu0 0
      %4031 = vmatpush1.bf16.msra.mxu0 %v3968
      %4032 = vmatprep.subr.bf16.mxu0 0
      %4033 = vmatpush1.bf16.msra.mxu0 %v3969
      %4034 = vmatprep.mubr.bf16.mxu0 %v3772
      %4035 = vmatmul.mubr.bf16.gmra.mrb[0].mxu0 %v3771
      %v4036 = vpop.f32.mrb[0].mxu0
      %v4037 = vpop.f32.mrb[0].mxu0
      %v4038 = vpop.f32.mrb[0].mxu0
      %v4039 = vadd.f32 %v3856, %v4038
      %v4040 = vpop.f32.mrb[0].mxu0
      %4041 = vmatprep.mubr.bf16.mxu0 %v3775
      %4042 = vmatmul.mubr.bf16.gmra.mrb[0].mxu0 %v3774
      %v4043 = vpop.f32.mrb[0].mxu0
      %v4044 = vadd.f32 %v3856, %v4043
      %v4045 = vpop.f32.mrb[0].mxu0
      %v4046 = vpop.f32.mrb[0].mxu0
      %v4047 = vadd.f32 %v3856, %v4046
      %v4048 = vpop.f32.mrb[0].mxu0
      %4049 = vmatprep.mubr.bf16.mxu0 %v3778
      %4050 = vmatmul.mubr.bf16.gmra.mrb[0].mxu0 %v3777
      %v4051 = vpop.f32.mrb[0].mxu0
      %v4052 = vadd.f32 %v3856, %v4051
      %v4053 = vpop.f32.mrb[0].mxu0
      %v4054 = vpop.f32.mrb[0].mxu0
      %v4055 = vadd.f32 %v3856, %v4054
      %v4056 = vpop.f32.mrb[0].mxu0
      %4057 = vmatprep.mubr.bf16.mxu0 %v3781
      %4058 = vmatmul.mubr.bf16.gmra.mrb[0].mxu0 %v3780
      %v4059 = vpop.f32.mrb[0].mxu0
      %v4060 = vadd.f32 %v3856, %v4059
      %v4061 = vpop.f32.mrb[0].mxu0
      %v4062 = vpop.f32.mrb[0].mxu0
      %v4063 = vadd.f32 %v3856, %v4062
      %v4064 = vpop.f32.mrb[0].mxu0
      %4065 = vmatprep.mubr.bf16.mxu0 %v3784
      %4066 = vmatmul.mubr.bf16.gmra.mrb[0].mxu0 %v3783
      %v4067 = vpop.f32.mrb[0].mxu0
      %v4068 = vadd.f32 %v3856, %v4067
      %v4069 = vpop.f32.mrb[0].mxu0
      %v4070 = vpop.f32.mrb[0].mxu0
      %v4071 = vadd.f32 %v3856, %v4070
      %v4072 = vpop.f32.mrb[0].mxu0
      %4073 = vmatprep.mubr.bf16.mxu0 %v3787
      %4074 = vmatmul.mubr.bf16.gmra.mrb[0].mxu0 %v3786
      %v4075 = vpop.f32.mrb[0].mxu0
      %v4076 = vadd.f32 %v3856, %v4075
      %v4077 = vpop.f32.mrb[0].mxu0
      %v4078 = vpop.f32.mrb[0].mxu0
      %v4079 = vadd.f32 %v3856, %v4078
      %v4080 = vpop.f32.mrb[0].mxu0
      %4081 = vmatprep.mubr.bf16.mxu0 %v3790
      %4082 = vmatmul.mubr.bf16.gmra.mrb[0].mxu0 %v3789
      %v4083 = vpop.f32.mrb[0].mxu0
      %v4084 = vadd.f32 %v3856, %v4083
      %v4085 = vpop.f32.mrb[0].mxu0
      %v4086 = vpop.f32.mrb[0].mxu0
      %v4087 = vadd.f32 %v3856, %v4086
      %v4088 = vpop.f32.mrb[0].mxu0
      %4089 = vmatprep.mubr.bf16.mxu0 %v3793
      %4090 = vmatmul.mubr.bf16.gmra.mrb[0].mxu0 %v3792
      %v4091 = vpop.f32.mrb[0].mxu0
      %v4092 = vadd.f32 %v3856, %v4091
      %v4093 = vpop.f32.mrb[0].mxu0
      %v4094 = vpop.f32.mrb[0].mxu0
      %v4095 = vadd.f32 %v3856, %v4094
      %v4096 = vpop.f32.mrb[0].mxu0
      %4097 = vmatprep.mubr.bf16.mxu0 %v3796
      %4098 = vmatmul.mubr.bf16.gmra.mrb[0].mxu0 %v3795
      %v4099 = vpop.f32.mrb[0].mxu0
      %v4100 = vadd.f32 %v3856, %v4099
      %v4101 = vpop.f32.mrb[0].mxu0
      %v4102 = vpop.f32.mrb[0].mxu0
      %v4103 = vadd.f32 %v3856, %v4102
      %v4104 = vpop.f32.mrb[0].mxu0
      %4105 = vmatprep.mubr.bf16.mxu0 %v3799
      %4106 = vmatmul.mubr.bf16.gmra.mrb[0].mxu0 %v3798
      %v4107 = vpop.f32.mrb[0].mxu0
      %v4108 = vpop.f32.mrb[0].mxu0
      %v4109 = vpop.f32.mrb[0].mxu0
      %v4110 = vpop.f32.mrb[0].mxu0
      %4111 = vdwg.mxu0
      %4112 = vmatprep.subr.bf16.mxu0 0
      %4113 = vmatpush1.bf16.msra.mxu0 %v3970
      %4114 = vmatprep.subr.bf16.mxu0 0
      %4115 = vmatpush1.bf16.msra.mxu0 %v3971
      %4116 = vmatprep.subr.bf16.mxu0 0
      %4117 = vmatpush1.bf16.msra.mxu0 %v3972
      %4118 = vmatprep.subr.bf16.mxu0 0
      %4119 = vmatpush1.bf16.msra.mxu0 %v3973
      %4120 = vmatprep.subr.bf16.mxu0 0
      %4121 = vmatpush1.bf16.msra.mxu0 %v3974
      %4122 = vmatprep.subr.bf16.mxu0 0
      %4123 = vmatpush1.bf16.msra.mxu0 %v3975
      %4124 = vmatprep.subr.bf16.mxu0 0
      %4125 = vmatpush1.bf16.msra.mxu0 %v3976
      %4126 = vmatprep.subr.bf16.mxu0 0
      %4127 = vmatpush1.bf16.msra.mxu0 %v3977
      %4128 = vmatprep.subr.bf16.mxu0 0
      %4129 = vmatpush1.bf16.msra.mxu0 0
      %4130 = vmatprep.subr.bf16.mxu0 0
      %4131 = vmatpush1.bf16.msra.mxu0 0
      %4132 = vmatprep.subr.bf16.mxu0 0
      %4133 = vmatpush1.bf16.msra.mxu0 0
      %4134 = vmatprep.subr.bf16.mxu0 0
      %4135 = vmatpush1.bf16.msra.mxu0 0
      %4136 = vmatprep.subr.bf16.mxu0 0
      %4137 = vmatpush1.bf16.msra.mxu0 0
      %4138 = vmatprep.subr.bf16.mxu0 0
      %4139 = vmatpush1.bf16.msra.mxu0 0
      %4140 = vmatprep.subr.bf16.mxu0 0
      %4141 = vmatpush1.bf16.msra.mxu0 0
      %4142 = vmatprep.subr.bf16.mxu0 0
      %4143 = vmatpush1.bf16.msra.mxu0 0
      %4144 = vmatprep.mubr.bf16.mxu0 0
      %4145 = vmatmul.mubr.bf16.gmra.mrb[0].mxu0 %v3773
      %v4146 = vpop.f32.mrb[0].mxu0
      %v4147 = vpop.f32.mrb[0].mxu0
      %v4148 = vpop.f32.mrb[0].mxu0
      %v4149 = vadd.f32 %v4039, %v4148
      %v4150 = vpop.f32.mrb[0].mxu0
      %4151 = vmatprep.mubr.bf16.mxu0 0
      %4152 = vmatmul.mubr.bf16.gmra.mrb[0].mxu0 %v3776
      %v4153 = vpop.f32.mrb[0].mxu0
      %v4154 = vadd.f32 %v4044, %v4153
      %v4155 = vpop.f32.mrb[0].mxu0
      %v4156 = vpop.f32.mrb[0].mxu0
      %v4157 = vadd.f32 %v4047, %v4156
      %v4158 = vpop.f32.mrb[0].mxu0
      %4159 = vmatprep.mubr.bf16.mxu0 0
      %4160 = vmatmul.mubr.bf16.gmra.mrb[0].mxu0 %v3779
      %v4161 = vpop.f32.mrb[0].mxu0
      %v4162 = vadd.f32 %v4052, %v4161
      %v4163 = vpop.f32.mrb[0].mxu0
      %v4164 = vpop.f32.mrb[0].mxu0
      %v4165 = vadd.f32 %v4055, %v4164
      %v4166 = vpop.f32.mrb[0].mxu0
      %4167 = vmatprep.mubr.bf16.mxu0 0
      %4168 = vmatmul.mubr.bf16.gmra.mrb[0].mxu0 %v3782
      %v4169 = vpop.f32.mrb[0].mxu0
      %v4170 = vadd.f32 %v4060, %v4169
      %v4171 = vpop.f32.mrb[0].mxu0
      %v4172 = vpop.f32.mrb[0].mxu0
      %v4173 = vadd.f32 %v4063, %v4172
      %v4174 = vpop.f32.mrb[0].mxu0
      %4175 = vmatprep.mubr.bf16.mxu0 0
      %4176 = vmatmul.mubr.bf16.gmra.mrb[0].mxu0 %v3785
      %v4177 = vpop.f32.mrb[0].mxu0
      %v4178 = vadd.f32 %v4068, %v4177
      %v4179 = vpop.f32.mrb[0].mxu0
      %v4180 = vpop.f32.mrb[0].mxu0
      %v4181 = vadd.f32 %v4071, %v4180
      %v4182 = vpop.f32.mrb[0].mxu0
      %4183 = vmatprep.mubr.bf16.mxu0 0
      %4184 = vmatmul.mubr.bf16.gmra.mrb[0].mxu0 %v3788
      %v4185 = vpop.f32.mrb[0].mxu0
      %v4186 = vadd.f32 %v4076, %v4185
      %v4187 = vpop.f32.mrb[0].mxu0
      %v4188 = vpop.f32.mrb[0].mxu0
      %v4189 = vadd.f32 %v4079, %v4188
      %v4190 = vpop.f32.mrb[0].mxu0
      %4191 = vmatprep.mubr.bf16.mxu0 0
      %4192 = vmatmul.mubr.bf16.gmra.mrb[0].mxu0 %v3791
      %v4193 = vpop.f32.mrb[0].mxu0
      %v4194 = vadd.f32 %v4084, %v4193
      %v4195 = vpop.f32.mrb[0].mxu0
      %v4196 = vpop.f32.mrb[0].mxu0
      %v4197 = vadd.f32 %v4087, %v4196
      %v4198 = vpop.f32.mrb[0].mxu0
      %4199 = vmatprep.mubr.bf16.mxu0 0
      %4200 = vmatmul.mubr.bf16.gmra.mrb[0].mxu0 %v3794
      %v4201 = vpop.f32.mrb[0].mxu0
      %v4202 = vadd.f32 %v4092, %v4201
      %v4203 = vpop.f32.mrb[0].mxu0
      %v4204 = vpop.f32.mrb[0].mxu0
      %v4205 = vadd.f32 %v4095, %v4204
      %v4206 = vpop.f32.mrb[0].mxu0
      %4207 = vmatprep.mubr.bf16.mxu0 0
      %4208 = vmatmul.mubr.bf16.gmra.mrb[0].mxu0 %v3797
      %v4209 = vpop.f32.mrb[0].mxu0
      %v4210 = vadd.f32 %v4100, %v4209
      %v4211 = vpop.f32.mrb[0].mxu0
      %v4212 = vpop.f32.mrb[0].mxu0
      %v4213 = vadd.f32 %v4103, %v4212
      %v4214 = vpop.f32.mrb[0].mxu0
      %4215 = vmatprep.mubr.bf16.mxu0 0
      %4216 = vmatmul.mubr.bf16.gmra.mrb[0].mxu0 %v3800
      %v4217 = vpop.f32.mrb[0].mxu0
      %v4218 = vpop.f32.mrb[0].mxu0
      %v4219 = vpop.f32.mrb[0].mxu0
      %v4220 = vpop.f32.mrb[0].mxu0
      %4221 = vdwg.mxu0
      %v4222 = vadd.f32 %v4149, %v2994
      %v4223 = vadd.f32 %v4154, %v2995
      %v4224 = vadd.f32 %v4157, %v2996
      %v4225 = vadd.f32 %v4162, %v2997
      %v4226 = vadd.f32 %v4165, %v2998
      %v4227 = vadd.f32 %v4170, %v2999
      %v4228 = vadd.f32 %v4173, %v3000
      %v4229 = vadd.f32 %v4178, %v3001
      %v4230 = vadd.f32 %v4181, %v3002
      %v4231 = vadd.f32 %v4186, %v3003
      %v4232 = vadd.f32 %v4189, %v3004
      %v4233 = vadd.f32 %v4194, %v3005
      %v4234 = vadd.f32 %v4197, %v3006
      %v4235 = vadd.f32 %v4202, %v3007
      %v4236 = vadd.f32 %v4205, %v3008
      %v4237 = vadd.f32 %v4210, %v3009
      %v4238 = vadd.f32 %v4213, %v3010
      %4239 = vst [vmem:[%s200 - $0x4] sm:$0xf0] %v4222
      %4240 = vst [vmem:[%s200 + $0x4] sm:$0xff] %v4223
      %4241 = vst [vmem:[%s200 + $0xc] sm:$0xff] %v4224
      %4242 = vst [vmem:[%s200 + $0x14] sm:$0xff] %v4225
      %4243 = vst [vmem:[%s200 + $0x1c] sm:$0xff] %v4226
      %4244 = vst [vmem:[%s200 + $0x24] sm:$0xff] %v4227
      %4245 = vst [vmem:[%s200 + $0x2c] sm:$0xff] %v4228
      %4246 = vst [vmem:[%s200 + $0x34] sm:$0xff] %v4229
      %4247 = vst [vmem:[%s200 + $0x3c] sm:$0xff] %v4230
      %4248 = vst [vmem:[%s200 + $0x44] sm:$0xff] %v4231
      %4249 = vst [vmem:[%s200 + $0x4c] sm:$0xff] %v4232
      %4250 = vst [vmem:[%s200 + $0x54] sm:$0xff] %v4233
      %4251 = vst [vmem:[%s200 + $0x5c] sm:$0xff] %v4234
      %4252 = vst [vmem:[%s200 + $0x64] sm:$0xff] %v4235
      %4253 = vst [vmem:[%s200 + $0x6c] sm:$0xff] %v4236
      %4254 = vst [vmem:[%s200 + $0x74] sm:$0xff] %v4237
      %4255 = vst [vmem:[%s200 + $0x7c] sm:$0xf] %v4238
      %s4256 = smul.u32 16, %s21
      %p4257 = scmp.lt.s32.totalorder %s20, 1
      %s4258 = scalar_select %p4257, %s20, 1
      %p4259 = scmp.lt.s32.totalorder %s4256, 31
      %s4260 = scalar_select %p4259, %s4256, 31
      %s4261 = smul.addr %s4258, 32
      %s4262 = sadd.s32 %s4260, %s4261
      %s4263 = smul.addr %s4262, 8
      %s4264 = scalar_lea.vmem %s5, %s4263
      // Predicated region
      $region113: #{resblock1_forward.1} parent=35 // pred_check
        %p4265 = pneg %p132
      $region114: #{resblock1_forward.1} parent=35 // pred_check_branch
        %4267 = sbr.rel (%p4265) target = $region116
      $region115: #{resblock1_forward.1} parent=35 // pred_region
        %s4268 = smul.u32 16, %s21
      $region116: #{resblock1_forward.1} parent=35 // pred_fallthru
        _
    $region36: #{resblock1_forward.1} parent=5 // pred_fallthru
      _
    %p4269 = scmp.le.s32.totalorder 2, %s11
    // Predicated region
    $region117: #{resblock1_forward.1} parent=5 // pred_check
      %p4270 = pneg %p4269
    $region118: #{resblock1_forward.1} parent=5 // pred_check_branch
      %4272 = sbr.rel (%p4270) target = $region120
    $region119: #{resblock1_forward.1} parent=5 // pred_region
      %s4273 = ssub.s32 %s11, 2
      // Predicated region
      $region121: #{resblock1_forward.1} parent=119 // pred_check
        %p4274 = pneg %p138
      $region122: #{resblock1_forward.1} parent=119 // pred_check_branch
        %4276 = sbr.rel (%p4274) target = $region124
      $region123: #{resblock1_forward.1} parent=119 // pred_region
        %s4277 = smul.u32 16, %s23
        %p4278 = scmp.lt.s32.totalorder %s22, 1
        %s4279 = scalar_select %p4278, %s22, 1
        %p4280 = scmp.lt.s32.totalorder %s4277, 31
        %s4281 = scalar_select %p4280, %s4277, 31
        %s4282 = smul.addr %s4279, 32
        %s4283 = sadd.s32 %s4281, %s4282
        %s4284 = smul.addr %s4283, 8
        %s4285 = scalar_lea.vmem %s5, %s4284
      $region124: #{resblock1_forward.1} parent=119 // pred_fallthru
        _
    $region120: #{resblock1_forward.1} parent=5 // pred_fallthru
      _
  $region6: #{resblock1_forward.1} parent=0 // loop_footer
    %s15 = sadd.s32 1, %s11
  $region7: #{resblock1_forward.1} parent=0 // loop_footer_branch
    %10 = sbr.rel target = $region3
  $region8: #{resblock1_forward.1} parent=0 // loop_exit
    _
  %4286 = vsyncmov [#allocation3]
  %s4287 = vpop.sfrf %4286
  %p4288 = scmp.eq.s32.totalorder %s4287, 0
  %p4289 = pneg %p4288
  %4291 = shalt.err (%p4289)
  %s4292 = scalar_lea.sflag [#allocation3], 1
  %4293 = vsyncmov %s4292
  %s4294 = vpop.sfrf %4293
  %p4295 = scmp.eq.s32.totalorder %s4294, 0
  %p4296 = pneg %p4295
  %4298 = shalt.err (%p4296)

</llo_original>
